<compile_context>
chip_gen: v7x
topology: tpu7x:2x2x1
jax: 0.10.0
libtpu: 0.0.40
codegen_flags: <defaults>
</compile_context>

<pallas_src>
import jax
import jax.numpy as jnp
from jax.experimental import pallas as pl
from jax.experimental.pallas import tpu as pltpu

D_MODEL = 32
D_FF = 64
NUM_HEADS = 4
KSIZE = 15
PAD = (KSIZE - 1) // 2
EPS = 1e-5

# Row indices inside the packed per-channel-vector slab (each row padded to 128 lanes).
I_FF1_G, I_FF1_B, I_FF1_B1, I_FF1_B2 = 0, 1, 2, 3
I_BQKV, I_BO = 4, 5
I_CV_G, I_CV_B, I_PW1_B, I_DW_B, I_BN_A, I_BN_C, I_PW2_B = 6, 7, 8, 9, 10, 11, 12
I_FF2_G, I_FF2_B, I_FF2_B1, I_FF2_B2 = 13, 14, 15, 16
I_LN_G, I_LN_B = 17, 18
NUM_VEC = 19
VEC_WIDTH = 128

# The packed vec slab assumes every per-channel vector fits in one 128-lane row.
assert 3 * D_MODEL <= VEC_WIDTH, "qkv bias does not fit in one packed row"
assert 2 * D_MODEL <= VEC_WIDTH and D_FF <= VEC_WIDTH, "bias rows would be truncated"
assert D_MODEL % NUM_HEADS == 0


def _layer_norm(x, g, b):
    mu = jnp.mean(x, axis=-1, keepdims=True)
    xc = x - mu
    var = jnp.mean(xc * xc, axis=-1, keepdims=True)
    return xc * jax.lax.rsqrt(var + EPS) * g + b


def _ff(x, g, b, w1, b1, w2, b2):
    y = _layer_norm(x, g, b)
    h = jnp.dot(y, w1, preferred_element_type=jnp.float32) + b1
    h = h * jax.nn.sigmoid(h)  # SiLU
    return jnp.dot(h, w2, preferred_element_type=jnp.float32) + b2


def conformer_kernel(
    x_ref, vec_ref,
    ff1_w1, ff1_w2, wqkv, wo, pw1_w, dw_w, pw2_w, ff2_w1, ff2_w2,
    o_ref,
):
    Bt, S, D = x_ref.shape
    M = Bt * S
    H = NUM_HEADS
    hd = D // H

    vecs = vec_ref[...]  # (NUM_VEC, 128), loaded once

    def row(i, width=D_MODEL):
        return vecs[i:i + 1, :width]  # (1, width)

    # Flatten (Bt, S, D) -> (Bt*S, D): leading-dim merge only (layout free, S % 8 == 0).
    x = x_ref[...].astype(jnp.float32).reshape(M, D)

    # ---- FeedForward module 1 (half-step residual) ----
    x = x + 0.5 * _ff(x, row(I_FF1_G), row(I_FF1_B),
                      ff1_w1[...], row(I_FF1_B1, D_FF),
                      ff1_w2[...], row(I_FF1_B2))

    # ---- Multi-head self-attention (fused qkv projection) ----
    qkv = jnp.dot(x, wqkv[...], preferred_element_type=jnp.float32) \
        + row(I_BQKV, 3 * D_MODEL)
    scale = 1.0 / (float(hd) ** 0.5)
    q = (qkv[:, :D] * scale).reshape(Bt, S, D)
    k = qkv[:, D:2 * D].reshape(Bt, S, D)
    v = qkv[:, 2 * D:3 * D].reshape(Bt, S, D)
    # (qkv is dead from here on -> its vregs are free)

    # TODO(synk): a transposed (D, M) activation layout (channels on sublanes) would
    # make every elementwise op / store lane-dense and the head slices 8-aligned,
    # but moves LayerNorm reductions to the sublane axis; not adopted without a
    # bundle-level prototype.
    heads = []
    for h in range(H):
        sl = slice(h * hd, (h + 1) * hd)
        s = jnp.einsum("bqd,bkd->bqk", q[:, :, sl], k[:, :, sl],
                       preferred_element_type=jnp.float32)        # (Bt, S, S)
        s = s - jnp.max(s, axis=-1, keepdims=True)
        p = jnp.exp(s)
        # approx reciprocal (EUP slot): ~1e-3 relative error, inside the 3e-2 tol.
        p = p * pl.reciprocal(jnp.sum(p, axis=-1, keepdims=True), approx=True)
        heads.append(jnp.einsum("bqk,bkd->bqd", p, v[:, :, sl],
                                preferred_element_type=jnp.float32))  # (Bt, S, hd)
    # Single output projection: one (M, D) @ (D, D) matmul instead of 4 K=8 dots.
    oh = jnp.concatenate(heads, axis=-1).reshape(M, D)
    x = x + jnp.dot(oh, wo[...], preferred_element_type=jnp.float32) + row(I_BO)

    # ---- Convolution module ----
    y = _layer_norm(x, row(I_CV_G), row(I_CV_B))
    h2 = jnp.dot(y, pw1_w[...], preferred_element_type=jnp.float32) \
        + row(I_PW1_B, 2 * D_MODEL)
    glu = h2[:, :D] * jax.nn.sigmoid(h2[:, D:])                   # (M, D), GLU

    # Depthwise conv on the flattened slab: sublane roll (XLU) + static edge masks.
    # Rows that would read across a batch boundary / past the sequence edge are
    # exactly the masked rows, so the circular roll over M = Bt*S rows is safe.
    wdw = dw_w[...]                                               # (K, D), hoisted
    s_idx = jax.lax.broadcasted_iota(jnp.int32, (Bt, S, D), 1).reshape(M, D)
    acc = jnp.zeros((M, D), jnp.float32)
    for kk in range(KSIZE):
        off = kk - PAD
        tap = glu if off == 0 else pltpu.roll(glu, (-off) % M, axis=0)
        if off > 0:
            tap = jnp.where(s_idx < S - off, tap, 0.0)
        elif off < 0:
            tap = jnp.where(s_idx >= -off, tap, 0.0)
        acc = acc + tap * wdw[kk:kk + 1, :]
    acc = acc + row(I_DW_B)

    # Folded BatchNorm (eval mode) + ReLU + pointwise conv 2.
    bn = jnp.maximum(acc * row(I_BN_A) + row(I_BN_C), 0.0)
    x = x + jnp.dot(bn, pw2_w[...], preferred_element_type=jnp.float32) \
        + row(I_PW2_B)

    # ---- FeedForward module 2 (half-step residual) ----
    x = x + 0.5 * _ff(x, row(I_FF2_G), row(I_FF2_B),
                      ff2_w1[...], row(I_FF2_B1, D_FF),
                      ff2_w2[...], row(I_FF2_B2))

    # ---- Final LayerNorm ----
    x = _layer_norm(x, row(I_LN_G), row(I_LN_B))
    o_ref[...] = x.reshape(Bt, S, D).astype(o_ref.dtype)


def _pack_vec_row(r):
    r = r.astype(jnp.float32).reshape(1, -1)
    return jnp.pad(r, ((0, 0), (0, VEC_WIDTH - r.shape[1])))


def _cost_estimate(bp, s, param_bytes):
    d, f, h, k = D_MODEL, D_FF, NUM_HEADS, KSIZE
    hd = d // h
    rows = bp * s
    macs = rows * (2 * 2 * d * f          # two FF modules (D->F, F->D each)
                   + d * 3 * d + d * d    # fused qkv proj + output proj
                   + d * 2 * d + d * d    # pointwise convs 1 and 2
                   + d * k)               # depthwise conv taps
    macs += bp * h * 2 * s * s * hd       # attention scores + weighted sum
    transcend = rows * (2 * f + d) + bp * h * s * s
    bytes_accessed = 2 * rows * d * 4 + param_bytes
    return pl.CostEstimate(flops=int(2 * macs),
                           transcendentals=int(transcend),
                           bytes_accessed=int(bytes_accessed))


def conformer_block(x, params, block_batch=None):
    B, S, D = x.shape
    assert D == D_MODEL
    assert S % 8 == 0, "S must be a multiple of 8 for layout-free (Bt,S,D)<->(M,D) merges"

    if block_batch is None:
        # Target ~1024 rows per grid step (fills the MXU M dimension, amortizes the
        # ~0.35us per-step overhead) ...
        bt = max(1, 1024 // S)
        # ... but keep >= 2 grid steps whenever B allows it so the "parallel" batch
        # axis can be sharded onto both v7x TensorCores.
        if B >= 2:
            bt = min(bt, pl.cdiv(B, 2))
        block_batch = min(bt, B)
    Bt = block_batch
    num_blocks = pl.cdiv(B, Bt)
    Bp = num_blocks * Bt
    if Bp != B:
        # Zero padding rows: they go through LayerNorm with var=0 (rsqrt(EPS) path),
        # stay finite, and are discarded by out[:B].
        x = jnp.concatenate([x, jnp.zeros((Bp - B, S, D), x.dtype)], axis=0)

    p = params
    # Fused q/k/v projection (weights stored as (in, out)).
    wqkv = jnp.concatenate([p["wq"], p["wk"], p["wv"]], axis=1)      # (D, 3D)
    bqkv = jnp.concatenate([p["bq"], p["bk"], p["bv"]], axis=1)      # (1, 3D)
    # Fold eval-mode BatchNorm into a single scale/shift.
    bn_a = p["bn_g"] * jax.lax.rsqrt(p["bn_v"] + EPS)
    bn_c = p["bn_b"] - p["bn_m"] * bn_a

    vec_rows = [
        p["ff1_g"], p["ff1_b"], p["ff1_b1"], p["ff1_b2"],
        bqkv, p["bo"],
        p["cv_g"], p["cv_b"], p["pw1_b"], p["dw_b"], bn_a, bn_c, p["pw2_b"],
        p["ff2_g"], p["ff2_b"], p["ff2_b1"], p["ff2_b2"],
        p["ln_g"], p["ln_b"],
    ]
    assert len(vec_rows) == NUM_VEC
    vec = jnp.concatenate([_pack_vec_row(r) for r in vec_rows], axis=0)

    # TODO(synk): on v6e/v7x these could be cast to bf16 (with f32 MXU accumulation)
    # for 2x MXU rate; kept f32 to stay comfortably inside the 3e-2 tolerance.
    weights = [p["ff1_w1"], p["ff1_w2"], wqkv, p["wo"],
               p["pw1_w"], p["dw_w"], p["pw2_w"],
               p["ff2_w1"], p["ff2_w2"]]
    weights = [w.astype(jnp.float32) for w in weights]

    in_specs = [pl.BlockSpec((Bt, S, D), lambda b: (b, 0, 0)),
                pl.BlockSpec(vec.shape, lambda b: (0, 0))]
    for w in weights:
        in_specs.append(pl.BlockSpec(w.shape, lambda b: (0, 0)))

    param_bytes = vec.size * 4 + sum(w.size * 4 for w in weights)

    out = pl.pallas_call(
        conformer_kernel,
        out_shape=jax.ShapeDtypeStruct((Bp, S, D), x.dtype),
        grid_spec=pltpu.PrefetchScalarGridSpec(
            num_scalar_prefetch=0,
            grid=(num_blocks,),
            in_specs=in_specs,
            out_specs=pl.BlockSpec((Bt, S, D), lambda b: (b, 0, 0)),
        ),
        compiler_params=pltpu.CompilerParams(
            dimension_semantics=("parallel",)),       # batch blocks are independent
        cost_estimate=_cost_estimate(Bp, S, param_bytes),
    )(x, vec, *weights)
    return out[:B]


def init_params(key):
    keys = iter(jax.random.split(key, 64))

    def rnd(shape, scale=0.1):
        return (scale * jax.random.normal(next(keys), shape)).astype(jnp.float32)

    D, F, K = D_MODEL, D_FF, KSIZE
    p = {}

    def ln_pair(prefix):
        p[prefix + "_g"] = (1.0 + rnd((1, D))).astype(jnp.float32)
        p[prefix + "_b"] = rnd((1, D))

    # FF module 1
    ln_pair("ff1")
    p["ff1_w1"] = rnd((D, F)); p["ff1_b1"] = rnd((1, F))
    p["ff1_w2"] = rnd((F, D)); p["ff1_b2"] = rnd((1, D))
    # self-attention (in_proj split into q/k/v, weights stored as (in, out))
    for name in ("wq", "wk", "wv", "wo"):
        p[name] = rnd((D, D))
    for name in ("bq", "bk", "bv", "bo"):
        p[name] = rnd((1, D))
    # convolution module
    ln_pair("cv")
    p["pw1_w"] = rnd((D, 2 * D)); p["pw1_b"] = rnd((1, 2 * D))
    p["dw_w"] = rnd((K, D));      p["dw_b"] = rnd((1, D))
    p["bn_g"] = (1.0 + rnd((1, D))).astype(jnp.float32)
    p["bn_b"] = rnd((1, D))
    p["bn_m"] = rnd((1, D))
    p["bn_v"] = (1.0 + jnp.abs(rnd((1, D)))).astype(jnp.float32)
    p["pw2_w"] = rnd((D, D)); p["pw2_b"] = rnd((1, D))
    # FF module 2
    ln_pair("ff2")
    p["ff2_w1"] = rnd((D, F)); p["ff2_b1"] = rnd((1, F))
    p["ff2_w2"] = rnd((F, D)); p["ff2_b2"] = rnd((1, D))
    # final layer norm
    ln_pair("ln")
    return p


def reference(x, p):
    """Pure-JAX reference mirroring the PyTorch forward (eval mode)."""
    def ln(v, g, b):
        mu = v.mean(-1, keepdims=True)
        var = ((v - mu) ** 2).mean(-1, keepdims=True)
        return (v - mu) / jnp.sqrt(var + EPS) * g + b

    def ff(v, g, b, w1, b1, w2, b2):
        y = ln(v, g, b)
        h = y @ w1 + b1
        h = h * jax.nn.sigmoid(h)
        return h @ w2 + b2

    B, S, D = x.shape
    H, hd = NUM_HEADS, D // NUM_HEADS
    x = x + 0.5 * ff(x, p["ff1_g"], p["ff1_b"], p["ff1_w1"], p["ff1_b1"],
                     p["ff1_w2"], p["ff1_b2"])
    q = x @ p["wq"] + p["bq"]
    k = x @ p["wk"] + p["bk"]
    v = x @ p["wv"] + p["bv"]
    q = q.reshape(B, S, H, hd).transpose(0, 2, 1, 3) / jnp.sqrt(float(hd))
    k = k.reshape(B, S, H, hd).transpose(0, 2, 1, 3)
    vv = v.reshape(B, S, H, hd).transpose(0, 2, 1, 3)
    s = jnp.einsum("bhqd,bhkd->bhqk", q, k)
    a = jax.nn.softmax(s, axis=-1)
    o = jnp.einsum("bhqk,bhkd->bhqd", a, vv).transpose(0, 2, 1, 3).reshape(B, S, D)
    x = x + o @ p["wo"] + p["bo"]

    y = ln(x, p["cv_g"], p["cv_b"])
    h = y @ p["pw1_w"] + p["pw1_b"]
    glu = h[..., :D] * jax.nn.sigmoid(h[..., D:])
    gp = jnp.pad(glu, ((0, 0), (PAD, PAD), (0, 0)))
    acc = jnp.zeros_like(glu)
    for kk in range(KSIZE):
        acc = acc + gp[:, kk:kk + S, :] * p["dw_w"][kk]
    acc = acc + p["dw_b"]
    bn = (acc - p["bn_m"]) / jnp.sqrt(p["bn_v"] + EPS) * p["bn_g"] + p["bn_b"]
    bn = jnp.maximum(bn, 0.0)
    x = x + bn @ p["pw2_w"] + p["pw2_b"]

    x = x + 0.5 * ff(x, p["ff2_g"], p["ff2_b"], p["ff2_w1"], p["ff2_b1"],
                     p["ff2_w2"], p["ff2_b2"])
    return ln(x, p["ln_g"], p["ln_b"])


if __name__ == "__main__":
    key = jax.random.PRNGKey(0)
    kx, kp = jax.random.split(key)
    B, S = 2, 16
    x = jax.random.normal(kx, (B, S, D_MODEL), dtype=jnp.float32)
    params = init_params(kp)

    # Small-batch path: heuristic picks Bt=1 -> 2 grid steps (one per v7x TC).
    out = jax.block_until_ready(conformer_block(x, params))
    assert out.shape == (B, S, D_MODEL)
    err = float(jnp.max(jnp.abs(out - reference(x, params))))
    assert err < 3e-2, f"max abs err too large: {err}"

    # Padding path (B not a multiple of Bt).
    x2 = jax.random.normal(jax.random.PRNGKey(1), (5, S, D_MODEL), dtype=jnp.float32)
    out2 = jax.block_until_ready(conformer_block(x2, params, block_batch=2))
    err2 = float(jnp.max(jnp.abs(out2 - reference(x2, params))))
    assert err2 < 3e-2, f"max abs err too large (multi-block): {err2}"

    # Larger-batch path: default heuristic picks Bt=32 -> two 512-row blocks.
    x3 = jax.random.normal(jax.random.PRNGKey(2), (64, S, D_MODEL), dtype=jnp.float32)
    out3 = jax.block_until_ready(conformer_block(x3, params))
    err3 = float(jnp.max(jnp.abs(out3 - reference(x3, params))))
    assert err3 < 3e-2, f"max abs err too large (large batch): {err3}"

    # TODO(synk): training-mode Dropout / BatchNorm batch statistics not modeled
    # (eval-mode semantics implemented).
    print("KERNEL_OK")
</pallas_src>

<mosaic_0001>
module attributes {stable_mosaic.version = 11 : i64} {
  func.func @conformer_kernel(%arg0: i32, %arg1: memref<1x16x32xf32, #tpu.memory_space<vmem>>, %arg2: memref<19x128xf32, #tpu.memory_space<vmem>>, %arg3: memref<32x64xf32, #tpu.memory_space<vmem>>, %arg4: memref<64x32xf32, #tpu.memory_space<vmem>>, %arg5: memref<32x96xf32, #tpu.memory_space<vmem>>, %arg6: memref<32x32xf32, #tpu.memory_space<vmem>>, %arg7: memref<32x64xf32, #tpu.memory_space<vmem>>, %arg8: memref<15x32xf32, #tpu.memory_space<vmem>>, %arg9: memref<32x32xf32, #tpu.memory_space<vmem>>, %arg10: memref<32x64xf32, #tpu.memory_space<vmem>>, %arg11: memref<64x32xf32, #tpu.memory_space<vmem>>, %arg12: memref<1x16x32xf32, #tpu.memory_space<vmem>>) attributes {dimension_semantics = [#tpu.dimension_semantics<parallel>], iteration_bounds = array<i64: 2>, scalar_prefetch = 0 : i64, scratch_operands = 0 : i64, tpu.core_type = #tpu.core_type<tc>, window_params = [{transform_indices = @transform_0, window_bounds = array<i64: 1, 16, 32>}, {pipeline_mode = #tpu.pipeline_mode<synchronous>, transform_indices = @transform_1, window_bounds = array<i64: 19, 128>}, {pipeline_mode = #tpu.pipeline_mode<synchronous>, transform_indices = @transform_2, window_bounds = array<i64: 32, 64>}, {pipeline_mode = #tpu.pipeline_mode<synchronous>, transform_indices = @transform_3, window_bounds = array<i64: 64, 32>}, {pipeline_mode = #tpu.pipeline_mode<synchronous>, transform_indices = @transform_4, window_bounds = array<i64: 32, 96>}, {pipeline_mode = #tpu.pipeline_mode<synchronous>, transform_indices = @transform_5, window_bounds = array<i64: 32, 32>}, {pipeline_mode = #tpu.pipeline_mode<synchronous>, transform_indices = @transform_6, window_bounds = array<i64: 32, 64>}, {pipeline_mode = #tpu.pipeline_mode<synchronous>, transform_indices = @transform_7, window_bounds = array<i64: 15, 32>}, {pipeline_mode = #tpu.pipeline_mode<synchronous>, transform_indices = @transform_8, window_bounds = array<i64: 32, 32>}, {pipeline_mode = #tpu.pipeline_mode<synchronous>, transform_indices = @transform_9, window_bounds = array<i64: 32, 64>}, {pipeline_mode = #tpu.pipeline_mode<synchronous>, transform_indices = @transform_10, window_bounds = array<i64: 64, 32>}, {transform_indices = @transform_11, window_bounds = array<i64: 1, 16, 32>}]} {
    %c0 = arith.constant 0 : index
    %c0_0 = arith.constant 0 : index
    %0 = vector.load %arg2[%c0, %c0_0] : memref<19x128xf32, #tpu.memory_space<vmem>>, vector<19x128xf32>
    %c0_1 = arith.constant 0 : index
    %c0_2 = arith.constant 0 : index
    %c0_3 = arith.constant 0 : index
    %1 = vector.load %arg1[%c0_1, %c0_2, %c0_3] : memref<1x16x32xf32, #tpu.memory_space<vmem>>, vector<1x16x32xf32>
    %2 = vector.shape_cast %1 : vector<1x16x32xf32> to vector<16x32xf32>
    %3 = vector.extract_strided_slice %0 {offsets = [0, 0], sizes = [1, 32], strides = [1, 1]} : vector<19x128xf32> to vector<1x32xf32>
    %4 = vector.extract_strided_slice %0 {offsets = [1, 0], sizes = [1, 32], strides = [1, 1]} : vector<19x128xf32> to vector<1x32xf32>
    %c0_4 = arith.constant 0 : index
    %c0_5 = arith.constant 0 : index
    %5 = vector.load %arg3[%c0_4, %c0_5] : memref<32x64xf32, #tpu.memory_space<vmem>>, vector<32x64xf32>
    %6 = vector.extract_strided_slice %0 {offsets = [2, 0], sizes = [1, 64], strides = [1, 1]} : vector<19x128xf32> to vector<1x64xf32>
    %c0_6 = arith.constant 0 : index
    %c0_7 = arith.constant 0 : index
    %7 = vector.load %arg4[%c0_6, %c0_7] : memref<64x32xf32, #tpu.memory_space<vmem>>, vector<64x32xf32>
    %8 = vector.extract_strided_slice %0 {offsets = [3, 0], sizes = [1, 32], strides = [1, 1]} : vector<19x128xf32> to vector<1x32xf32>
    %cst = arith.constant dense<0.000000e+00> : vector<16xf32>
    %9 = vector.multi_reduction <add>, %2, %cst [1] : vector<16x32xf32> to vector<16xf32>
    %10 = vector.shape_cast %9 : vector<16xf32> to vector<16x1xf32>
    %cst_8 = arith.constant 3.200000e+01 : f32
    %11 = vector.broadcast %cst_8 : f32 to vector<16x1xf32>
    %12 = arith.divf %10, %11 : vector<16x1xf32>
    %13 = vector.broadcast %12 : vector<16x1xf32> to vector<16x32xf32>
    %14 = arith.subf %2, %13 : vector<16x32xf32>
    %15 = arith.mulf %14, %14 : vector<16x32xf32>
    %cst_9 = arith.constant dense<0.000000e+00> : vector<16xf32>
    %16 = vector.multi_reduction <add>, %15, %cst_9 [1] : vector<16x32xf32> to vector<16xf32>
    %17 = vector.shape_cast %16 : vector<16xf32> to vector<16x1xf32>
    %cst_10 = arith.constant 3.200000e+01 : f32
    %18 = vector.broadcast %cst_10 : f32 to vector<16x1xf32>
    %19 = arith.divf %17, %18 : vector<16x1xf32>
    %cst_11 = arith.constant 9.99999974E-6 : f32
    %20 = vector.broadcast %cst_11 : f32 to vector<16x1xf32>
    %21 = arith.addf %19, %20 : vector<16x1xf32>
    %22 = math.rsqrt %21 : vector<16x1xf32>
    %23 = vector.broadcast %22 : vector<16x1xf32> to vector<16x32xf32>
    %24 = arith.mulf %14, %23 : vector<16x32xf32>
    %25 = vector.broadcast %3 : vector<1x32xf32> to vector<16x32xf32>
    %26 = arith.mulf %24, %25 : vector<16x32xf32>
    %27 = vector.broadcast %4 : vector<1x32xf32> to vector<16x32xf32>
    %28 = arith.addf %26, %27 : vector<16x32xf32>
    %cst_12 = arith.constant dense<0.000000e+00> : vector<16x64xf32>
    %29 = tpu.matmul %28, %5, %cst_12 {dimension_numbers = #tpu.dot_dimension_numbers<[1], [0], [0], [1], [0, 0, 1, 1], [], []>} : vector<16x32xf32>, vector<32x64xf32>, vector<16x64xf32> -> vector<16x64xf32>
    %30 = vector.broadcast %6 : vector<1x64xf32> to vector<16x64xf32>
    %31 = arith.addf %29, %30 : vector<16x64xf32>
    %32 = arith.negf %31 : vector<16x64xf32>
    %33 = math.exp %32 : vector<16x64xf32>
    %cst_13 = arith.constant 1.000000e+00 : f32
    %34 = vector.broadcast %cst_13 : f32 to vector<16x64xf32>
    %35 = arith.addf %34, %33 : vector<16x64xf32>
    %36 = arith.divf %34, %35 : vector<16x64xf32>
    %37 = arith.mulf %31, %36 : vector<16x64xf32>
    %cst_14 = arith.constant dense<0.000000e+00> : vector<16x32xf32>
    %38 = tpu.matmul %37, %7, %cst_14 {dimension_numbers = #tpu.dot_dimension_numbers<[1], [0], [0], [1], [0, 0, 1, 1], [], []>} : vector<16x64xf32>, vector<64x32xf32>, vector<16x32xf32> -> vector<16x32xf32>
    %39 = vector.broadcast %8 : vector<1x32xf32> to vector<16x32xf32>
    %40 = arith.addf %38, %39 : vector<16x32xf32>
    %cst_15 = arith.constant 5.000000e-01 : f32
    %41 = vector.broadcast %cst_15 : f32 to vector<16x32xf32>
    %42 = arith.mulf %41, %40 : vector<16x32xf32>
    %43 = arith.addf %2, %42 : vector<16x32xf32>
    %c0_16 = arith.constant 0 : index
    %c0_17 = arith.constant 0 : index
    %44 = vector.load %arg5[%c0_16, %c0_17] : memref<32x96xf32, #tpu.memory_space<vmem>>, vector<32x96xf32>
    %cst_18 = arith.constant dense<0.000000e+00> : vector<16x96xf32>
    %45 = tpu.matmul %43, %44, %cst_18 {dimension_numbers = #tpu.dot_dimension_numbers<[1], [0], [0], [1], [0, 0, 1, 1], [], []>} : vector<16x32xf32>, vector<32x96xf32>, vector<16x96xf32> -> vector<16x96xf32>
    %46 = vector.extract_strided_slice %0 {offsets = [4, 0], sizes = [1, 96], strides = [1, 1]} : vector<19x128xf32> to vector<1x96xf32>
    %47 = vector.broadcast %46 : vector<1x96xf32> to vector<16x96xf32>
    %48 = arith.addf %45, %47 : vector<16x96xf32>
    %49 = vector.extract_strided_slice %48 {offsets = [0, 0], sizes = [16, 32], strides = [1, 1]} : vector<16x96xf32> to vector<16x32xf32>
    %cst_19 = arith.constant 0.353553385 : f32
    %50 = vector.broadcast %cst_19 : f32 to vector<16x32xf32>
    %51 = arith.mulf %49, %50 : vector<16x32xf32>
    %52 = vector.shape_cast %51 : vector<16x32xf32> to vector<1x16x32xf32>
    %53 = vector.extract_strided_slice %48 {offsets = [0, 32], sizes = [16, 32], strides = [1, 1]} : vector<16x96xf32> to vector<16x32xf32>
    %54 = vector.shape_cast %53 : vector<16x32xf32> to vector<1x16x32xf32>
    %55 = vector.extract_strided_slice %48 {offsets = [0, 64], sizes = [16, 32], strides = [1, 1]} : vector<16x96xf32> to vector<16x32xf32>
    %56 = vector.shape_cast %55 : vector<16x32xf32> to vector<1x16x32xf32>
    %57 = vector.extract_strided_slice %52 {offsets = [0, 0, 0], sizes = [1, 16, 8], strides = [1, 1, 1]} : vector<1x16x32xf32> to vector<1x16x8xf32>
    %58 = vector.extract_strided_slice %54 {offsets = [0, 0, 0], sizes = [1, 16, 8], strides = [1, 1, 1]} : vector<1x16x32xf32> to vector<1x16x8xf32>
    "tpu.trace_start"() <{level = 10 : i32, message = "bqd,bkd->bqk"}> : () -> ()
    %cst_20 = arith.constant dense<0.000000e+00> : vector<1x16x16xf32>
    %59 = tpu.matmul %57, %58, %cst_20 {dimension_numbers = #tpu.dot_dimension_numbers<[2], [2], [1], [1], [0, 0, 0, 1, 1, 1], [0], [0]>} : vector<1x16x8xf32>, vector<1x16x8xf32>, vector<1x16x16xf32> -> vector<1x16x16xf32>
    "tpu.trace_stop"() : () -> ()
    %cst_21 = arith.constant dense<0xFF800000> : vector<1x16xf32>
    %60 = vector.multi_reduction <maximumf>, %59, %cst_21 [2] : vector<1x16x16xf32> to vector<1x16xf32>
    %61 = vector.shape_cast %60 : vector<1x16xf32> to vector<1x16x1xf32>
    %62 = vector.broadcast %61 : vector<1x16x1xf32> to vector<1x16x16xf32>
    %63 = arith.subf %59, %62 : vector<1x16x16xf32>
    %64 = math.exp %63 : vector<1x16x16xf32>
    %cst_22 = arith.constant dense<0.000000e+00> : vector<1x16xf32>
    %65 = vector.multi_reduction <add>, %64, %cst_22 [2] : vector<1x16x16xf32> to vector<1x16xf32>
    %66 = vector.shape_cast %65 : vector<1x16xf32> to vector<1x16x1xf32>
    %67 = tpu.reciprocal %66 {approx = true} : vector<1x16x1xf32> -> vector<1x16x1xf32>
    %68 = vector.broadcast %67 : vector<1x16x1xf32> to vector<1x16x16xf32>
    %69 = arith.mulf %64, %68 : vector<1x16x16xf32>
    %70 = vector.extract_strided_slice %56 {offsets = [0, 0, 0], sizes = [1, 16, 8], strides = [1, 1, 1]} : vector<1x16x32xf32> to vector<1x16x8xf32>
    "tpu.trace_start"() <{level = 10 : i32, message = "bqk,bkd->bqd"}> : () -> ()
    %cst_23 = arith.constant dense<0.000000e+00> : vector<1x16x8xf32>
    %71 = tpu.matmul %69, %70, %cst_23 {dimension_numbers = #tpu.dot_dimension_numbers<[2], [1], [1], [2], [0, 0, 0, 1, 1, 2], [0], [0]>} : vector<1x16x16xf32>, vector<1x16x8xf32>, vector<1x16x8xf32> -> vector<1x16x8xf32>
    "tpu.trace_stop"() : () -> ()
    %72 = vector.extract_strided_slice %52 {offsets = [0, 0, 8], sizes = [1, 16, 8], strides = [1, 1, 1]} : vector<1x16x32xf32> to vector<1x16x8xf32>
    %73 = vector.extract_strided_slice %54 {offsets = [0, 0, 8], sizes = [1, 16, 8], strides = [1, 1, 1]} : vector<1x16x32xf32> to vector<1x16x8xf32>
    "tpu.trace_start"() <{level = 10 : i32, message = "bqd,bkd->bqk"}> : () -> ()
    %cst_24 = arith.constant dense<0.000000e+00> : vector<1x16x16xf32>
    %74 = tpu.matmul %72, %73, %cst_24 {dimension_numbers = #tpu.dot_dimension_numbers<[2], [2], [1], [1], [0, 0, 0, 1, 1, 1], [0], [0]>} : vector<1x16x8xf32>, vector<1x16x8xf32>, vector<1x16x16xf32> -> vector<1x16x16xf32>
    "tpu.trace_stop"() : () -> ()
    %cst_25 = arith.constant dense<0xFF800000> : vector<1x16xf32>
    %75 = vector.multi_reduction <maximumf>, %74, %cst_25 [2] : vector<1x16x16xf32> to vector<1x16xf32>
    %76 = vector.shape_cast %75 : vector<1x16xf32> to vector<1x16x1xf32>
    %77 = vector.broadcast %76 : vector<1x16x1xf32> to vector<1x16x16xf32>
    %78 = arith.subf %74, %77 : vector<1x16x16xf32>
    %79 = math.exp %78 : vector<1x16x16xf32>
    %cst_26 = arith.constant dense<0.000000e+00> : vector<1x16xf32>
    %80 = vector.multi_reduction <add>, %79, %cst_26 [2] : vector<1x16x16xf32> to vector<1x16xf32>
    %81 = vector.shape_cast %80 : vector<1x16xf32> to vector<1x16x1xf32>
    %82 = tpu.reciprocal %81 {approx = true} : vector<1x16x1xf32> -> vector<1x16x1xf32>
    %83 = vector.broadcast %82 : vector<1x16x1xf32> to vector<1x16x16xf32>
    %84 = arith.mulf %79, %83 : vector<1x16x16xf32>
    %85 = vector.extract_strided_slice %56 {offsets = [0, 0, 8], sizes = [1, 16, 8], strides = [1, 1, 1]} : vector<1x16x32xf32> to vector<1x16x8xf32>
    "tpu.trace_start"() <{level = 10 : i32, message = "bqk,bkd->bqd"}> : () -> ()
    %cst_27 = arith.constant dense<0.000000e+00> : vector<1x16x8xf32>
    %86 = tpu.matmul %84, %85, %cst_27 {dimension_numbers = #tpu.dot_dimension_numbers<[2], [1], [1], [2], [0, 0, 0, 1, 1, 2], [0], [0]>} : vector<1x16x16xf32>, vector<1x16x8xf32>, vector<1x16x8xf32> -> vector<1x16x8xf32>
    "tpu.trace_stop"() : () -> ()
    %87 = vector.extract_strided_slice %52 {offsets = [0, 0, 16], sizes = [1, 16, 8], strides = [1, 1, 1]} : vector<1x16x32xf32> to vector<1x16x8xf32>
    %88 = vector.extract_strided_slice %54 {offsets = [0, 0, 16], sizes = [1, 16, 8], strides = [1, 1, 1]} : vector<1x16x32xf32> to vector<1x16x8xf32>
    "tpu.trace_start"() <{level = 10 : i32, message = "bqd,bkd->bqk"}> : () -> ()
    %cst_28 = arith.constant dense<0.000000e+00> : vector<1x16x16xf32>
    %89 = tpu.matmul %87, %88, %cst_28 {dimension_numbers = #tpu.dot_dimension_numbers<[2], [2], [1], [1], [0, 0, 0, 1, 1, 1], [0], [0]>} : vector<1x16x8xf32>, vector<1x16x8xf32>, vector<1x16x16xf32> -> vector<1x16x16xf32>
    "tpu.trace_stop"() : () -> ()
    %cst_29 = arith.constant dense<0xFF800000> : vector<1x16xf32>
    %90 = vector.multi_reduction <maximumf>, %89, %cst_29 [2] : vector<1x16x16xf32> to vector<1x16xf32>
    %91 = vector.shape_cast %90 : vector<1x16xf32> to vector<1x16x1xf32>
    %92 = vector.broadcast %91 : vector<1x16x1xf32> to vector<1x16x16xf32>
    %93 = arith.subf %89, %92 : vector<1x16x16xf32>
    %94 = math.exp %93 : vector<1x16x16xf32>
    %cst_30 = arith.constant dense<0.000000e+00> : vector<1x16xf32>
    %95 = vector.multi_reduction <add>, %94, %cst_30 [2] : vector<1x16x16xf32> to vector<1x16xf32>
    %96 = vector.shape_cast %95 : vector<1x16xf32> to vector<1x16x1xf32>
    %97 = tpu.reciprocal %96 {approx = true} : vector<1x16x1xf32> -> vector<1x16x1xf32>
    %98 = vector.broadcast %97 : vector<1x16x1xf32> to vector<1x16x16xf32>
    %99 = arith.mulf %94, %98 : vector<1x16x16xf32>
    %100 = vector.extract_strided_slice %56 {offsets = [0, 0, 16], sizes = [1, 16, 8], strides = [1, 1, 1]} : vector<1x16x32xf32> to vector<1x16x8xf32>
    "tpu.trace_start"() <{level = 10 : i32, message = "bqk,bkd->bqd"}> : () -> ()
    %cst_31 = arith.constant dense<0.000000e+00> : vector<1x16x8xf32>
    %101 = tpu.matmul %99, %100, %cst_31 {dimension_numbers = #tpu.dot_dimension_numbers<[2], [1], [1], [2], [0, 0, 0, 1, 1, 2], [0], [0]>} : vector<1x16x16xf32>, vector<1x16x8xf32>, vector<1x16x8xf32> -> vector<1x16x8xf32>
    "tpu.trace_stop"() : () -> ()
    %102 = vector.extract_strided_slice %52 {offsets = [0, 0, 24], sizes = [1, 16, 8], strides = [1, 1, 1]} : vector<1x16x32xf32> to vector<1x16x8xf32>
    %103 = vector.extract_strided_slice %54 {offsets = [0, 0, 24], sizes = [1, 16, 8], strides = [1, 1, 1]} : vector<1x16x32xf32> to vector<1x16x8xf32>
    "tpu.trace_start"() <{level = 10 : i32, message = "bqd,bkd->bqk"}> : () -> ()
    %cst_32 = arith.constant dense<0.000000e+00> : vector<1x16x16xf32>
    %104 = tpu.matmul %102, %103, %cst_32 {dimension_numbers = #tpu.dot_dimension_numbers<[2], [2], [1], [1], [0, 0, 0, 1, 1, 1], [0], [0]>} : vector<1x16x8xf32>, vector<1x16x8xf32>, vector<1x16x16xf32> -> vector<1x16x16xf32>
    "tpu.trace_stop"() : () -> ()
    %cst_33 = arith.constant dense<0xFF800000> : vector<1x16xf32>
    %105 = vector.multi_reduction <maximumf>, %104, %cst_33 [2] : vector<1x16x16xf32> to vector<1x16xf32>
    %106 = vector.shape_cast %105 : vector<1x16xf32> to vector<1x16x1xf32>
    %107 = vector.broadcast %106 : vector<1x16x1xf32> to vector<1x16x16xf32>
    %108 = arith.subf %104, %107 : vector<1x16x16xf32>
    %109 = math.exp %108 : vector<1x16x16xf32>
    %cst_34 = arith.constant dense<0.000000e+00> : vector<1x16xf32>
    %110 = vector.multi_reduction <add>, %109, %cst_34 [2] : vector<1x16x16xf32> to vector<1x16xf32>
    %111 = vector.shape_cast %110 : vector<1x16xf32> to vector<1x16x1xf32>
    %112 = tpu.reciprocal %111 {approx = true} : vector<1x16x1xf32> -> vector<1x16x1xf32>
    %113 = vector.broadcast %112 : vector<1x16x1xf32> to vector<1x16x16xf32>
    %114 = arith.mulf %109, %113 : vector<1x16x16xf32>
    %115 = vector.extract_strided_slice %56 {offsets = [0, 0, 24], sizes = [1, 16, 8], strides = [1, 1, 1]} : vector<1x16x32xf32> to vector<1x16x8xf32>
    "tpu.trace_start"() <{level = 10 : i32, message = "bqk,bkd->bqd"}> : () -> ()
    %cst_35 = arith.constant dense<0.000000e+00> : vector<1x16x8xf32>
    %116 = tpu.matmul %114, %115, %cst_35 {dimension_numbers = #tpu.dot_dimension_numbers<[2], [1], [1], [2], [0, 0, 0, 1, 1, 2], [0], [0]>} : vector<1x16x16xf32>, vector<1x16x8xf32>, vector<1x16x8xf32> -> vector<1x16x8xf32>
    "tpu.trace_stop"() : () -> ()
    %117 = tpu.concatenate %71, %86, %101, %116 in 2 : vector<1x16x8xf32>, vector<1x16x8xf32>, vector<1x16x8xf32>, vector<1x16x8xf32> -> vector<1x16x32xf32>
    %118 = vector.shape_cast %117 : vector<1x16x32xf32> to vector<16x32xf32>
    %c0_36 = arith.constant 0 : index
    %c0_37 = arith.constant 0 : index
    %119 = vector.load %arg6[%c0_36, %c0_37] : memref<32x32xf32, #tpu.memory_space<vmem>>, vector<32x32xf32>
    %cst_38 = arith.constant dense<0.000000e+00> : vector<16x32xf32>
    %120 = tpu.matmul %118, %119, %cst_38 {dimension_numbers = #tpu.dot_dimension_numbers<[1], [0], [0], [1], [0, 0, 1, 1], [], []>} : vector<16x32xf32>, vector<32x32xf32>, vector<16x32xf32> -> vector<16x32xf32>
    %121 = arith.addf %43, %120 : vector<16x32xf32>
    %122 = vector.extract_strided_slice %0 {offsets = [5, 0], sizes = [1, 32], strides = [1, 1]} : vector<19x128xf32> to vector<1x32xf32>
    %123 = vector.broadcast %122 : vector<1x32xf32> to vector<16x32xf32>
    %124 = arith.addf %121, %123 : vector<16x32xf32>
    %125 = vector.extract_strided_slice %0 {offsets = [6, 0], sizes = [1, 32], strides = [1, 1]} : vector<19x128xf32> to vector<1x32xf32>
    %126 = vector.extract_strided_slice %0 {offsets = [7, 0], sizes = [1, 32], strides = [1, 1]} : vector<19x128xf32> to vector<1x32xf32>
    %cst_39 = arith.constant dense<0.000000e+00> : vector<16xf32>
    %127 = vector.multi_reduction <add>, %124, %cst_39 [1] : vector<16x32xf32> to vector<16xf32>
    %128 = vector.shape_cast %127 : vector<16xf32> to vector<16x1xf32>
    %cst_40 = arith.constant 3.200000e+01 : f32
    %129 = vector.broadcast %cst_40 : f32 to vector<16x1xf32>
    %130 = arith.divf %128, %129 : vector<16x1xf32>
    %131 = vector.broadcast %130 : vector<16x1xf32> to vector<16x32xf32>
    %132 = arith.subf %124, %131 : vector<16x32xf32>
    %133 = arith.mulf %132, %132 : vector<16x32xf32>
    %cst_41 = arith.constant dense<0.000000e+00> : vector<16xf32>
    %134 = vector.multi_reduction <add>, %133, %cst_41 [1] : vector<16x32xf32> to vector<16xf32>
    %135 = vector.shape_cast %134 : vector<16xf32> to vector<16x1xf32>
    %cst_42 = arith.constant 3.200000e+01 : f32
    %136 = vector.broadcast %cst_42 : f32 to vector<16x1xf32>
    %137 = arith.divf %135, %136 : vector<16x1xf32>
    %cst_43 = arith.constant 9.99999974E-6 : f32
    %138 = vector.broadcast %cst_43 : f32 to vector<16x1xf32>
    %139 = arith.addf %137, %138 : vector<16x1xf32>
    %140 = math.rsqrt %139 : vector<16x1xf32>
    %141 = vector.broadcast %140 : vector<16x1xf32> to vector<16x32xf32>
    %142 = arith.mulf %132, %141 : vector<16x32xf32>
    %143 = vector.broadcast %125 : vector<1x32xf32> to vector<16x32xf32>
    %144 = arith.mulf %142, %143 : vector<16x32xf32>
    %145 = vector.broadcast %126 : vector<1x32xf32> to vector<16x32xf32>
    %146 = arith.addf %144, %145 : vector<16x32xf32>
    %c0_44 = arith.constant 0 : index
    %c0_45 = arith.constant 0 : index
    %147 = vector.load %arg7[%c0_44, %c0_45] : memref<32x64xf32, #tpu.memory_space<vmem>>, vector<32x64xf32>
    %cst_46 = arith.constant dense<0.000000e+00> : vector<16x64xf32>
    %148 = tpu.matmul %146, %147, %cst_46 {dimension_numbers = #tpu.dot_dimension_numbers<[1], [0], [0], [1], [0, 0, 1, 1], [], []>} : vector<16x32xf32>, vector<32x64xf32>, vector<16x64xf32> -> vector<16x64xf32>
    %149 = vector.extract_strided_slice %0 {offsets = [8, 0], sizes = [1, 64], strides = [1, 1]} : vector<19x128xf32> to vector<1x64xf32>
    %150 = vector.broadcast %149 : vector<1x64xf32> to vector<16x64xf32>
    %151 = arith.addf %148, %150 : vector<16x64xf32>
    %152 = vector.extract_strided_slice %151 {offsets = [0, 0], sizes = [16, 32], strides = [1, 1]} : vector<16x64xf32> to vector<16x32xf32>
    %153 = vector.extract_strided_slice %151 {offsets = [0, 32], sizes = [16, 32], strides = [1, 1]} : vector<16x64xf32> to vector<16x32xf32>
    %154 = arith.negf %153 : vector<16x32xf32>
    %155 = math.exp %154 : vector<16x32xf32>
    %cst_47 = arith.constant 1.000000e+00 : f32
    %156 = vector.broadcast %cst_47 : f32 to vector<16x32xf32>
    %157 = arith.addf %156, %155 : vector<16x32xf32>
    %158 = arith.divf %156, %157 : vector<16x32xf32>
    %159 = arith.mulf %152, %158 : vector<16x32xf32>
    %c0_48 = arith.constant 0 : index
    %c0_49 = arith.constant 0 : index
    %160 = vector.load %arg8[%c0_48, %c0_49] : memref<15x32xf32, #tpu.memory_space<vmem>>, vector<15x32xf32>
    %161 = tpu.iota {dimensions = array<i32: 1>} : vector<1x16x32xi32>
    %162 = vector.shape_cast %161 : vector<1x16x32xi32> to vector<16x32xi32>
    %cst_50 = arith.constant 0.000000e+00 : f32
    %163 = vector.broadcast %cst_50 : f32 to vector<16x32xf32>
    %c7_i32 = arith.constant 7 : i32
    %164 = tpu.dynamic_rotate %159 by %c7_i32 dim 0 : vector<16x32xf32>, i32 -> vector<16x32xf32>
    %c7_i32_51 = arith.constant 7 : i32
    %165 = vector.broadcast %c7_i32_51 : i32 to vector<16x32xi32>
    %166 = arith.cmpi sge, %162, %165 : vector<16x32xi32>
    %cst_52 = arith.constant 0.000000e+00 : f32
    %167 = vector.broadcast %cst_52 : f32 to vector<16x32xf32>
    %168 = arith.select %166, %164, %167 : vector<16x32xi1>, vector<16x32xf32>
    %169 = vector.extract_strided_slice %160 {offsets = [0, 0], sizes = [1, 32], strides = [1, 1]} : vector<15x32xf32> to vector<1x32xf32>
    %170 = vector.broadcast %169 : vector<1x32xf32> to vector<16x32xf32>
    %171 = arith.mulf %168, %170 : vector<16x32xf32>
    %172 = arith.addf %163, %171 : vector<16x32xf32>
    %c6_i32 = arith.constant 6 : i32
    %173 = tpu.dynamic_rotate %159 by %c6_i32 dim 0 : vector<16x32xf32>, i32 -> vector<16x32xf32>
    %c6_i32_53 = arith.constant 6 : i32
    %174 = vector.broadcast %c6_i32_53 : i32 to vector<16x32xi32>
    %175 = arith.cmpi sge, %162, %174 : vector<16x32xi32>
    %cst_54 = arith.constant 0.000000e+00 : f32
    %176 = vector.broadcast %cst_54 : f32 to vector<16x32xf32>
    %177 = arith.select %175, %173, %176 : vector<16x32xi1>, vector<16x32xf32>
    %178 = vector.extract_strided_slice %160 {offsets = [1, 0], sizes = [1, 32], strides = [1, 1]} : vector<15x32xf32> to vector<1x32xf32>
    %179 = vector.broadcast %178 : vector<1x32xf32> to vector<16x32xf32>
    %180 = arith.mulf %177, %179 : vector<16x32xf32>
    %181 = arith.addf %172, %180 : vector<16x32xf32>
    %c5_i32 = arith.constant 5 : i32
    %182 = tpu.dynamic_rotate %159 by %c5_i32 dim 0 : vector<16x32xf32>, i32 -> vector<16x32xf32>
    %c5_i32_55 = arith.constant 5 : i32
    %183 = vector.broadcast %c5_i32_55 : i32 to vector<16x32xi32>
    %184 = arith.cmpi sge, %162, %183 : vector<16x32xi32>
    %cst_56 = arith.constant 0.000000e+00 : f32
    %185 = vector.broadcast %cst_56 : f32 to vector<16x32xf32>
    %186 = arith.select %184, %182, %185 : vector<16x32xi1>, vector<16x32xf32>
    %187 = vector.extract_strided_slice %160 {offsets = [2, 0], sizes = [1, 32], strides = [1, 1]} : vector<15x32xf32> to vector<1x32xf32>
    %188 = vector.broadcast %187 : vector<1x32xf32> to vector<16x32xf32>
    %189 = arith.mulf %186, %188 : vector<16x32xf32>
    %190 = arith.addf %181, %189 : vector<16x32xf32>
    %c4_i32 = arith.constant 4 : i32
    %191 = tpu.dynamic_rotate %159 by %c4_i32 dim 0 : vector<16x32xf32>, i32 -> vector<16x32xf32>
    %c4_i32_57 = arith.constant 4 : i32
    %192 = vector.broadcast %c4_i32_57 : i32 to vector<16x32xi32>
    %193 = arith.cmpi sge, %162, %192 : vector<16x32xi32>
    %cst_58 = arith.constant 0.000000e+00 : f32
    %194 = vector.broadcast %cst_58 : f32 to vector<16x32xf32>
    %195 = arith.select %193, %191, %194 : vector<16x32xi1>, vector<16x32xf32>
    %196 = vector.extract_strided_slice %160 {offsets = [3, 0], sizes = [1, 32], strides = [1, 1]} : vector<15x32xf32> to vector<1x32xf32>
    %197 = vector.broadcast %196 : vector<1x32xf32> to vector<16x32xf32>
    %198 = arith.mulf %195, %197 : vector<16x32xf32>
    %199 = arith.addf %190, %198 : vector<16x32xf32>
    %c3_i32 = arith.constant 3 : i32
    %200 = tpu.dynamic_rotate %159 by %c3_i32 dim 0 : vector<16x32xf32>, i32 -> vector<16x32xf32>
    %c3_i32_59 = arith.constant 3 : i32
    %201 = vector.broadcast %c3_i32_59 : i32 to vector<16x32xi32>
    %202 = arith.cmpi sge, %162, %201 : vector<16x32xi32>
    %cst_60 = arith.constant 0.000000e+00 : f32
    %203 = vector.broadcast %cst_60 : f32 to vector<16x32xf32>
    %204 = arith.select %202, %200, %203 : vector<16x32xi1>, vector<16x32xf32>
    %205 = vector.extract_strided_slice %160 {offsets = [4, 0], sizes = [1, 32], strides = [1, 1]} : vector<15x32xf32> to vector<1x32xf32>
    %206 = vector.broadcast %205 : vector<1x32xf32> to vector<16x32xf32>
    %207 = arith.mulf %204, %206 : vector<16x32xf32>
    %208 = arith.addf %199, %207 : vector<16x32xf32>
    %c2_i32 = arith.constant 2 : i32
    %209 = tpu.dynamic_rotate %159 by %c2_i32 dim 0 : vector<16x32xf32>, i32 -> vector<16x32xf32>
    %c2_i32_61 = arith.constant 2 : i32
    %210 = vector.broadcast %c2_i32_61 : i32 to vector<16x32xi32>
    %211 = arith.cmpi sge, %162, %210 : vector<16x32xi32>
    %cst_62 = arith.constant 0.000000e+00 : f32
    %212 = vector.broadcast %cst_62 : f32 to vector<16x32xf32>
    %213 = arith.select %211, %209, %212 : vector<16x32xi1>, vector<16x32xf32>
    %214 = vector.extract_strided_slice %160 {offsets = [5, 0], sizes = [1, 32], strides = [1, 1]} : vector<15x32xf32> to vector<1x32xf32>
    %215 = vector.broadcast %214 : vector<1x32xf32> to vector<16x32xf32>
    %216 = arith.mulf %213, %215 : vector<16x32xf32>
    %217 = arith.addf %208, %216 : vector<16x32xf32>
    %c1_i32 = arith.constant 1 : i32
    %218 = tpu.dynamic_rotate %159 by %c1_i32 dim 0 : vector<16x32xf32>, i32 -> vector<16x32xf32>
    %c1_i32_63 = arith.constant 1 : i32
    %219 = vector.broadcast %c1_i32_63 : i32 to vector<16x32xi32>
    %220 = arith.cmpi sge, %162, %219 : vector<16x32xi32>
    %cst_64 = arith.constant 0.000000e+00 : f32
    %221 = vector.broadcast %cst_64 : f32 to vector<16x32xf32>
    %222 = arith.select %220, %218, %221 : vector<16x32xi1>, vector<16x32xf32>
    %223 = vector.extract_strided_slice %160 {offsets = [6, 0], sizes = [1, 32], strides = [1, 1]} : vector<15x32xf32> to vector<1x32xf32>
    %224 = vector.broadcast %223 : vector<1x32xf32> to vector<16x32xf32>
    %225 = arith.mulf %222, %224 : vector<16x32xf32>
    %226 = arith.addf %217, %225 : vector<16x32xf32>
    %227 = vector.extract_strided_slice %160 {offsets = [7, 0], sizes = [1, 32], strides = [1, 1]} : vector<15x32xf32> to vector<1x32xf32>
    %228 = vector.broadcast %227 : vector<1x32xf32> to vector<16x32xf32>
    %229 = arith.mulf %159, %228 : vector<16x32xf32>
    %230 = arith.addf %226, %229 : vector<16x32xf32>
    %c15_i32 = arith.constant 15 : i32
    %231 = tpu.dynamic_rotate %159 by %c15_i32 dim 0 : vector<16x32xf32>, i32 -> vector<16x32xf32>
    %c15_i32_65 = arith.constant 15 : i32
    %232 = vector.broadcast %c15_i32_65 : i32 to vector<16x32xi32>
    %233 = arith.cmpi slt, %162, %232 : vector<16x32xi32>
    %cst_66 = arith.constant 0.000000e+00 : f32
    %234 = vector.broadcast %cst_66 : f32 to vector<16x32xf32>
    %235 = arith.select %233, %231, %234 : vector<16x32xi1>, vector<16x32xf32>
    %236 = vector.extract_strided_slice %160 {offsets = [8, 0], sizes = [1, 32], strides = [1, 1]} : vector<15x32xf32> to vector<1x32xf32>
    %237 = vector.broadcast %236 : vector<1x32xf32> to vector<16x32xf32>
    %238 = arith.mulf %235, %237 : vector<16x32xf32>
    %239 = arith.addf %230, %238 : vector<16x32xf32>
    %c14_i32 = arith.constant 14 : i32
    %240 = tpu.dynamic_rotate %159 by %c14_i32 dim 0 : vector<16x32xf32>, i32 -> vector<16x32xf32>
    %c14_i32_67 = arith.constant 14 : i32
    %241 = vector.broadcast %c14_i32_67 : i32 to vector<16x32xi32>
    %242 = arith.cmpi slt, %162, %241 : vector<16x32xi32>
    %cst_68 = arith.constant 0.000000e+00 : f32
    %243 = vector.broadcast %cst_68 : f32 to vector<16x32xf32>
    %244 = arith.select %242, %240, %243 : vector<16x32xi1>, vector<16x32xf32>
    %245 = vector.extract_strided_slice %160 {offsets = [9, 0], sizes = [1, 32], strides = [1, 1]} : vector<15x32xf32> to vector<1x32xf32>
    %246 = vector.broadcast %245 : vector<1x32xf32> to vector<16x32xf32>
    %247 = arith.mulf %244, %246 : vector<16x32xf32>
    %248 = arith.addf %239, %247 : vector<16x32xf32>
    %c13_i32 = arith.constant 13 : i32
    %249 = tpu.dynamic_rotate %159 by %c13_i32 dim 0 : vector<16x32xf32>, i32 -> vector<16x32xf32>
    %c13_i32_69 = arith.constant 13 : i32
    %250 = vector.broadcast %c13_i32_69 : i32 to vector<16x32xi32>
    %251 = arith.cmpi slt, %162, %250 : vector<16x32xi32>
    %cst_70 = arith.constant 0.000000e+00 : f32
    %252 = vector.broadcast %cst_70 : f32 to vector<16x32xf32>
    %253 = arith.select %251, %249, %252 : vector<16x32xi1>, vector<16x32xf32>
    %254 = vector.extract_strided_slice %160 {offsets = [10, 0], sizes = [1, 32], strides = [1, 1]} : vector<15x32xf32> to vector<1x32xf32>
    %255 = vector.broadcast %254 : vector<1x32xf32> to vector<16x32xf32>
    %256 = arith.mulf %253, %255 : vector<16x32xf32>
    %257 = arith.addf %248, %256 : vector<16x32xf32>
    %c12_i32 = arith.constant 12 : i32
    %258 = tpu.dynamic_rotate %159 by %c12_i32 dim 0 : vector<16x32xf32>, i32 -> vector<16x32xf32>
    %c12_i32_71 = arith.constant 12 : i32
    %259 = vector.broadcast %c12_i32_71 : i32 to vector<16x32xi32>
    %260 = arith.cmpi slt, %162, %259 : vector<16x32xi32>
    %cst_72 = arith.constant 0.000000e+00 : f32
    %261 = vector.broadcast %cst_72 : f32 to vector<16x32xf32>
    %262 = arith.select %260, %258, %261 : vector<16x32xi1>, vector<16x32xf32>
    %263 = vector.extract_strided_slice %160 {offsets = [11, 0], sizes = [1, 32], strides = [1, 1]} : vector<15x32xf32> to vector<1x32xf32>
    %264 = vector.broadcast %263 : vector<1x32xf32> to vector<16x32xf32>
    %265 = arith.mulf %262, %264 : vector<16x32xf32>
    %266 = arith.addf %257, %265 : vector<16x32xf32>
    %c11_i32 = arith.constant 11 : i32
    %267 = tpu.dynamic_rotate %159 by %c11_i32 dim 0 : vector<16x32xf32>, i32 -> vector<16x32xf32>
    %c11_i32_73 = arith.constant 11 : i32
    %268 = vector.broadcast %c11_i32_73 : i32 to vector<16x32xi32>
    %269 = arith.cmpi slt, %162, %268 : vector<16x32xi32>
    %cst_74 = arith.constant 0.000000e+00 : f32
    %270 = vector.broadcast %cst_74 : f32 to vector<16x32xf32>
    %271 = arith.select %269, %267, %270 : vector<16x32xi1>, vector<16x32xf32>
    %272 = vector.extract_strided_slice %160 {offsets = [12, 0], sizes = [1, 32], strides = [1, 1]} : vector<15x32xf32> to vector<1x32xf32>
    %273 = vector.broadcast %272 : vector<1x32xf32> to vector<16x32xf32>
    %274 = arith.mulf %271, %273 : vector<16x32xf32>
    %275 = arith.addf %266, %274 : vector<16x32xf32>
    %c10_i32 = arith.constant 10 : i32
    %276 = tpu.dynamic_rotate %159 by %c10_i32 dim 0 : vector<16x32xf32>, i32 -> vector<16x32xf32>
    %c10_i32_75 = arith.constant 10 : i32
    %277 = vector.broadcast %c10_i32_75 : i32 to vector<16x32xi32>
    %278 = arith.cmpi slt, %162, %277 : vector<16x32xi32>
    %cst_76 = arith.constant 0.000000e+00 : f32
    %279 = vector.broadcast %cst_76 : f32 to vector<16x32xf32>
    %280 = arith.select %278, %276, %279 : vector<16x32xi1>, vector<16x32xf32>
    %281 = vector.extract_strided_slice %160 {offsets = [13, 0], sizes = [1, 32], strides = [1, 1]} : vector<15x32xf32> to vector<1x32xf32>
    %282 = vector.broadcast %281 : vector<1x32xf32> to vector<16x32xf32>
    %283 = arith.mulf %280, %282 : vector<16x32xf32>
    %284 = arith.addf %275, %283 : vector<16x32xf32>
    %c9_i32 = arith.constant 9 : i32
    %285 = tpu.dynamic_rotate %159 by %c9_i32 dim 0 : vector<16x32xf32>, i32 -> vector<16x32xf32>
    %c9_i32_77 = arith.constant 9 : i32
    %286 = vector.broadcast %c9_i32_77 : i32 to vector<16x32xi32>
    %287 = arith.cmpi slt, %162, %286 : vector<16x32xi32>
    %cst_78 = arith.constant 0.000000e+00 : f32
    %288 = vector.broadcast %cst_78 : f32 to vector<16x32xf32>
    %289 = arith.select %287, %285, %288 : vector<16x32xi1>, vector<16x32xf32>
    %290 = vector.extract_strided_slice %160 {offsets = [14, 0], sizes = [1, 32], strides = [1, 1]} : vector<15x32xf32> to vector<1x32xf32>
    %291 = vector.broadcast %290 : vector<1x32xf32> to vector<16x32xf32>
    %292 = arith.mulf %289, %291 : vector<16x32xf32>
    %293 = arith.addf %284, %292 : vector<16x32xf32>
    %294 = vector.extract_strided_slice %0 {offsets = [9, 0], sizes = [1, 32], strides = [1, 1]} : vector<19x128xf32> to vector<1x32xf32>
    %295 = vector.broadcast %294 : vector<1x32xf32> to vector<16x32xf32>
    %296 = arith.addf %293, %295 : vector<16x32xf32>
    %297 = vector.extract_strided_slice %0 {offsets = [10, 0], sizes = [1, 32], strides = [1, 1]} : vector<19x128xf32> to vector<1x32xf32>
    %298 = vector.broadcast %297 : vector<1x32xf32> to vector<16x32xf32>
    %299 = arith.mulf %296, %298 : vector<16x32xf32>
    %300 = vector.extract_strided_slice %0 {offsets = [11, 0], sizes = [1, 32], strides = [1, 1]} : vector<19x128xf32> to vector<1x32xf32>
    %301 = vector.broadcast %300 : vector<1x32xf32> to vector<16x32xf32>
    %302 = arith.addf %299, %301 : vector<16x32xf32>
    %cst_79 = arith.constant 0.000000e+00 : f32
    %303 = vector.broadcast %cst_79 : f32 to vector<16x32xf32>
    %304 = arith.maximumf %302, %303 : vector<16x32xf32>
    %c0_80 = arith.constant 0 : index
    %c0_81 = arith.constant 0 : index
    %305 = vector.load %arg9[%c0_80, %c0_81] : memref<32x32xf32, #tpu.memory_space<vmem>>, vector<32x32xf32>
    %cst_82 = arith.constant dense<0.000000e+00> : vector<16x32xf32>
    %306 = tpu.matmul %304, %305, %cst_82 {dimension_numbers = #tpu.dot_dimension_numbers<[1], [0], [0], [1], [0, 0, 1, 1], [], []>} : vector<16x32xf32>, vector<32x32xf32>, vector<16x32xf32> -> vector<16x32xf32>
    %307 = arith.addf %124, %306 : vector<16x32xf32>
    %308 = vector.extract_strided_slice %0 {offsets = [12, 0], sizes = [1, 32], strides = [1, 1]} : vector<19x128xf32> to vector<1x32xf32>
    %309 = vector.broadcast %308 : vector<1x32xf32> to vector<16x32xf32>
    %310 = arith.addf %307, %309 : vector<16x32xf32>
    %311 = vector.extract_strided_slice %0 {offsets = [13, 0], sizes = [1, 32], strides = [1, 1]} : vector<19x128xf32> to vector<1x32xf32>
    %312 = vector.extract_strided_slice %0 {offsets = [14, 0], sizes = [1, 32], strides = [1, 1]} : vector<19x128xf32> to vector<1x32xf32>
    %c0_83 = arith.constant 0 : index
    %c0_84 = arith.constant 0 : index
    %313 = vector.load %arg10[%c0_83, %c0_84] : memref<32x64xf32, #tpu.memory_space<vmem>>, vector<32x64xf32>
    %314 = vector.extract_strided_slice %0 {offsets = [15, 0], sizes = [1, 64], strides = [1, 1]} : vector<19x128xf32> to vector<1x64xf32>
    %c0_85 = arith.constant 0 : index
    %c0_86 = arith.constant 0 : index
    %315 = vector.load %arg11[%c0_85, %c0_86] : memref<64x32xf32, #tpu.memory_space<vmem>>, vector<64x32xf32>
    %316 = vector.extract_strided_slice %0 {offsets = [16, 0], sizes = [1, 32], strides = [1, 1]} : vector<19x128xf32> to vector<1x32xf32>
    %cst_87 = arith.constant dense<0.000000e+00> : vector<16xf32>
    %317 = vector.multi_reduction <add>, %310, %cst_87 [1] : vector<16x32xf32> to vector<16xf32>
    %318 = vector.shape_cast %317 : vector<16xf32> to vector<16x1xf32>
    %cst_88 = arith.constant 3.200000e+01 : f32
    %319 = vector.broadcast %cst_88 : f32 to vector<16x1xf32>
    %320 = arith.divf %318, %319 : vector<16x1xf32>
    %321 = vector.broadcast %320 : vector<16x1xf32> to vector<16x32xf32>
    %322 = arith.subf %310, %321 : vector<16x32xf32>
    %323 = arith.mulf %322, %322 : vector<16x32xf32>
    %cst_89 = arith.constant dense<0.000000e+00> : vector<16xf32>
    %324 = vector.multi_reduction <add>, %323, %cst_89 [1] : vector<16x32xf32> to vector<16xf32>
    %325 = vector.shape_cast %324 : vector<16xf32> to vector<16x1xf32>
    %cst_90 = arith.constant 3.200000e+01 : f32
    %326 = vector.broadcast %cst_90 : f32 to vector<16x1xf32>
    %327 = arith.divf %325, %326 : vector<16x1xf32>
    %cst_91 = arith.constant 9.99999974E-6 : f32
    %328 = vector.broadcast %cst_91 : f32 to vector<16x1xf32>
    %329 = arith.addf %327, %328 : vector<16x1xf32>
    %330 = math.rsqrt %329 : vector<16x1xf32>
    %331 = vector.broadcast %330 : vector<16x1xf32> to vector<16x32xf32>
    %332 = arith.mulf %322, %331 : vector<16x32xf32>
    %333 = vector.broadcast %311 : vector<1x32xf32> to vector<16x32xf32>
    %334 = arith.mulf %332, %333 : vector<16x32xf32>
    %335 = vector.broadcast %312 : vector<1x32xf32> to vector<16x32xf32>
    %336 = arith.addf %334, %335 : vector<16x32xf32>
    %cst_92 = arith.constant dense<0.000000e+00> : vector<16x64xf32>
    %337 = tpu.matmul %336, %313, %cst_92 {dimension_numbers = #tpu.dot_dimension_numbers<[1], [0], [0], [1], [0, 0, 1, 1], [], []>} : vector<16x32xf32>, vector<32x64xf32>, vector<16x64xf32> -> vector<16x64xf32>
    %338 = vector.broadcast %314 : vector<1x64xf32> to vector<16x64xf32>
    %339 = arith.addf %337, %338 : vector<16x64xf32>
    %340 = arith.negf %339 : vector<16x64xf32>
    %341 = math.exp %340 : vector<16x64xf32>
    %cst_93 = arith.constant 1.000000e+00 : f32
    %342 = vector.broadcast %cst_93 : f32 to vector<16x64xf32>
    %343 = arith.addf %342, %341 : vector<16x64xf32>
    %344 = arith.divf %342, %343 : vector<16x64xf32>
    %345 = arith.mulf %339, %344 : vector<16x64xf32>
    %cst_94 = arith.constant dense<0.000000e+00> : vector<16x32xf32>
    %346 = tpu.matmul %345, %315, %cst_94 {dimension_numbers = #tpu.dot_dimension_numbers<[1], [0], [0], [1], [0, 0, 1, 1], [], []>} : vector<16x64xf32>, vector<64x32xf32>, vector<16x32xf32> -> vector<16x32xf32>
    %347 = vector.broadcast %316 : vector<1x32xf32> to vector<16x32xf32>
    %348 = arith.addf %346, %347 : vector<16x32xf32>
    %cst_95 = arith.constant 5.000000e-01 : f32
    %349 = vector.broadcast %cst_95 : f32 to vector<16x32xf32>
    %350 = arith.mulf %349, %348 : vector<16x32xf32>
    %351 = arith.addf %310, %350 : vector<16x32xf32>
    %352 = vector.extract_strided_slice %0 {offsets = [17, 0], sizes = [1, 32], strides = [1, 1]} : vector<19x128xf32> to vector<1x32xf32>
    %353 = vector.extract_strided_slice %0 {offsets = [18, 0], sizes = [1, 32], strides = [1, 1]} : vector<19x128xf32> to vector<1x32xf32>
    %cst_96 = arith.constant dense<0.000000e+00> : vector<16xf32>
    %354 = vector.multi_reduction <add>, %351, %cst_96 [1] : vector<16x32xf32> to vector<16xf32>
    %355 = vector.shape_cast %354 : vector<16xf32> to vector<16x1xf32>
    %cst_97 = arith.constant 3.200000e+01 : f32
    %356 = vector.broadcast %cst_97 : f32 to vector<16x1xf32>
    %357 = arith.divf %355, %356 : vector<16x1xf32>
    %358 = vector.broadcast %357 : vector<16x1xf32> to vector<16x32xf32>
    %359 = arith.subf %351, %358 : vector<16x32xf32>
    %360 = arith.mulf %359, %359 : vector<16x32xf32>
    %cst_98 = arith.constant dense<0.000000e+00> : vector<16xf32>
    %361 = vector.multi_reduction <add>, %360, %cst_98 [1] : vector<16x32xf32> to vector<16xf32>
    %362 = vector.shape_cast %361 : vector<16xf32> to vector<16x1xf32>
    %cst_99 = arith.constant 3.200000e+01 : f32
    %363 = vector.broadcast %cst_99 : f32 to vector<16x1xf32>
    %364 = arith.divf %362, %363 : vector<16x1xf32>
    %cst_100 = arith.constant 9.99999974E-6 : f32
    %365 = vector.broadcast %cst_100 : f32 to vector<16x1xf32>
    %366 = arith.addf %364, %365 : vector<16x1xf32>
    %367 = math.rsqrt %366 : vector<16x1xf32>
    %368 = vector.broadcast %367 : vector<16x1xf32> to vector<16x32xf32>
    %369 = arith.mulf %359, %368 : vector<16x32xf32>
    %370 = vector.broadcast %352 : vector<1x32xf32> to vector<16x32xf32>
    %371 = arith.mulf %369, %370 : vector<16x32xf32>
    %372 = vector.broadcast %353 : vector<1x32xf32> to vector<16x32xf32>
    %373 = arith.addf %371, %372 : vector<16x32xf32>
    %374 = vector.shape_cast %373 : vector<16x32xf32> to vector<1x16x32xf32>
    %c0_101 = arith.constant 0 : index
    %c0_102 = arith.constant 0 : index
    %c0_103 = arith.constant 0 : index
    %375 = vector.load %arg12[%c0_101, %c0_102, %c0_103] : memref<1x16x32xf32, #tpu.memory_space<vmem>>, vector<1x16x32xf32>
    tpu.vector_store %arg12[%c0_101, %c0_102, %c0_103], %374 {strides = array<i32>} : memref<1x16x32xf32, #tpu.memory_space<vmem>>, vector<1x16x32xf32>,
    return
  }
  func.func @transform_0(%arg0: i32) -> (i32, i32, i32) {
    %c0_i32 = arith.constant 0 : i32
    %c0_i32_0 = arith.constant 0 : i32
    %c0_i32_1 = arith.constant 0 : i32
    return %arg0, %c0_i32, %c0_i32_0 : i32, i32, i32
  }
  func.func @transform_1(%arg0: i32) -> (i32, i32) {
    %c0_i32 = arith.constant 0 : i32
    %c0_i32_0 = arith.constant 0 : i32
    %c0_i32_1 = arith.constant 0 : i32
    return %c0_i32, %c0_i32_0 : i32, i32
  }
  func.func @transform_2(%arg0: i32) -> (i32, i32) {
    %c0_i32 = arith.constant 0 : i32
    %c0_i32_0 = arith.constant 0 : i32
    %c0_i32_1 = arith.constant 0 : i32
    return %c0_i32, %c0_i32_0 : i32, i32
  }
  func.func @transform_3(%arg0: i32) -> (i32, i32) {
    %c0_i32 = arith.constant 0 : i32
    %c0_i32_0 = arith.constant 0 : i32
    %c0_i32_1 = arith.constant 0 : i32
    return %c0_i32, %c0_i32_0 : i32, i32
  }
  func.func @transform_4(%arg0: i32) -> (i32, i32) {
    %c0_i32 = arith.constant 0 : i32
    %c0_i32_0 = arith.constant 0 : i32
    %c0_i32_1 = arith.constant 0 : i32
    return %c0_i32, %c0_i32_0 : i32, i32
  }
  func.func @transform_5(%arg0: i32) -> (i32, i32) {
    %c0_i32 = arith.constant 0 : i32
    %c0_i32_0 = arith.constant 0 : i32
    %c0_i32_1 = arith.constant 0 : i32
    return %c0_i32, %c0_i32_0 : i32, i32
  }
  func.func @transform_6(%arg0: i32) -> (i32, i32) {
    %c0_i32 = arith.constant 0 : i32
    %c0_i32_0 = arith.constant 0 : i32
    %c0_i32_1 = arith.constant 0 : i32
    return %c0_i32, %c0_i32_0 : i32, i32
  }
  func.func @transform_7(%arg0: i32) -> (i32, i32) {
    %c0_i32 = arith.constant 0 : i32
    %c0_i32_0 = arith.constant 0 : i32
    %c0_i32_1 = arith.constant 0 : i32
    return %c0_i32, %c0_i32_0 : i32, i32
  }
  func.func @transform_8(%arg0: i32) -> (i32, i32) {
    %c0_i32 = arith.constant 0 : i32
    %c0_i32_0 = arith.constant 0 : i32
    %c0_i32_1 = arith.constant 0 : i32
    return %c0_i32, %c0_i32_0 : i32, i32
  }
  func.func @transform_9(%arg0: i32) -> (i32, i32) {
    %c0_i32 = arith.constant 0 : i32
    %c0_i32_0 = arith.constant 0 : i32
    %c0_i32_1 = arith.constant 0 : i32
    return %c0_i32, %c0_i32_0 : i32, i32
  }
  func.func @transform_10(%arg0: i32) -> (i32, i32) {
    %c0_i32 = arith.constant 0 : i32
    %c0_i32_0 = arith.constant 0 : i32
    %c0_i32_1 = arith.constant 0 : i32
    return %c0_i32, %c0_i32_0 : i32, i32
  }
  func.func @transform_11(%arg0: i32) -> (i32, i32, i32) {
    %c0_i32 = arith.constant 0 : i32
    %c0_i32_0 = arith.constant 0 : i32
    %c0_i32_1 = arith.constant 0 : i32
    return %arg0, %c0_i32, %c0_i32_0 : i32, i32, i32
  }
}

</mosaic_0001>

<llo_original>
// kernel: tpu_custom_call.1
$region0: #{tpu_custom_call.1}
  #allocation0 [shape = 'u32[]', space=smem, size = 0x4, offset = 0x4, fixed_abs, tag = 'smem constant byte address 0x4 - core index']
  #allocation1 [shape = 'u32[144,128]{1,0:T(1,128)}', space=vmem, size = 0x12000, scoped, tag = 'internal scratch']
  %s0 = inlined_call_operand.vmem [shape: f32[2,16,32], index: 0, kind: input, shape index: {}]
  %s1 = inlined_call_operand.hbm [shape: f32[19,128], index: 1, kind: input, shape index: {}]
  %s2 = inlined_call_operand.vmem [shape: f32[32,64], index: 2, kind: input, shape index: {}]
  %s3 = inlined_call_operand.vmem [shape: f32[64,32], index: 3, kind: input, shape index: {}]
  %s4 = inlined_call_operand.vmem [shape: f32[32,96], index: 4, kind: input, shape index: {}]
  %s5 = inlined_call_operand.vmem [shape: f32[32,32], index: 5, kind: input, shape index: {}]
  %s6 = inlined_call_operand.vmem [shape: f32[32,64], index: 6, kind: input, shape index: {}]
  %s7 = inlined_call_operand.hbm [shape: f32[15,32], index: 7, kind: input, shape index: {}]
  %s8 = inlined_call_operand.hbm [shape: f32[32,32], index: 8, kind: input, shape index: {}]
  %s9 = inlined_call_operand.vmem [shape: f32[32,64], index: 9, kind: input, shape index: {}]
  %s10 = inlined_call_operand.vmem [shape: f32[64,32], index: 10, kind: input, shape index: {}]
  %s11 = inlined_call_operand.hbm [shape: f32[2,16,32], index: 11, kind: output, shape index: {}]
  %s12 = sld [smem:[#allocation0]]
  $region89: #{tpu_custom_call.1} parent=0
    _
  %s14 = ssub.s32 1, %s12
  %s15 = scalar_select 0, %s14, %s12
  $region1: #{tpu_custom_call.1} parent=0
    #allocation2 [shape = 'u8[12288]{0}', space=vmem, size = 0x3000, scoped, tag = 'input window, operand 1, single buffered']
    #allocation3 [shape = 's32[2]{0}', space=sflag, size = 0x8, scoped, tag = 'scoped memory for tpu_custom_call.1']
    #allocation4 [shape = 's32[2]{0}', space=sflag, size = 0x8, scoped, tag = 'scoped memory for tpu_custom_call.1']
    #allocation5 [shape = 'u8[8192]{0}', space=vmem, size = 0x2000, scoped, tag = 'input window, operand 7, single buffered']
    #allocation6 [shape = 's32[1]{0}', space=sflag, size = 0x4, scoped, tag = 'scoped memory for tpu_custom_call.1']
    #allocation7 [shape = 'u8[16384]{0}', space=vmem, size = 0x4000, scoped, tag = 'input window, operand 8, single buffered']
    #allocation8 [shape = 'u8[16384]{0}', space=vmem, size = 0x4000, scoped, tag = 'output window, operand 0']
    %16 = vsyncpa [#allocation3], 0
    %17 = vsyncpa [#allocation6], 0
    %18 = vsyncpa [#allocation4], 0
    %s19 = scalar_lea.sflag [#allocation4], 1
    %20 = vsyncpa %s19, 0
    loop: start=0, step=1, limit=4
    $region2: #{tpu_custom_call.1} parent=1 // loop_pre_header
      _
    $region3: #{tpu_custom_call.1} parent=1 // loop_header
      %s22 = sphi 0, %s26
      %p23 = scmp.ge.s32.totalorder %s22, 4
      %s32 = sphi 0, %s34
      %s35 = sphi 0, %s32
      %s36 = sphi 0, %s35
      %s52 = sphi 0, %s36
      %s56 = sphi 0, %s56
      %s58 = sphi 0, %s56
      %s59 = sphi 0, %s58
      %s73 = sphi 0, %s59
      %s77 = sphi 0, %s77
      %s79 = sphi 0, %s77
      %s80 = sphi 0, %s79
      %s94 = sphi 0, %s80
      %s98 = sphi 0, %s98
      %s100 = sphi 0, %s98
      %s101 = sphi 0, %s100
      %s115 = sphi 0, %s101
      %s119 = sphi 0, %s119
      %s121 = sphi 0, %s119
      %s122 = sphi 0, %s121
      %s136 = sphi 0, %s122
      %s140 = sphi 0, %s140
      %s142 = sphi 0, %s140
      %s143 = sphi 0, %s142
      %s157 = sphi 0, %s143
      %s161 = sphi 0, %s161
      %s163 = sphi 0, %s161
      %s164 = sphi 0, %s163
      %s178 = sphi 0, %s164
      %s182 = sphi 0, %s182
      %s184 = sphi 0, %s182
      %s185 = sphi 0, %s184
      %s199 = sphi 0, %s185
      %s203 = sphi 0, %s203
      %s205 = sphi 0, %s203
      %s206 = sphi 0, %s205
      %s220 = sphi 0, %s206
      %s224 = sphi 0, %s224
      %s226 = sphi 0, %s224
      %s227 = sphi 0, %s226
      %s241 = sphi 0, %s227
      %s245 = sphi 0, %s245
      %s247 = sphi 0, %s245
      %s248 = sphi 0, %s247
      %s262 = sphi 0, %s248
      %s268 = sphi 0, %s270
      %s271 = sphi 0, %s268
      %s272 = sphi 0, %s271
      %s288 = sphi 0, %s272
    $region4: #{tpu_custom_call.1} parent=1 // loop_header_branch
      %25 = sbr.rel (%p23) target = $region8
    $region5: #{tpu_custom_call.1} parent=1 // loop_body
      %s27 = ssub.s32 %s22, 1
      %s28 = ssub.s32 %s22, 2
      %s29 = sadd.s32 %s22, 1
      %s30 = ssub.s32 %s22, %s29
      %p31 = scmp.eq.s32.totalorder %s30, 0
      %s33 = sadd.s32 %s32, 1
      %s34 = scalar_select %p31, %s32, %s33
      %p37 = pneg %p31
      %p38 = scmp.eq.s32.totalorder %s22, 1
      %p39 = por %p37, %p38
      %p40 = scmp.ne.s32.totalorder %s32, %s35
      %p41 = scmp.eq.s32.totalorder %s22, 0
      %p42 = por %p40, %p41
      %p43 = scmp.ne.s32.totalorder %s32, %s35
      %p44 = scmp.eq.s32.totalorder %s27, 1
      %p45 = por %p43, %p44
      %p46 = scmp.ne.s32.totalorder %s35, %s36
      %p47 = scmp.eq.s32.totalorder %s27, 0
      %p48 = por %p46, %p47
      %p49 = scmp.ne.s32.totalorder %s35, %s36
      %p50 = scmp.eq.s32.totalorder %s28, 1
      %p51 = por %p49, %p50
      %p53 = scmp.ne.s32.totalorder %s36, %s52
      %p54 = scmp.eq.s32.totalorder %s28, 0
      %p55 = por %p53, %p54
      %s57 = sadd.s32 %s56, 1
      %p60 = scmp.eq.s32.totalorder %s22, 1
      %p61 = scmp.ne.s32.totalorder %s56, %s58
      %p62 = scmp.eq.s32.totalorder %s22, 0
      %p63 = por %p61, %p62
      %p64 = scmp.ne.s32.totalorder %s56, %s58
      %p65 = scmp.eq.s32.totalorder %s27, 1
      %p66 = por %p64, %p65
      %p67 = scmp.ne.s32.totalorder %s58, %s59
      %p68 = scmp.eq.s32.totalorder %s27, 0
      %p69 = por %p67, %p68
      %p70 = scmp.ne.s32.totalorder %s58, %s59
      %p71 = scmp.eq.s32.totalorder %s28, 1
      %p72 = por %p70, %p71
      %p74 = scmp.ne.s32.totalorder %s59, %s73
      %p75 = scmp.eq.s32.totalorder %s28, 0
      %p76 = por %p74, %p75
      %s78 = sadd.s32 %s77, 1
      %p81 = scmp.eq.s32.totalorder %s22, 1
      %p82 = scmp.ne.s32.totalorder %s77, %s79
      %p83 = scmp.eq.s32.totalorder %s22, 0
      %p84 = por %p82, %p83
      %p85 = scmp.ne.s32.totalorder %s77, %s79
      %p86 = scmp.eq.s32.totalorder %s27, 1
      %p87 = por %p85, %p86
      %p88 = scmp.ne.s32.totalorder %s79, %s80
      %p89 = scmp.eq.s32.totalorder %s27, 0
      %p90 = por %p88, %p89
      %p91 = scmp.ne.s32.totalorder %s79, %s80
      %p92 = scmp.eq.s32.totalorder %s28, 1
      %p93 = por %p91, %p92
      %p95 = scmp.ne.s32.totalorder %s80, %s94
      %p96 = scmp.eq.s32.totalorder %s28, 0
      %p97 = por %p95, %p96
      %s99 = sadd.s32 %s98, 1
      %p102 = scmp.eq.s32.totalorder %s22, 1
      %p103 = scmp.ne.s32.totalorder %s98, %s100
      %p104 = scmp.eq.s32.totalorder %s22, 0
      %p105 = por %p103, %p104
      %p106 = scmp.ne.s32.totalorder %s98, %s100
      %p107 = scmp.eq.s32.totalorder %s27, 1
      %p108 = por %p106, %p107
      %p109 = scmp.ne.s32.totalorder %s100, %s101
      %p110 = scmp.eq.s32.totalorder %s27, 0
      %p111 = por %p109, %p110
      %p112 = scmp.ne.s32.totalorder %s100, %s101
      %p113 = scmp.eq.s32.totalorder %s28, 1
      %p114 = por %p112, %p113
      %p116 = scmp.ne.s32.totalorder %s101, %s115
      %p117 = scmp.eq.s32.totalorder %s28, 0
      %p118 = por %p116, %p117
      %s120 = sadd.s32 %s119, 1
      %p123 = scmp.eq.s32.totalorder %s22, 1
      %p124 = scmp.ne.s32.totalorder %s119, %s121
      %p125 = scmp.eq.s32.totalorder %s22, 0
      %p126 = por %p124, %p125
      %p127 = scmp.ne.s32.totalorder %s119, %s121
      %p128 = scmp.eq.s32.totalorder %s27, 1
      %p129 = por %p127, %p128
      %p130 = scmp.ne.s32.totalorder %s121, %s122
      %p131 = scmp.eq.s32.totalorder %s27, 0
      %p132 = por %p130, %p131
      %p133 = scmp.ne.s32.totalorder %s121, %s122
      %p134 = scmp.eq.s32.totalorder %s28, 1
      %p135 = por %p133, %p134
      %p137 = scmp.ne.s32.totalorder %s122, %s136
      %p138 = scmp.eq.s32.totalorder %s28, 0
      %p139 = por %p137, %p138
      %s141 = sadd.s32 %s140, 1
      %p144 = scmp.eq.s32.totalorder %s22, 1
      %p145 = scmp.ne.s32.totalorder %s140, %s142
      %p146 = scmp.eq.s32.totalorder %s22, 0
      %p147 = por %p145, %p146
      %p148 = scmp.ne.s32.totalorder %s140, %s142
      %p149 = scmp.eq.s32.totalorder %s27, 1
      %p150 = por %p148, %p149
      %p151 = scmp.ne.s32.totalorder %s142, %s143
      %p152 = scmp.eq.s32.totalorder %s27, 0
      %p153 = por %p151, %p152
      %p154 = scmp.ne.s32.totalorder %s142, %s143
      %p155 = scmp.eq.s32.totalorder %s28, 1
      %p156 = por %p154, %p155
      %p158 = scmp.ne.s32.totalorder %s143, %s157
      %p159 = scmp.eq.s32.totalorder %s28, 0
      %p160 = por %p158, %p159
      %s162 = sadd.s32 %s161, 1
      %p165 = scmp.eq.s32.totalorder %s22, 1
      %p166 = scmp.ne.s32.totalorder %s161, %s163
      %p167 = scmp.eq.s32.totalorder %s22, 0
      %p168 = por %p166, %p167
      %p169 = scmp.ne.s32.totalorder %s161, %s163
      %p170 = scmp.eq.s32.totalorder %s27, 1
      %p171 = por %p169, %p170
      %p172 = scmp.ne.s32.totalorder %s163, %s164
      %p173 = scmp.eq.s32.totalorder %s27, 0
      %p174 = por %p172, %p173
      %p175 = scmp.ne.s32.totalorder %s163, %s164
      %p176 = scmp.eq.s32.totalorder %s28, 1
      %p177 = por %p175, %p176
      %p179 = scmp.ne.s32.totalorder %s164, %s178
      %p180 = scmp.eq.s32.totalorder %s28, 0
      %p181 = por %p179, %p180
      %s183 = sadd.s32 %s182, 1
      %p186 = scmp.eq.s32.totalorder %s22, 1
      %p187 = scmp.ne.s32.totalorder %s182, %s184
      %p188 = scmp.eq.s32.totalorder %s22, 0
      %p189 = por %p187, %p188
      %p190 = scmp.ne.s32.totalorder %s182, %s184
      %p191 = scmp.eq.s32.totalorder %s27, 1
      %p192 = por %p190, %p191
      %p193 = scmp.ne.s32.totalorder %s184, %s185
      %p194 = scmp.eq.s32.totalorder %s27, 0
      %p195 = por %p193, %p194
      %p196 = scmp.ne.s32.totalorder %s184, %s185
      %p197 = scmp.eq.s32.totalorder %s28, 1
      %p198 = por %p196, %p197
      %p200 = scmp.ne.s32.totalorder %s185, %s199
      %p201 = scmp.eq.s32.totalorder %s28, 0
      %p202 = por %p200, %p201
      %s204 = sadd.s32 %s203, 1
      %p207 = scmp.eq.s32.totalorder %s22, 1
      %p208 = scmp.ne.s32.totalorder %s203, %s205
      %p209 = scmp.eq.s32.totalorder %s22, 0
      %p210 = por %p208, %p209
      %p211 = scmp.ne.s32.totalorder %s203, %s205
      %p212 = scmp.eq.s32.totalorder %s27, 1
      %p213 = por %p211, %p212
      %p214 = scmp.ne.s32.totalorder %s205, %s206
      %p215 = scmp.eq.s32.totalorder %s27, 0
      %p216 = por %p214, %p215
      %p217 = scmp.ne.s32.totalorder %s205, %s206
      %p218 = scmp.eq.s32.totalorder %s28, 1
      %p219 = por %p217, %p218
      %p221 = scmp.ne.s32.totalorder %s206, %s220
      %p222 = scmp.eq.s32.totalorder %s28, 0
      %p223 = por %p221, %p222
      %s225 = sadd.s32 %s224, 1
      %p228 = scmp.eq.s32.totalorder %s22, 1
      %p229 = scmp.ne.s32.totalorder %s224, %s226
      %p230 = scmp.eq.s32.totalorder %s22, 0
      %p231 = por %p229, %p230
      %p232 = scmp.ne.s32.totalorder %s224, %s226
      %p233 = scmp.eq.s32.totalorder %s27, 1
      %p234 = por %p232, %p233
      %p235 = scmp.ne.s32.totalorder %s226, %s227
      %p236 = scmp.eq.s32.totalorder %s27, 0
      %p237 = por %p235, %p236
      %p238 = scmp.ne.s32.totalorder %s226, %s227
      %p239 = scmp.eq.s32.totalorder %s28, 1
      %p240 = por %p238, %p239
      %p242 = scmp.ne.s32.totalorder %s227, %s241
      %p243 = scmp.eq.s32.totalorder %s28, 0
      %p244 = por %p242, %p243
      %s246 = sadd.s32 %s245, 1
      %p249 = scmp.eq.s32.totalorder %s22, 1
      %p250 = scmp.ne.s32.totalorder %s245, %s247
      %p251 = scmp.eq.s32.totalorder %s22, 0
      %p252 = por %p250, %p251
      %p253 = scmp.ne.s32.totalorder %s245, %s247
      %p254 = scmp.eq.s32.totalorder %s27, 1
      %p255 = por %p253, %p254
      %p256 = scmp.ne.s32.totalorder %s247, %s248
      %p257 = scmp.eq.s32.totalorder %s27, 0
      %p258 = por %p256, %p257
      %p259 = scmp.ne.s32.totalorder %s247, %s248
      %p260 = scmp.eq.s32.totalorder %s28, 1
      %p261 = por %p259, %p260
      %p263 = scmp.ne.s32.totalorder %s248, %s262
      %p264 = scmp.eq.s32.totalorder %s28, 0
      %p265 = por %p263, %p264
      %s266 = ssub.s32 %s22, %s29
      %p267 = scmp.eq.s32.totalorder %s266, 0
      %s269 = sadd.s32 %s268, 1
      %s270 = scalar_select %p267, %s268, %s269
      %p273 = pneg %p267
      %p274 = scmp.eq.s32.totalorder %s22, 1
      %p275 = por %p273, %p274
      %p276 = scmp.ne.s32.totalorder %s268, %s271
      %p277 = scmp.eq.s32.totalorder %s22, 0
      %p278 = por %p276, %p277
      %p279 = scmp.ne.s32.totalorder %s268, %s271
      %p280 = scmp.eq.s32.totalorder %s27, 1
      %p281 = por %p279, %p280
      %p282 = scmp.ne.s32.totalorder %s271, %s272
      %p283 = scmp.eq.s32.totalorder %s27, 0
      %p284 = por %p282, %p283
      %p285 = scmp.ne.s32.totalorder %s271, %s272
      %p286 = scmp.eq.s32.totalorder %s28, 1
      %p287 = por %p285, %p286
      %p289 = scmp.ne.s32.totalorder %s272, %s288
      %p290 = scmp.eq.s32.totalorder %s28, 0
      %p291 = por %p289, %p290
      %p292 = scmp.le.s32.totalorder 1, %s22
      %p293 = scmp.lt.s32.totalorder %s22, 3
      %p294 = pnand %p292, %p293
      %p295 = pneg %p294
      // Predicated region
      $region9: #{tpu_custom_call.1} parent=5 // pred_check
        _
      $region10: #{tpu_custom_call.1} parent=5 // pred_check_branch
        %297 = sbr.rel (%p294) target = $region12
      $region11: #{tpu_custom_call.1} parent=5 // pred_region
        %s298 = ssub.s32 %s22, 1
        // Predicated region
        $region13: #{tpu_custom_call.1} parent=11 // pred_check
          %p299 = pneg %p69
        $region14: #{tpu_custom_call.1} parent=11 // pred_check_branch
          %301 = sbr.rel (%p299) target = $region16
        $region15: #{tpu_custom_call.1} parent=11 // pred_region
          %s303 = ssub.s32 384, 384
          %304 = vsyncadd [#allocation3], %s303
          %s305 = sshll.u32 [#allocation2], 4
          %s306 = int_to_ptr.vmem [resolvable:$true] %s305
          %311 = dma.hbm_to_vmem [thread:$0]  %s1, 384, %s306, [#allocation3], 128, 128, 8
        $region16: #{tpu_custom_call.1} parent=11 // pred_fallthru
          _
        // Predicated region
        $region17: #{tpu_custom_call.1} parent=11 // pred_check
          %p312 = pneg %p90
        $region18: #{tpu_custom_call.1} parent=11 // pred_check_branch
          %314 = sbr.rel (%p312) target = $region20
        $region19: #{tpu_custom_call.1} parent=11 // pred_region
          _
        $region20: #{tpu_custom_call.1} parent=11 // pred_fallthru
          _
        // Predicated region
        $region21: #{tpu_custom_call.1} parent=11 // pred_check
          %p315 = pneg %p111
        $region22: #{tpu_custom_call.1} parent=11 // pred_check_branch
          %317 = sbr.rel (%p315) target = $region24
        $region23: #{tpu_custom_call.1} parent=11 // pred_region
          _
        $region24: #{tpu_custom_call.1} parent=11 // pred_fallthru
          _
        // Predicated region
        $region25: #{tpu_custom_call.1} parent=11 // pred_check
          %p318 = pneg %p132
        $region26: #{tpu_custom_call.1} parent=11 // pred_check_branch
          %320 = sbr.rel (%p318) target = $region28
        $region27: #{tpu_custom_call.1} parent=11 // pred_region
          _
        $region28: #{tpu_custom_call.1} parent=11 // pred_fallthru
          _
        // Predicated region
        $region29: #{tpu_custom_call.1} parent=11 // pred_check
          %p321 = pneg %p153
        $region30: #{tpu_custom_call.1} parent=11 // pred_check_branch
          %323 = sbr.rel (%p321) target = $region32
        $region31: #{tpu_custom_call.1} parent=11 // pred_region
          _
        $region32: #{tpu_custom_call.1} parent=11 // pred_fallthru
          _
        // Predicated region
        $region33: #{tpu_custom_call.1} parent=11 // pred_check
          %p324 = pneg %p174
        $region34: #{tpu_custom_call.1} parent=11 // pred_check_branch
          %326 = sbr.rel (%p324) target = $region36
        $region35: #{tpu_custom_call.1} parent=11 // pred_region
          _
        $region36: #{tpu_custom_call.1} parent=11 // pred_fallthru
          _
        // Predicated region
        $region37: #{tpu_custom_call.1} parent=11 // pred_check
          %p327 = pneg %p195
        $region38: #{tpu_custom_call.1} parent=11 // pred_check_branch
          %329 = sbr.rel (%p327) target = $region40
        $region39: #{tpu_custom_call.1} parent=11 // pred_region
          %s331 = ssub.s32 256, 256
          %332 = vsyncadd [#allocation6], %s331
          %s333 = sshll.u32 [#allocation5], 4
          %s334 = int_to_ptr.vmem [resolvable:$true] %s333
          %339 = dma.hbm_to_vmem [thread:$0]  %s7, 256, %s334, [#allocation6], 128, 128, 8
        $region40: #{tpu_custom_call.1} parent=11 // pred_fallthru
          _
        // Predicated region
        $region41: #{tpu_custom_call.1} parent=11 // pred_check
          %p340 = pneg %p216
        $region42: #{tpu_custom_call.1} parent=11 // pred_check_branch
          %342 = sbr.rel (%p340) target = $region44
        $region43: #{tpu_custom_call.1} parent=11 // pred_region
          %s344 = ssub.s32 512, 512
          %345 = vsyncadd [#allocation6], %s344
          %s346 = sshll.u32 [#allocation7], 4
          %s347 = int_to_ptr.vmem [resolvable:$true] %s346
          %352 = dma.hbm_to_vmem [thread:$0]  %s8, 512, %s347, [#allocation6], 128, 128, 8
        $region44: #{tpu_custom_call.1} parent=11 // pred_fallthru
          _
        // Predicated region
        $region45: #{tpu_custom_call.1} parent=11 // pred_check
          %p353 = pneg %p237
        $region46: #{tpu_custom_call.1} parent=11 // pred_check_branch
          %355 = sbr.rel (%p353) target = $region48
        $region47: #{tpu_custom_call.1} parent=11 // pred_region
          _
        $region48: #{tpu_custom_call.1} parent=11 // pred_fallthru
          _
        // Predicated region
        $region49: #{tpu_custom_call.1} parent=11 // pred_check
          %p356 = pneg %p258
        $region50: #{tpu_custom_call.1} parent=11 // pred_check_branch
          %358 = sbr.rel (%p356) target = $region52
        $region51: #{tpu_custom_call.1} parent=11 // pred_region
          _
        $region52: #{tpu_custom_call.1} parent=11 // pred_fallthru
          _
      $region12: #{tpu_custom_call.1} parent=5 // pred_fallthru
        _
      %p359 = scmp.lt.s32.totalorder %s22, 2
      // Predicated region
      $region53: #{tpu_custom_call.1} parent=5 // pred_check
        %p360 = pneg %p359
      $region54: #{tpu_custom_call.1} parent=5 // pred_check_branch
        %362 = sbr.rel (%p360) target = $region56
      $region55: #{tpu_custom_call.1} parent=5 // pred_region
        // Predicated region
        $region57: #{tpu_custom_call.1} parent=55 // pred_check
          %p363 = pneg %p42
        $region58: #{tpu_custom_call.1} parent=55 // pred_check_branch
          %365 = sbr.rel (%p363) target = $region60
        $region59: #{tpu_custom_call.1} parent=55 // pred_region
          %p366 = scmp.lt.s32.totalorder %s22, 1
          %s367 = scalar_select %p366, %s22, 1
          %s368 = smul.addr %s367, 2
          %s369 = smul.addr %s368, 8
          %s370 = scalar_lea.vmem %s0, %s369
        $region60: #{tpu_custom_call.1} parent=55 // pred_fallthru
          _
      $region56: #{tpu_custom_call.1} parent=5 // pred_fallthru
        _
      %p371 = scmp.le.s32.totalorder 1, %s22
      %p372 = scmp.lt.s32.totalorder %s22, 3
      %p373 = pnand %p371, %p372
      %p374 = pneg %p373
      // Predicated region
      $region61: #{tpu_custom_call.1} parent=5 // pred_check
        _
      $region62: #{tpu_custom_call.1} parent=5 // pred_check_branch
        %376 = sbr.rel (%p373) target = $region64
      $region63: #{tpu_custom_call.1} parent=5 // pred_region
        %s377 = ssub.s32 %s22, 1
        // Predicated region
        $region65: #{tpu_custom_call.1} parent=63 // pred_check
          %p378 = pneg %p69
        $region66: #{tpu_custom_call.1} parent=63 // pred_check_branch
          %380 = sbr.rel (%p378) target = $region68
        $region67: #{tpu_custom_call.1} parent=63 // pred_region
          %381 = dma.done [#allocation3], 384
        $region68: #{tpu_custom_call.1} parent=63 // pred_fallthru
          _
        // Predicated region
        $region69: #{tpu_custom_call.1} parent=63 // pred_check
          %p382 = pneg %p195
        $region70: #{tpu_custom_call.1} parent=63 // pred_check_branch
          %384 = sbr.rel (%p382) target = $region72
        $region71: #{tpu_custom_call.1} parent=63 // pred_region
          %385 = dma.done [#allocation6], 256
        $region72: #{tpu_custom_call.1} parent=63 // pred_fallthru
          _
        // Predicated region
        $region73: #{tpu_custom_call.1} parent=63 // pred_check
          %p386 = pneg %p216
        $region74: #{tpu_custom_call.1} parent=63 // pred_check_branch
          %388 = sbr.rel (%p386) target = $region76
        $region75: #{tpu_custom_call.1} parent=63 // pred_region
          %389 = dma.done [#allocation6], 512
        $region76: #{tpu_custom_call.1} parent=63 // pred_fallthru
          _
        %p390 = scmp.lt.s32.totalorder %s27, 1
        %s391 = scalar_select %p390, %s27, 1
        %s392 = smul.addr %s391, 2
        %s393 = smul.addr %s392, 8
        %s394 = scalar_lea.vmem %s0, %s393
        %p395 = pneg %p48
        %p396 = pneg %p45
        %p397 = pneg %p69
        %p398 = pneg %p66
        %p399 = pneg %p90
        %p400 = pneg %p87
        %p401 = pneg %p111
        %p402 = pneg %p108
        %p403 = pneg %p132
        %p404 = pneg %p129
        %p405 = pneg %p153
        %p406 = pneg %p150
        %p407 = pneg %p174
        %p408 = pneg %p171
        %p409 = pneg %p195
        %p410 = pneg %p192
        %p411 = pneg %p216
        %p412 = pneg %p213
        %p413 = pneg %p237
        %p414 = pneg %p234
        %p415 = pneg %p258
        %p416 = pneg %p255
        %p417 = pneg %p284
        %p418 = pneg %p281
        %s419 = sand.u32 %s271, 1
        %s420 = scalar_lea.sflag [#allocation4], %s419
        %s421 = sand.u32 %s271, 1
        %s422 = smul.addr %s421, 16
        %s423 = scalar_lea.vmem [#allocation8], %s422
        %p424 = scmp.lt.s32.totalorder %s27, 1
        %s425 = scalar_select %p424, %s27, 1
        %s426 = smul.addr %s425, 2
        %s427 = smul.addr %s426, 8
        %s428 = scalar_lea.vmem %s0, %s427
        %v429 = vld [vmem:[#allocation2] sm:$0xff]
        %v430 = vld [vmem:[#allocation2 + $0x8] sm:$0xff]
        %v431 = vld [vmem:[#allocation2 + $0x10] sm:$0x7]
        %v432 = vld [vmem:[%s428] sm:$0xff]
        %v433 = vld [vmem:[%s428 + $0x8] sm:$0xff]
        %v434 = vld [vmem:[%s2] sm:$0xff]
        %v435 = vld [vmem:[%s2 + $0x8] sm:$0xff]
        %v436 = vld [vmem:[%s2 + $0x10] sm:$0xff]
        %v437 = vld [vmem:[%s2 + $0x18] sm:$0xff]
        %v438 = vld [vmem:[%s3] sm:$0xff]
        %v439 = vld [vmem:[%s3 + $0x8] sm:$0xff]
        %v440 = vld [vmem:[%s3 + $0x10] sm:$0xff]
        %v441 = vld [vmem:[%s3 + $0x18] sm:$0xff]
        %v442 = vld [vmem:[%s3 + $0x20] sm:$0xff]
        %v443 = vld [vmem:[%s3 + $0x28] sm:$0xff]
        %v444 = vld [vmem:[%s3 + $0x30] sm:$0xff]
        %v445 = vld [vmem:[%s3 + $0x38] sm:$0xff]
        %vm446 = vcmask 261120
        %v447 = vsel %vm446, %v432, 0.0
        %448 = vadd.xlane.f32.xlu0 %v447
        %v449 = vpop.xlane.xlu0 %448
        %v450 = vsel %vm446, %v433, 0.0
        %451 = vadd.xlane.f32.xlu0 %v450
        %v452 = vpop.xlane.xlu0 %451
        %v453 = vrcp.pop 32.0
        %v454 = vmul.f32 %v449, %v453
        %v455 = vmul.f32 %v452, %v453
        %v456 = vsub.f32 %v432, %v454
        %v457 = vsub.f32 %v433, %v455
        %v458 = vmul.f32 %v456, %v456
        %v459 = vmul.f32 %v457, %v457
        %v460 = vsel %vm446, %v458, 0.0
        %461 = vadd.xlane.f32.xlu0 %v460
        %v462 = vpop.xlane.xlu0 %461
        %v463 = vsel %vm446, %v459, 0.0
        %464 = vadd.xlane.f32.xlu0 %v463
        %v465 = vpop.xlane.xlu0 %464
        %v466 = vmul.f32 %v462, %v453
        %v467 = vmul.f32 %v465, %v453
        %v468 = vadd.f32 %v466, 1e-05
        %v469 = vadd.f32 %v467, 1e-05
        %v470 = vrsqrt.pop %v468
        %v471 = vrsqrt.pop %v469
        %v472 = vmul.f32 %v456, %v470
        %v473 = vmul.f32 %v457, %v471
        %v474 = vlaneseq
        %v475 = vshrl.u32 %v474, 7
        %v476 = vsub.s32 0, %v475
        %v477 = vrot.slane %v429, %v476
        %v478 = vmul.f32 %v472, %v477
        %v479 = vmul.f32 %v473, %v477
        %v480 = vlaneseq
        %v481 = vshrl.u32 %v480, 7
        %v482 = vsub.s32 1, %v481
        %v483 = vrot.slane %v429, %v482
        %v484 = vadd.f32 %v478, %v483
        %v485 = vadd.f32 %v479, %v483
        %v486 = vlaneseq
        %v487 = vshrl.u32 %v486, 7
        %v488 = vsub.s32 2, %v487
        %v489 = vrot.slane %v429, %v488
        %v491 = vsel %vm446, %v484, 0
        %v494 = vsel %vm446, %v485, 0
        %496 = vmatprep.subr.mxu0 0.0
        %497 = vmatpush1.msra.mxu0 %v434
        %498 = vmatprep.subr.mxu0 0.0
        %499 = vmatpush1.msra.mxu0 %v435
        %500 = vmatprep.subr.mxu0 0.0
        %501 = vmatpush1.msra.mxu0 %v436
        %502 = vmatprep.subr.mxu0 0.0
        %503 = vmatpush1.msra.mxu0 %v437
        %504 = vmatprep.subr.mxu0 0.0
        %505 = vmatpush1.msra.mxu0 0.0
        %506 = vmatprep.subr.mxu0 0.0
        %507 = vmatpush1.msra.mxu0 0.0
        %508 = vmatprep.subr.mxu0 0.0
        %509 = vmatpush1.msra.mxu0 0.0
        %510 = vmatprep.subr.mxu0 0.0
        %511 = vmatpush1.msra.mxu0 0.0
        %512 = vmatprep.subr.mxu0 0.0
        %513 = vmatpush1.msra.mxu0 0.0
        %514 = vmatprep.subr.mxu0 0.0
        %515 = vmatpush1.msra.mxu0 0.0
        %516 = vmatprep.subr.mxu0 0.0
        %517 = vmatpush1.msra.mxu0 0.0
        %518 = vmatprep.subr.mxu0 0.0
        %519 = vmatpush1.msra.mxu0 0.0
        %520 = vmatprep.subr.mxu0 0.0
        %521 = vmatpush1.msra.mxu0 0.0
        %522 = vmatprep.subr.mxu0 0.0
        %523 = vmatpush1.msra.mxu0 0.0
        %524 = vmatprep.subr.mxu0 0.0
        %525 = vmatpush1.msra.mxu0 0.0
        %526 = vmatprep.subr.mxu0 0.0
        %527 = vmatpush1.msra.mxu0 0.0
        %528 = vmatprep.subr.mxu0 0.0
        %529 = vmatpush1.msra.mxu0 0.0
        %530 = vmatprep.subr.mxu0 0.0
        %531 = vmatpush1.msra.mxu0 0.0
        %532 = vmatprep.subr.mxu0 0.0
        %533 = vmatpush1.msra.mxu0 0.0
        %534 = vmatprep.subr.mxu0 0.0
        %535 = vmatpush1.msra.mxu0 0.0
        %536 = vmatprep.subr.mxu0 0.0
        %537 = vmatpush1.msra.mxu0 0.0
        %538 = vmatprep.subr.mxu0 0.0
        %539 = vmatpush1.msra.mxu0 0.0
        %540 = vmatprep.subr.mxu0 0.0
        %541 = vmatpush1.msra.mxu0 0.0
        %542 = vmatprep.subr.mxu0 0.0
        %543 = vmatpush1.msra.mxu0 0.0
        %544 = vmatprep.subr.mxu0 0.0
        %545 = vmatpush1.msra.mxu0 0.0
        %546 = vmatprep.subr.mxu0 0.0
        %547 = vmatpush1.msra.mxu0 0.0
        %548 = vmatprep.subr.mxu0 0.0
        %549 = vmatpush1.msra.mxu0 0.0
        %550 = vmatprep.subr.mxu0 0.0
        %551 = vmatpush1.msra.mxu0 0.0
        %552 = vmatprep.subr.mxu0 0.0
        %553 = vmatpush1.msra.mxu0 0.0
        %554 = vmatprep.subr.mxu0 0.0
        %555 = vmatpush1.msra.mxu0 0.0
        %556 = vmatprep.subr.mxu0 0.0
        %557 = vmatpush1.msra.mxu0 0.0
        %558 = vmatprep.subr.mxu0 0.0
        %559 = vmatpush1.msra.mxu0 0.0
        %560 = vmatprep.mubr.f32.mxu0 0.0
        %561 = vmatmul.mubr.f32.gmra.mrb[0].mxu0 %v491
        %v562 = vpop.f32.mrb[0].mxu0
        %v563 = vadd.f32 %v489, %v562
        %v564 = vpop.f32.mrb[0].mxu0
        %565 = vmatprep.mubr.f32.mxu0 0.0
        %566 = vmatmul.mubr.f32.gmra.mrb[0].mxu0 %v494
        %v567 = vpop.f32.mrb[0].mxu0
        %v568 = vadd.f32 %v489, %v567
        %v569 = vpop.f32.mrb[0].mxu0
        %570 = vdwg.mxu0
        %v571 = vxor.u32 %v563, 2147483648
        %v572 = vxor.u32 %v568, 2147483648
        %v573 = vmul.f32 %v571, 1.442695
        %v574 = vpow.pop %v573
        %v575 = vmul.f32 %v572, 1.442695
        %v576 = vpow.pop %v575
        %v577 = vadd.f32 %v574, 1.0
        %v578 = vadd.f32 %v576, 1.0
        %v579 = vrcp.pop %v577
        %v580 = vmul.f32 1.0, %v579
        %v581 = vrcp.pop %v578
        %v582 = vmul.f32 1.0, %v581
        %v583 = vmul.f32 %v563, %v580
        %v584 = vmul.f32 %v568, %v582
        %v585 = vlaneseq
        %v586 = vshrl.u32 %v585, 7
        %v587 = vsub.s32 3, %v586
        %v588 = vrot.slane %v429, %v587
        %vm589 = vcmask 523264
        %v591 = vsel %vm589, %v583, 0
        %v594 = vsel %vm589, %v584, 0
        %596 = vmatprep.subr.mxu0 0.0
        %597 = vmatpush1.msra.mxu0 %v438
        %598 = vmatprep.subr.mxu0 0.0
        %599 = vmatpush1.msra.mxu0 %v439
        %600 = vmatprep.subr.mxu0 0.0
        %601 = vmatpush1.msra.mxu0 %v440
        %602 = vmatprep.subr.mxu0 0.0
        %603 = vmatpush1.msra.mxu0 %v441
        %604 = vmatprep.subr.mxu0 0.0
        %605 = vmatpush1.msra.mxu0 %v442
        %606 = vmatprep.subr.mxu0 0.0
        %607 = vmatpush1.msra.mxu0 %v443
        %608 = vmatprep.subr.mxu0 0.0
        %609 = vmatpush1.msra.mxu0 %v444
        %610 = vmatprep.subr.mxu0 0.0
        %611 = vmatpush1.msra.mxu0 %v445
        %612 = vmatprep.subr.mxu0 0.0
        %613 = vmatpush1.msra.mxu0 0.0
        %614 = vmatprep.subr.mxu0 0.0
        %615 = vmatpush1.msra.mxu0 0.0
        %616 = vmatprep.subr.mxu0 0.0
        %617 = vmatpush1.msra.mxu0 0.0
        %618 = vmatprep.subr.mxu0 0.0
        %619 = vmatpush1.msra.mxu0 0.0
        %620 = vmatprep.subr.mxu0 0.0
        %621 = vmatpush1.msra.mxu0 0.0
        %622 = vmatprep.subr.mxu0 0.0
        %623 = vmatpush1.msra.mxu0 0.0
        %624 = vmatprep.subr.mxu0 0.0
        %625 = vmatpush1.msra.mxu0 0.0
        %626 = vmatprep.subr.mxu0 0.0
        %627 = vmatpush1.msra.mxu0 0.0
        %628 = vmatprep.subr.mxu0 0.0
        %629 = vmatpush1.msra.mxu0 0.0
        %630 = vmatprep.subr.mxu0 0.0
        %631 = vmatpush1.msra.mxu0 0.0
        %632 = vmatprep.subr.mxu0 0.0
        %633 = vmatpush1.msra.mxu0 0.0
        %634 = vmatprep.subr.mxu0 0.0
        %635 = vmatpush1.msra.mxu0 0.0
        %636 = vmatprep.subr.mxu0 0.0
        %637 = vmatpush1.msra.mxu0 0.0
        %638 = vmatprep.subr.mxu0 0.0
        %639 = vmatpush1.msra.mxu0 0.0
        %640 = vmatprep.subr.mxu0 0.0
        %641 = vmatpush1.msra.mxu0 0.0
        %642 = vmatprep.subr.mxu0 0.0
        %643 = vmatpush1.msra.mxu0 0.0
        %644 = vmatprep.subr.mxu0 0.0
        %645 = vmatpush1.msra.mxu0 0.0
        %646 = vmatprep.subr.mxu0 0.0
        %647 = vmatpush1.msra.mxu0 0.0
        %648 = vmatprep.subr.mxu0 0.0
        %649 = vmatpush1.msra.mxu0 0.0
        %650 = vmatprep.subr.mxu0 0.0
        %651 = vmatpush1.msra.mxu0 0.0
        %652 = vmatprep.subr.mxu0 0.0
        %653 = vmatpush1.msra.mxu0 0.0
        %654 = vmatprep.subr.mxu0 0.0
        %655 = vmatpush1.msra.mxu0 0.0
        %656 = vmatprep.subr.mxu0 0.0
        %657 = vmatpush1.msra.mxu0 0.0
        %658 = vmatprep.subr.mxu0 0.0
        %659 = vmatpush1.msra.mxu0 0.0
        %660 = vmatprep.mubr.f32.mxu0 0.0
        %661 = vmatmul.mubr.f32.gmra.mrb[0].mxu0 %v591
        %v662 = vpop.f32.mrb[0].mxu0
        %v663 = vadd.f32 %v588, %v662
        %v664 = vpop.f32.mrb[0].mxu0
        %665 = vmatprep.mubr.f32.mxu0 0.0
        %666 = vmatmul.mubr.f32.gmra.mrb[0].mxu0 %v594
        %v667 = vpop.f32.mrb[0].mxu0
        %v668 = vadd.f32 %v588, %v667
        %v669 = vpop.f32.mrb[0].mxu0
        %670 = vdwg.mxu0
        %v671 = vmul.f32 %v663, 0.5
        %v672 = vmul.f32 %v668, 0.5
        %v673 = vadd.f32 %v432, %v671
        %v674 = vadd.f32 %v433, %v672
        %v675 = vld [vmem:[%s4] sm:$0xff]
        %v676 = vld [vmem:[%s4 + $0x8] sm:$0xff]
        %v677 = vld [vmem:[%s4 + $0x10] sm:$0xff]
        %v678 = vld [vmem:[%s4 + $0x18] sm:$0xff]
        %v679 = vlaneseq
        %v680 = vshrl.u32 %v679, 7
        %v681 = vsub.s32 4, %v680
        %v682 = vrot.slane %v429, %v681
        %v684 = vsel %vm446, %v673, 0
        %v687 = vsel %vm446, %v674, 0
        %689 = vmatprep.subr.mxu0 0.0
        %690 = vmatpush1.msra.mxu0 %v675
        %691 = vmatprep.subr.mxu0 0.0
        %692 = vmatpush1.msra.mxu0 %v676
        %693 = vmatprep.subr.mxu0 0.0
        %694 = vmatpush1.msra.mxu0 %v677
        %695 = vmatprep.subr.mxu0 0.0
        %696 = vmatpush1.msra.mxu0 %v678
        %697 = vmatprep.subr.mxu0 0.0
        %698 = vmatpush1.msra.mxu0 0.0
        %699 = vmatprep.subr.mxu0 0.0
        %700 = vmatpush1.msra.mxu0 0.0
        %701 = vmatprep.subr.mxu0 0.0
        %702 = vmatpush1.msra.mxu0 0.0
        %703 = vmatprep.subr.mxu0 0.0
        %704 = vmatpush1.msra.mxu0 0.0
        %705 = vmatprep.subr.mxu0 0.0
        %706 = vmatpush1.msra.mxu0 0.0
        %707 = vmatprep.subr.mxu0 0.0
        %708 = vmatpush1.msra.mxu0 0.0
        %709 = vmatprep.subr.mxu0 0.0
        %710 = vmatpush1.msra.mxu0 0.0
        %711 = vmatprep.subr.mxu0 0.0
        %712 = vmatpush1.msra.mxu0 0.0
        %713 = vmatprep.subr.mxu0 0.0
        %714 = vmatpush1.msra.mxu0 0.0
        %715 = vmatprep.subr.mxu0 0.0
        %716 = vmatpush1.msra.mxu0 0.0
        %717 = vmatprep.subr.mxu0 0.0
        %718 = vmatpush1.msra.mxu0 0.0
        %719 = vmatprep.subr.mxu0 0.0
        %720 = vmatpush1.msra.mxu0 0.0
        %721 = vmatprep.subr.mxu0 0.0
        %722 = vmatpush1.msra.mxu0 0.0
        %723 = vmatprep.subr.mxu0 0.0
        %724 = vmatpush1.msra.mxu0 0.0
        %725 = vmatprep.subr.mxu0 0.0
        %726 = vmatpush1.msra.mxu0 0.0
        %727 = vmatprep.subr.mxu0 0.0
        %728 = vmatpush1.msra.mxu0 0.0
        %729 = vmatprep.subr.mxu0 0.0
        %730 = vmatpush1.msra.mxu0 0.0
        %731 = vmatprep.subr.mxu0 0.0
        %732 = vmatpush1.msra.mxu0 0.0
        %733 = vmatprep.subr.mxu0 0.0
        %734 = vmatpush1.msra.mxu0 0.0
        %735 = vmatprep.subr.mxu0 0.0
        %736 = vmatpush1.msra.mxu0 0.0
        %737 = vmatprep.subr.mxu0 0.0
        %738 = vmatpush1.msra.mxu0 0.0
        %739 = vmatprep.subr.mxu0 0.0
        %740 = vmatpush1.msra.mxu0 0.0
        %741 = vmatprep.subr.mxu0 0.0
        %742 = vmatpush1.msra.mxu0 0.0
        %743 = vmatprep.subr.mxu0 0.0
        %744 = vmatpush1.msra.mxu0 0.0
        %745 = vmatprep.subr.mxu0 0.0
        %746 = vmatpush1.msra.mxu0 0.0
        %747 = vmatprep.subr.mxu0 0.0
        %748 = vmatpush1.msra.mxu0 0.0
        %749 = vmatprep.subr.mxu0 0.0
        %750 = vmatpush1.msra.mxu0 0.0
        %751 = vmatprep.subr.mxu0 0.0
        %752 = vmatpush1.msra.mxu0 0.0
        %753 = vmatprep.mubr.f32.mxu0 0.0
        %754 = vmatmul.mubr.f32.gmra.mrb[0].mxu0 %v684
        %v755 = vpop.f32.mrb[0].mxu0
        %v756 = vadd.f32 %v682, %v755
        %v757 = vpop.f32.mrb[0].mxu0
        %758 = vmatprep.mubr.f32.mxu0 0.0
        %759 = vmatmul.mubr.f32.gmra.mrb[0].mxu0 %v687
        %v760 = vpop.f32.mrb[0].mxu0
        %v761 = vadd.f32 %v682, %v760
        %v762 = vpop.f32.mrb[0].mxu0
        %763 = vdwg.mxu0
        %v764 = vmul.f32 %v756, 0.35355338
        %v765 = vmul.f32 %v761, 0.35355338
        %768 = vrot.lane.b32.xlu0 %v756, 96
        %v769 = vpop.permute.xlu0 %768
        %770 = vrot.lane.b32.xlu0 %v761, 96
        %v771 = vpop.permute.xlu0 %770
        %vm772 = vcmask 64512
        %v774 = vsel %vm772, %v764, 0
        %v777 = vsel %vm772, %v765, 0
        %v779 = vsel %vm772, %v769, 0
        %v781 = vsel %vm772, %v771, 0
        %783 = vmatprep.subr.mxu0 0.0
        %784 = vmatpush1.xpose.msra.mxu0 %v779
        %785 = vmatprep.subr.mxu0 0.0
        %786 = vmatpush1.xpose.msra.mxu0 %v781
        %787 = vmatprep.subr.mxu0 0.0
        %788 = vmatpush1.xpose.msra.mxu0 0.0
        %789 = vmatprep.subr.mxu0 0.0
        %790 = vmatpush1.xpose.msra.mxu0 0.0
        %791 = vmatprep.subr.mxu0 0.0
        %792 = vmatpush1.xpose.msra.mxu0 0.0
        %793 = vmatprep.subr.mxu0 0.0
        %794 = vmatpush1.xpose.msra.mxu0 0.0
        %795 = vmatprep.subr.mxu0 0.0
        %796 = vmatpush1.xpose.msra.mxu0 0.0
        %797 = vmatprep.subr.mxu0 0.0
        %798 = vmatpush1.xpose.msra.mxu0 0.0
        %799 = vmatprep.subr.mxu0 0.0
        %800 = vmatpush1.xpose.msra.mxu0 0.0
        %801 = vmatprep.subr.mxu0 0.0
        %802 = vmatpush1.xpose.msra.mxu0 0.0
        %803 = vmatprep.subr.mxu0 0.0
        %804 = vmatpush1.xpose.msra.mxu0 0.0
        %805 = vmatprep.subr.mxu0 0.0
        %806 = vmatpush1.xpose.msra.mxu0 0.0
        %807 = vmatprep.subr.mxu0 0.0
        %808 = vmatpush1.xpose.msra.mxu0 0.0
        %809 = vmatprep.subr.mxu0 0.0
        %810 = vmatpush1.xpose.msra.mxu0 0.0
        %811 = vmatprep.subr.mxu0 0.0
        %812 = vmatpush1.xpose.msra.mxu0 0.0
        %813 = vmatprep.subr.mxu0 0.0
        %814 = vmatpush1.xpose.msra.mxu0 0.0
        %815 = vmatprep.subr.mxu0 0.0
        %816 = vmatpush1.xpose.msra.mxu0 0.0
        %817 = vmatprep.subr.mxu0 0.0
        %818 = vmatpush1.xpose.msra.mxu0 0.0
        %819 = vmatprep.subr.mxu0 0.0
        %820 = vmatpush1.xpose.msra.mxu0 0.0
        %821 = vmatprep.subr.mxu0 0.0
        %822 = vmatpush1.xpose.msra.mxu0 0.0
        %823 = vmatprep.subr.mxu0 0.0
        %824 = vmatpush1.xpose.msra.mxu0 0.0
        %825 = vmatprep.subr.mxu0 0.0
        %826 = vmatpush1.xpose.msra.mxu0 0.0
        %827 = vmatprep.subr.mxu0 0.0
        %828 = vmatpush1.xpose.msra.mxu0 0.0
        %829 = vmatprep.subr.mxu0 0.0
        %830 = vmatpush1.xpose.msra.mxu0 0.0
        %831 = vmatprep.subr.mxu0 0.0
        %832 = vmatpush1.xpose.msra.mxu0 0.0
        %833 = vmatprep.subr.mxu0 0.0
        %834 = vmatpush1.xpose.msra.mxu0 0.0
        %835 = vmatprep.subr.mxu0 0.0
        %836 = vmatpush1.xpose.msra.mxu0 0.0
        %837 = vmatprep.subr.mxu0 0.0
        %838 = vmatpush1.xpose.msra.mxu0 0.0
        %839 = vmatprep.subr.mxu0 0.0
        %840 = vmatpush1.xpose.msra.mxu0 0.0
        %841 = vmatprep.subr.mxu0 0.0
        %842 = vmatpush1.xpose.msra.mxu0 0.0
        %843 = vmatprep.subr.mxu0 0.0
        %844 = vmatpush1.xpose.msra.mxu0 0.0
        %845 = vmatprep.subr.mxu0 0.0
        %846 = vmatpush1.xpose.msra.mxu0 0.0
        %847 = vmatprep.mubr.f32.mxu0 0.0
        %848 = vmatmul.mubr.f32.gmra.mrb[0].mxu0 %v774
        %v849 = vpop.f32.mrb[0].mxu0
        %v850 = vadd.f32 0.0, %v849
        %v851 = vpop.f32.mrb[0].mxu0
        %852 = vmatprep.mubr.f32.mxu0 0.0
        %853 = vmatmul.mubr.f32.gmra.mrb[0].mxu0 %v777
        %v854 = vpop.f32.mrb[0].mxu0
        %v855 = vadd.f32 0.0, %v854
        %v856 = vpop.f32.mrb[0].mxu0
        %857 = vdwg.mxu0
        %vm858 = vcmask 130048
        %v859 = vsel %vm858, %v850, -inf
        %860 = vmax.xlane.f32.xlu0 %v859
        %v861 = vpop.xlane.xlu0 %860
        %v862 = vsel %vm858, %v855, -inf
        %863 = vmax.xlane.f32.xlu0 %v862
        %v864 = vpop.xlane.xlu0 %863
        %v865 = vsub.f32 %v850, %v861
        %v866 = vsub.f32 %v855, %v864
        %v867 = vmul.f32 %v865, 1.442695
        %v868 = vpow.pop %v867
        %v869 = vmul.f32 %v866, 1.442695
        %v870 = vpow.pop %v869
        %v871 = vsel %vm858, %v868, 0.0
        %872 = vadd.xlane.f32.xlu0 %v871
        %v873 = vpop.xlane.xlu0 %872
        %v874 = vsel %vm858, %v870, 0.0
        %875 = vadd.xlane.f32.xlu0 %v874
        %v876 = vpop.xlane.xlu0 %875
        %v877 = vrcp.pop %v873
        %v878 = vrcp.pop %v876
        %v879 = vmul.f32 %v868, %v877
        %v880 = vmul.f32 %v870, %v878
        %881 = vrot.lane.b32.xlu0 %v756, 64
        %v882 = vpop.permute.xlu0 %881
        %883 = vrot.lane.b32.xlu0 %v761, 64
        %v884 = vpop.permute.xlu0 %883
        %v888 = vsel %vm858, %v879, 0
        %v891 = vsel %vm858, %v880, 0
        %893 = vmatprep.subr.mxu0 0.0
        %894 = vmatpush1.msra.mxu0 %v882
        %895 = vmatprep.subr.mxu0 0.0
        %896 = vmatpush1.msra.mxu0 %v884
        %897 = vmatprep.subr.mxu0 0.0
        %898 = vmatpush1.msra.mxu0 0.0
        %899 = vmatprep.subr.mxu0 0.0
        %900 = vmatpush1.msra.mxu0 0.0
        %901 = vmatprep.subr.mxu0 0.0
        %902 = vmatpush1.msra.mxu0 0.0
        %903 = vmatprep.subr.mxu0 0.0
        %904 = vmatpush1.msra.mxu0 0.0
        %905 = vmatprep.subr.mxu0 0.0
        %906 = vmatpush1.msra.mxu0 0.0
        %907 = vmatprep.subr.mxu0 0.0
        %908 = vmatpush1.msra.mxu0 0.0
        %909 = vmatprep.subr.mxu0 0.0
        %910 = vmatpush1.msra.mxu0 0.0
        %911 = vmatprep.subr.mxu0 0.0
        %912 = vmatpush1.msra.mxu0 0.0
        %913 = vmatprep.subr.mxu0 0.0
        %914 = vmatpush1.msra.mxu0 0.0
        %915 = vmatprep.subr.mxu0 0.0
        %916 = vmatpush1.msra.mxu0 0.0
        %917 = vmatprep.subr.mxu0 0.0
        %918 = vmatpush1.msra.mxu0 0.0
        %919 = vmatprep.subr.mxu0 0.0
        %920 = vmatpush1.msra.mxu0 0.0
        %921 = vmatprep.subr.mxu0 0.0
        %922 = vmatpush1.msra.mxu0 0.0
        %923 = vmatprep.subr.mxu0 0.0
        %924 = vmatpush1.msra.mxu0 0.0
        %925 = vmatprep.subr.mxu0 0.0
        %926 = vmatpush1.msra.mxu0 0.0
        %927 = vmatprep.subr.mxu0 0.0
        %928 = vmatpush1.msra.mxu0 0.0
        %929 = vmatprep.subr.mxu0 0.0
        %930 = vmatpush1.msra.mxu0 0.0
        %931 = vmatprep.subr.mxu0 0.0
        %932 = vmatpush1.msra.mxu0 0.0
        %933 = vmatprep.subr.mxu0 0.0
        %934 = vmatpush1.msra.mxu0 0.0
        %935 = vmatprep.subr.mxu0 0.0
        %936 = vmatpush1.msra.mxu0 0.0
        %937 = vmatprep.subr.mxu0 0.0
        %938 = vmatpush1.msra.mxu0 0.0
        %939 = vmatprep.subr.mxu0 0.0
        %940 = vmatpush1.msra.mxu0 0.0
        %941 = vmatprep.subr.mxu0 0.0
        %942 = vmatpush1.msra.mxu0 0.0
        %943 = vmatprep.subr.mxu0 0.0
        %944 = vmatpush1.msra.mxu0 0.0
        %945 = vmatprep.subr.mxu0 0.0
        %946 = vmatpush1.msra.mxu0 0.0
        %947 = vmatprep.subr.mxu0 0.0
        %948 = vmatpush1.msra.mxu0 0.0
        %949 = vmatprep.subr.mxu0 0.0
        %950 = vmatpush1.msra.mxu0 0.0
        %951 = vmatprep.subr.mxu0 0.0
        %952 = vmatpush1.msra.mxu0 0.0
        %953 = vmatprep.subr.mxu0 0.0
        %954 = vmatpush1.msra.mxu0 0.0
        %955 = vmatprep.subr.mxu0 0.0
        %956 = vmatpush1.msra.mxu0 0.0
        %957 = vmatprep.mubr.f32.mxu0 0.0
        %958 = vmatmul.mubr.f32.gmra.mrb[0].mxu0 %v888
        %v959 = vpop.f32.mrb[0].mxu0
        %v960 = vadd.f32 0.0, %v959
        %v961 = vpop.f32.mrb[0].mxu0
        %962 = vmatprep.mubr.f32.mxu0 0.0
        %963 = vmatmul.mubr.f32.gmra.mrb[0].mxu0 %v891
        %v964 = vpop.f32.mrb[0].mxu0
        %v965 = vadd.f32 0.0, %v964
        %v966 = vpop.f32.mrb[0].mxu0
        %967 = vdwg.mxu0
        %968 = vrot.lane.b32.xlu0 %v764, 120
        %v969 = vpop.permute.xlu0 %968
        %970 = vrot.lane.b32.xlu0 %v765, 120
        %v971 = vpop.permute.xlu0 %970
        %972 = vrot.lane.b32.xlu0 %v756, 88
        %v973 = vpop.permute.xlu0 %972
        %974 = vrot.lane.b32.xlu0 %v761, 88
        %v975 = vpop.permute.xlu0 %974
        %v976 = vsel %vm772, %v969, 0
        %v978 = vsel %vm772, %v971, 0
        %v980 = vsel %vm772, %v973, 0
        %v982 = vsel %vm772, %v975, 0
        %984 = vmatprep.subr.mxu0 0.0
        %985 = vmatpush1.xpose.msra.mxu0 %v980
        %986 = vmatprep.subr.mxu0 0.0
        %987 = vmatpush1.xpose.msra.mxu0 %v982
        %988 = vmatprep.subr.mxu0 0.0
        %989 = vmatpush1.xpose.msra.mxu0 0.0
        %990 = vmatprep.subr.mxu0 0.0
        %991 = vmatpush1.xpose.msra.mxu0 0.0
        %992 = vmatprep.subr.mxu0 0.0
        %993 = vmatpush1.xpose.msra.mxu0 0.0
        %994 = vmatprep.subr.mxu0 0.0
        %995 = vmatpush1.xpose.msra.mxu0 0.0
        %996 = vmatprep.subr.mxu0 0.0
        %997 = vmatpush1.xpose.msra.mxu0 0.0
        %998 = vmatprep.subr.mxu0 0.0
        %999 = vmatpush1.xpose.msra.mxu0 0.0
        %1000 = vmatprep.subr.mxu0 0.0
        %1001 = vmatpush1.xpose.msra.mxu0 0.0
        %1002 = vmatprep.subr.mxu0 0.0
        %1003 = vmatpush1.xpose.msra.mxu0 0.0
        %1004 = vmatprep.subr.mxu0 0.0
        %1005 = vmatpush1.xpose.msra.mxu0 0.0
        %1006 = vmatprep.subr.mxu0 0.0
        %1007 = vmatpush1.xpose.msra.mxu0 0.0
        %1008 = vmatprep.subr.mxu0 0.0
        %1009 = vmatpush1.xpose.msra.mxu0 0.0
        %1010 = vmatprep.subr.mxu0 0.0
        %1011 = vmatpush1.xpose.msra.mxu0 0.0
        %1012 = vmatprep.subr.mxu0 0.0
        %1013 = vmatpush1.xpose.msra.mxu0 0.0
        %1014 = vmatprep.subr.mxu0 0.0
        %1015 = vmatpush1.xpose.msra.mxu0 0.0
        %1016 = vmatprep.subr.mxu0 0.0
        %1017 = vmatpush1.xpose.msra.mxu0 0.0
        %1018 = vmatprep.subr.mxu0 0.0
        %1019 = vmatpush1.xpose.msra.mxu0 0.0
        %1020 = vmatprep.subr.mxu0 0.0
        %1021 = vmatpush1.xpose.msra.mxu0 0.0
        %1022 = vmatprep.subr.mxu0 0.0
        %1023 = vmatpush1.xpose.msra.mxu0 0.0
        %1024 = vmatprep.subr.mxu0 0.0
        %1025 = vmatpush1.xpose.msra.mxu0 0.0
        %1026 = vmatprep.subr.mxu0 0.0
        %1027 = vmatpush1.xpose.msra.mxu0 0.0
        %1028 = vmatprep.subr.mxu0 0.0
        %1029 = vmatpush1.xpose.msra.mxu0 0.0
        %1030 = vmatprep.subr.mxu0 0.0
        %1031 = vmatpush1.xpose.msra.mxu0 0.0
        %1032 = vmatprep.subr.mxu0 0.0
        %1033 = vmatpush1.xpose.msra.mxu0 0.0
        %1034 = vmatprep.subr.mxu0 0.0
        %1035 = vmatpush1.xpose.msra.mxu0 0.0
        %1036 = vmatprep.subr.mxu0 0.0
        %1037 = vmatpush1.xpose.msra.mxu0 0.0
        %1038 = vmatprep.subr.mxu0 0.0
        %1039 = vmatpush1.xpose.msra.mxu0 0.0
        %1040 = vmatprep.subr.mxu0 0.0
        %1041 = vmatpush1.xpose.msra.mxu0 0.0
        %1042 = vmatprep.subr.mxu0 0.0
        %1043 = vmatpush1.xpose.msra.mxu0 0.0
        %1044 = vmatprep.subr.mxu0 0.0
        %1045 = vmatpush1.xpose.msra.mxu0 0.0
        %1046 = vmatprep.subr.mxu0 0.0
        %1047 = vmatpush1.xpose.msra.mxu0 0.0
        %1048 = vmatprep.mubr.f32.mxu0 0.0
        %1049 = vmatmul.mubr.f32.gmra.mrb[0].mxu0 %v976
        %v1050 = vpop.f32.mrb[0].mxu0
        %v1051 = vadd.f32 0.0, %v1050
        %v1052 = vpop.f32.mrb[0].mxu0
        %1053 = vmatprep.mubr.f32.mxu0 0.0
        %1054 = vmatmul.mubr.f32.gmra.mrb[0].mxu0 %v978
        %v1055 = vpop.f32.mrb[0].mxu0
        %v1056 = vadd.f32 0.0, %v1055
        %v1057 = vpop.f32.mrb[0].mxu0
        %1058 = vdwg.mxu0
        %v1059 = vsel %vm858, %v1051, -inf
        %1060 = vmax.xlane.f32.xlu0 %v1059
        %v1061 = vpop.xlane.xlu0 %1060
        %v1062 = vsel %vm858, %v1056, -inf
        %1063 = vmax.xlane.f32.xlu0 %v1062
        %v1064 = vpop.xlane.xlu0 %1063
        %v1065 = vsub.f32 %v1051, %v1061
        %v1066 = vsub.f32 %v1056, %v1064
        %v1067 = vmul.f32 %v1065, 1.442695
        %v1068 = vpow.pop %v1067
        %v1069 = vmul.f32 %v1066, 1.442695
        %v1070 = vpow.pop %v1069
        %v1071 = vsel %vm858, %v1068, 0.0
        %1072 = vadd.xlane.f32.xlu0 %v1071
        %v1073 = vpop.xlane.xlu0 %1072
        %v1074 = vsel %vm858, %v1070, 0.0
        %1075 = vadd.xlane.f32.xlu0 %v1074
        %v1076 = vpop.xlane.xlu0 %1075
        %v1077 = vrcp.pop %v1073
        %v1078 = vrcp.pop %v1076
        %v1079 = vmul.f32 %v1068, %v1077
        %v1080 = vmul.f32 %v1070, %v1078
        %1081 = vrot.lane.b32.xlu0 %v756, 56
        %v1082 = vpop.permute.xlu0 %1081
        %1083 = vrot.lane.b32.xlu0 %v761, 56
        %v1084 = vpop.permute.xlu0 %1083
        %v1088 = vsel %vm858, %v1079, 0
        %v1091 = vsel %vm858, %v1080, 0
        %1093 = vmatprep.subr.mxu0 0.0
        %1094 = vmatpush1.msra.mxu0 %v1082
        %1095 = vmatprep.subr.mxu0 0.0
        %1096 = vmatpush1.msra.mxu0 %v1084
        %1097 = vmatprep.subr.mxu0 0.0
        %1098 = vmatpush1.msra.mxu0 0.0
        %1099 = vmatprep.subr.mxu0 0.0
        %1100 = vmatpush1.msra.mxu0 0.0
        %1101 = vmatprep.subr.mxu0 0.0
        %1102 = vmatpush1.msra.mxu0 0.0
        %1103 = vmatprep.subr.mxu0 0.0
        %1104 = vmatpush1.msra.mxu0 0.0
        %1105 = vmatprep.subr.mxu0 0.0
        %1106 = vmatpush1.msra.mxu0 0.0
        %1107 = vmatprep.subr.mxu0 0.0
        %1108 = vmatpush1.msra.mxu0 0.0
        %1109 = vmatprep.subr.mxu0 0.0
        %1110 = vmatpush1.msra.mxu0 0.0
        %1111 = vmatprep.subr.mxu0 0.0
        %1112 = vmatpush1.msra.mxu0 0.0
        %1113 = vmatprep.subr.mxu0 0.0
        %1114 = vmatpush1.msra.mxu0 0.0
        %1115 = vmatprep.subr.mxu0 0.0
        %1116 = vmatpush1.msra.mxu0 0.0
        %1117 = vmatprep.subr.mxu0 0.0
        %1118 = vmatpush1.msra.mxu0 0.0
        %1119 = vmatprep.subr.mxu0 0.0
        %1120 = vmatpush1.msra.mxu0 0.0
        %1121 = vmatprep.subr.mxu0 0.0
        %1122 = vmatpush1.msra.mxu0 0.0
        %1123 = vmatprep.subr.mxu0 0.0
        %1124 = vmatpush1.msra.mxu0 0.0
        %1125 = vmatprep.subr.mxu0 0.0
        %1126 = vmatpush1.msra.mxu0 0.0
        %1127 = vmatprep.subr.mxu0 0.0
        %1128 = vmatpush1.msra.mxu0 0.0
        %1129 = vmatprep.subr.mxu0 0.0
        %1130 = vmatpush1.msra.mxu0 0.0
        %1131 = vmatprep.subr.mxu0 0.0
        %1132 = vmatpush1.msra.mxu0 0.0
        %1133 = vmatprep.subr.mxu0 0.0
        %1134 = vmatpush1.msra.mxu0 0.0
        %1135 = vmatprep.subr.mxu0 0.0
        %1136 = vmatpush1.msra.mxu0 0.0
        %1137 = vmatprep.subr.mxu0 0.0
        %1138 = vmatpush1.msra.mxu0 0.0
        %1139 = vmatprep.subr.mxu0 0.0
        %1140 = vmatpush1.msra.mxu0 0.0
        %1141 = vmatprep.subr.mxu0 0.0
        %1142 = vmatpush1.msra.mxu0 0.0
        %1143 = vmatprep.subr.mxu0 0.0
        %1144 = vmatpush1.msra.mxu0 0.0
        %1145 = vmatprep.subr.mxu0 0.0
        %1146 = vmatpush1.msra.mxu0 0.0
        %1147 = vmatprep.subr.mxu0 0.0
        %1148 = vmatpush1.msra.mxu0 0.0
        %1149 = vmatprep.subr.mxu0 0.0
        %1150 = vmatpush1.msra.mxu0 0.0
        %1151 = vmatprep.subr.mxu0 0.0
        %1152 = vmatpush1.msra.mxu0 0.0
        %1153 = vmatprep.subr.mxu0 0.0
        %1154 = vmatpush1.msra.mxu0 0.0
        %1155 = vmatprep.subr.mxu0 0.0
        %1156 = vmatpush1.msra.mxu0 0.0
        %1157 = vmatprep.mubr.f32.mxu0 0.0
        %1158 = vmatmul.mubr.f32.gmra.mrb[0].mxu0 %v1088
        %v1159 = vpop.f32.mrb[0].mxu0
        %v1160 = vadd.f32 0.0, %v1159
        %v1161 = vpop.f32.mrb[0].mxu0
        %1162 = vmatprep.mubr.f32.mxu0 0.0
        %1163 = vmatmul.mubr.f32.gmra.mrb[0].mxu0 %v1091
        %v1164 = vpop.f32.mrb[0].mxu0
        %v1165 = vadd.f32 0.0, %v1164
        %v1166 = vpop.f32.mrb[0].mxu0
        %1167 = vdwg.mxu0
        %1168 = vrot.lane.b32.xlu0 %v764, 112
        %v1169 = vpop.permute.xlu0 %1168
        %1170 = vrot.lane.b32.xlu0 %v765, 112
        %v1171 = vpop.permute.xlu0 %1170
        %1172 = vrot.lane.b32.xlu0 %v756, 80
        %v1173 = vpop.permute.xlu0 %1172
        %1174 = vrot.lane.b32.xlu0 %v761, 80
        %v1175 = vpop.permute.xlu0 %1174
        %v1176 = vsel %vm772, %v1169, 0
        %v1178 = vsel %vm772, %v1171, 0
        %v1180 = vsel %vm772, %v1173, 0
        %v1182 = vsel %vm772, %v1175, 0
        %1184 = vmatprep.subr.mxu0 0.0
        %1185 = vmatpush1.xpose.msra.mxu0 %v1180
        %1186 = vmatprep.subr.mxu0 0.0
        %1187 = vmatpush1.xpose.msra.mxu0 %v1182
        %1188 = vmatprep.subr.mxu0 0.0
        %1189 = vmatpush1.xpose.msra.mxu0 0.0
        %1190 = vmatprep.subr.mxu0 0.0
        %1191 = vmatpush1.xpose.msra.mxu0 0.0
        %1192 = vmatprep.subr.mxu0 0.0
        %1193 = vmatpush1.xpose.msra.mxu0 0.0
        %1194 = vmatprep.subr.mxu0 0.0
        %1195 = vmatpush1.xpose.msra.mxu0 0.0
        %1196 = vmatprep.subr.mxu0 0.0
        %1197 = vmatpush1.xpose.msra.mxu0 0.0
        %1198 = vmatprep.subr.mxu0 0.0
        %1199 = vmatpush1.xpose.msra.mxu0 0.0
        %1200 = vmatprep.subr.mxu0 0.0
        %1201 = vmatpush1.xpose.msra.mxu0 0.0
        %1202 = vmatprep.subr.mxu0 0.0
        %1203 = vmatpush1.xpose.msra.mxu0 0.0
        %1204 = vmatprep.subr.mxu0 0.0
        %1205 = vmatpush1.xpose.msra.mxu0 0.0
        %1206 = vmatprep.subr.mxu0 0.0
        %1207 = vmatpush1.xpose.msra.mxu0 0.0
        %1208 = vmatprep.subr.mxu0 0.0
        %1209 = vmatpush1.xpose.msra.mxu0 0.0
        %1210 = vmatprep.subr.mxu0 0.0
        %1211 = vmatpush1.xpose.msra.mxu0 0.0
        %1212 = vmatprep.subr.mxu0 0.0
        %1213 = vmatpush1.xpose.msra.mxu0 0.0
        %1214 = vmatprep.subr.mxu0 0.0
        %1215 = vmatpush1.xpose.msra.mxu0 0.0
        %1216 = vmatprep.subr.mxu0 0.0
        %1217 = vmatpush1.xpose.msra.mxu0 0.0
        %1218 = vmatprep.subr.mxu0 0.0
        %1219 = vmatpush1.xpose.msra.mxu0 0.0
        %1220 = vmatprep.subr.mxu0 0.0
        %1221 = vmatpush1.xpose.msra.mxu0 0.0
        %1222 = vmatprep.subr.mxu0 0.0
        %1223 = vmatpush1.xpose.msra.mxu0 0.0
        %1224 = vmatprep.subr.mxu0 0.0
        %1225 = vmatpush1.xpose.msra.mxu0 0.0
        %1226 = vmatprep.subr.mxu0 0.0
        %1227 = vmatpush1.xpose.msra.mxu0 0.0
        %1228 = vmatprep.subr.mxu0 0.0
        %1229 = vmatpush1.xpose.msra.mxu0 0.0
        %1230 = vmatprep.subr.mxu0 0.0
        %1231 = vmatpush1.xpose.msra.mxu0 0.0
        %1232 = vmatprep.subr.mxu0 0.0
        %1233 = vmatpush1.xpose.msra.mxu0 0.0
        %1234 = vmatprep.subr.mxu0 0.0
        %1235 = vmatpush1.xpose.msra.mxu0 0.0
        %1236 = vmatprep.subr.mxu0 0.0
        %1237 = vmatpush1.xpose.msra.mxu0 0.0
        %1238 = vmatprep.subr.mxu0 0.0
        %1239 = vmatpush1.xpose.msra.mxu0 0.0
        %1240 = vmatprep.subr.mxu0 0.0
        %1241 = vmatpush1.xpose.msra.mxu0 0.0
        %1242 = vmatprep.subr.mxu0 0.0
        %1243 = vmatpush1.xpose.msra.mxu0 0.0
        %1244 = vmatprep.subr.mxu0 0.0
        %1245 = vmatpush1.xpose.msra.mxu0 0.0
        %1246 = vmatprep.subr.mxu0 0.0
        %1247 = vmatpush1.xpose.msra.mxu0 0.0
        %1248 = vmatprep.mubr.f32.mxu0 0.0
        %1249 = vmatmul.mubr.f32.gmra.mrb[0].mxu0 %v1176
        %v1250 = vpop.f32.mrb[0].mxu0
        %v1251 = vadd.f32 0.0, %v1250
        %v1252 = vpop.f32.mrb[0].mxu0
        %1253 = vmatprep.mubr.f32.mxu0 0.0
        %1254 = vmatmul.mubr.f32.gmra.mrb[0].mxu0 %v1178
        %v1255 = vpop.f32.mrb[0].mxu0
        %v1256 = vadd.f32 0.0, %v1255
        %v1257 = vpop.f32.mrb[0].mxu0
        %1258 = vdwg.mxu0
        %v1259 = vsel %vm858, %v1251, -inf
        %1260 = vmax.xlane.f32.xlu0 %v1259
        %v1261 = vpop.xlane.xlu0 %1260
        %v1262 = vsel %vm858, %v1256, -inf
        %1263 = vmax.xlane.f32.xlu0 %v1262
        %v1264 = vpop.xlane.xlu0 %1263
        %v1265 = vsub.f32 %v1251, %v1261
        %v1266 = vsub.f32 %v1256, %v1264
        %v1267 = vmul.f32 %v1265, 1.442695
        %v1268 = vpow.pop %v1267
        %v1269 = vmul.f32 %v1266, 1.442695
        %v1270 = vpow.pop %v1269
        %v1271 = vsel %vm858, %v1268, 0.0
        %1272 = vadd.xlane.f32.xlu0 %v1271
        %v1273 = vpop.xlane.xlu0 %1272
        %v1274 = vsel %vm858, %v1270, 0.0
        %1275 = vadd.xlane.f32.xlu0 %v1274
        %v1276 = vpop.xlane.xlu0 %1275
        %v1277 = vrcp.pop %v1273
        %v1278 = vrcp.pop %v1276
        %v1279 = vmul.f32 %v1268, %v1277
        %v1280 = vmul.f32 %v1270, %v1278
        %1281 = vrot.lane.b32.xlu0 %v756, 48
        %v1282 = vpop.permute.xlu0 %1281
        %1283 = vrot.lane.b32.xlu0 %v761, 48
        %v1284 = vpop.permute.xlu0 %1283
        %v1288 = vsel %vm858, %v1279, 0
        %v1291 = vsel %vm858, %v1280, 0
        %1293 = vmatprep.subr.mxu0 0.0
        %1294 = vmatpush1.msra.mxu0 %v1282
        %1295 = vmatprep.subr.mxu0 0.0
        %1296 = vmatpush1.msra.mxu0 %v1284
        %1297 = vmatprep.subr.mxu0 0.0
        %1298 = vmatpush1.msra.mxu0 0.0
        %1299 = vmatprep.subr.mxu0 0.0
        %1300 = vmatpush1.msra.mxu0 0.0
        %1301 = vmatprep.subr.mxu0 0.0
        %1302 = vmatpush1.msra.mxu0 0.0
        %1303 = vmatprep.subr.mxu0 0.0
        %1304 = vmatpush1.msra.mxu0 0.0
        %1305 = vmatprep.subr.mxu0 0.0
        %1306 = vmatpush1.msra.mxu0 0.0
        %1307 = vmatprep.subr.mxu0 0.0
        %1308 = vmatpush1.msra.mxu0 0.0
        %1309 = vmatprep.subr.mxu0 0.0
        %1310 = vmatpush1.msra.mxu0 0.0
        %1311 = vmatprep.subr.mxu0 0.0
        %1312 = vmatpush1.msra.mxu0 0.0
        %1313 = vmatprep.subr.mxu0 0.0
        %1314 = vmatpush1.msra.mxu0 0.0
        %1315 = vmatprep.subr.mxu0 0.0
        %1316 = vmatpush1.msra.mxu0 0.0
        %1317 = vmatprep.subr.mxu0 0.0
        %1318 = vmatpush1.msra.mxu0 0.0
        %1319 = vmatprep.subr.mxu0 0.0
        %1320 = vmatpush1.msra.mxu0 0.0
        %1321 = vmatprep.subr.mxu0 0.0
        %1322 = vmatpush1.msra.mxu0 0.0
        %1323 = vmatprep.subr.mxu0 0.0
        %1324 = vmatpush1.msra.mxu0 0.0
        %1325 = vmatprep.subr.mxu0 0.0
        %1326 = vmatpush1.msra.mxu0 0.0
        %1327 = vmatprep.subr.mxu0 0.0
        %1328 = vmatpush1.msra.mxu0 0.0
        %1329 = vmatprep.subr.mxu0 0.0
        %1330 = vmatpush1.msra.mxu0 0.0
        %1331 = vmatprep.subr.mxu0 0.0
        %1332 = vmatpush1.msra.mxu0 0.0
        %1333 = vmatprep.subr.mxu0 0.0
        %1334 = vmatpush1.msra.mxu0 0.0
        %1335 = vmatprep.subr.mxu0 0.0
        %1336 = vmatpush1.msra.mxu0 0.0
        %1337 = vmatprep.subr.mxu0 0.0
        %1338 = vmatpush1.msra.mxu0 0.0
        %1339 = vmatprep.subr.mxu0 0.0
        %1340 = vmatpush1.msra.mxu0 0.0
        %1341 = vmatprep.subr.mxu0 0.0
        %1342 = vmatpush1.msra.mxu0 0.0
        %1343 = vmatprep.subr.mxu0 0.0
        %1344 = vmatpush1.msra.mxu0 0.0
        %1345 = vmatprep.subr.mxu0 0.0
        %1346 = vmatpush1.msra.mxu0 0.0
        %1347 = vmatprep.subr.mxu0 0.0
        %1348 = vmatpush1.msra.mxu0 0.0
        %1349 = vmatprep.subr.mxu0 0.0
        %1350 = vmatpush1.msra.mxu0 0.0
        %1351 = vmatprep.subr.mxu0 0.0
        %1352 = vmatpush1.msra.mxu0 0.0
        %1353 = vmatprep.subr.mxu0 0.0
        %1354 = vmatpush1.msra.mxu0 0.0
        %1355 = vmatprep.subr.mxu0 0.0
        %1356 = vmatpush1.msra.mxu0 0.0
        %1357 = vmatprep.mubr.f32.mxu0 0.0
        %1358 = vmatmul.mubr.f32.gmra.mrb[0].mxu0 %v1288
        %v1359 = vpop.f32.mrb[0].mxu0
        %v1360 = vadd.f32 0.0, %v1359
        %v1361 = vpop.f32.mrb[0].mxu0
        %1362 = vmatprep.mubr.f32.mxu0 0.0
        %1363 = vmatmul.mubr.f32.gmra.mrb[0].mxu0 %v1291
        %v1364 = vpop.f32.mrb[0].mxu0
        %v1365 = vadd.f32 0.0, %v1364
        %v1366 = vpop.f32.mrb[0].mxu0
        %1367 = vdwg.mxu0
        %1368 = vrot.lane.b32.xlu0 %v764, 104
        %v1369 = vpop.permute.xlu0 %1368
        %1370 = vrot.lane.b32.xlu0 %v765, 104
        %v1371 = vpop.permute.xlu0 %1370
        %1372 = vrot.lane.b32.xlu0 %v756, 72
        %v1373 = vpop.permute.xlu0 %1372
        %1374 = vrot.lane.b32.xlu0 %v761, 72
        %v1375 = vpop.permute.xlu0 %1374
        %v1376 = vsel %vm772, %v1369, 0
        %v1378 = vsel %vm772, %v1371, 0
        %v1380 = vsel %vm772, %v1373, 0
        %v1382 = vsel %vm772, %v1375, 0
        %1384 = vmatprep.subr.mxu0 0.0
        %1385 = vmatpush1.xpose.msra.mxu0 %v1380
        %1386 = vmatprep.subr.mxu0 0.0
        %1387 = vmatpush1.xpose.msra.mxu0 %v1382
        %1388 = vmatprep.subr.mxu0 0.0
        %1389 = vmatpush1.xpose.msra.mxu0 0.0
        %1390 = vmatprep.subr.mxu0 0.0
        %1391 = vmatpush1.xpose.msra.mxu0 0.0
        %1392 = vmatprep.subr.mxu0 0.0
        %1393 = vmatpush1.xpose.msra.mxu0 0.0
        %1394 = vmatprep.subr.mxu0 0.0
        %1395 = vmatpush1.xpose.msra.mxu0 0.0
        %1396 = vmatprep.subr.mxu0 0.0
        %1397 = vmatpush1.xpose.msra.mxu0 0.0
        %1398 = vmatprep.subr.mxu0 0.0
        %1399 = vmatpush1.xpose.msra.mxu0 0.0
        %1400 = vmatprep.subr.mxu0 0.0
        %1401 = vmatpush1.xpose.msra.mxu0 0.0
        %1402 = vmatprep.subr.mxu0 0.0
        %1403 = vmatpush1.xpose.msra.mxu0 0.0
        %1404 = vmatprep.subr.mxu0 0.0
        %1405 = vmatpush1.xpose.msra.mxu0 0.0
        %1406 = vmatprep.subr.mxu0 0.0
        %1407 = vmatpush1.xpose.msra.mxu0 0.0
        %1408 = vmatprep.subr.mxu0 0.0
        %1409 = vmatpush1.xpose.msra.mxu0 0.0
        %1410 = vmatprep.subr.mxu0 0.0
        %1411 = vmatpush1.xpose.msra.mxu0 0.0
        %1412 = vmatprep.subr.mxu0 0.0
        %1413 = vmatpush1.xpose.msra.mxu0 0.0
        %1414 = vmatprep.subr.mxu0 0.0
        %1415 = vmatpush1.xpose.msra.mxu0 0.0
        %1416 = vmatprep.subr.mxu0 0.0
        %1417 = vmatpush1.xpose.msra.mxu0 0.0
        %1418 = vmatprep.subr.mxu0 0.0
        %1419 = vmatpush1.xpose.msra.mxu0 0.0
        %1420 = vmatprep.subr.mxu0 0.0
        %1421 = vmatpush1.xpose.msra.mxu0 0.0
        %1422 = vmatprep.subr.mxu0 0.0
        %1423 = vmatpush1.xpose.msra.mxu0 0.0
        %1424 = vmatprep.subr.mxu0 0.0
        %1425 = vmatpush1.xpose.msra.mxu0 0.0
        %1426 = vmatprep.subr.mxu0 0.0
        %1427 = vmatpush1.xpose.msra.mxu0 0.0
        %1428 = vmatprep.subr.mxu0 0.0
        %1429 = vmatpush1.xpose.msra.mxu0 0.0
        %1430 = vmatprep.subr.mxu0 0.0
        %1431 = vmatpush1.xpose.msra.mxu0 0.0
        %1432 = vmatprep.subr.mxu0 0.0
        %1433 = vmatpush1.xpose.msra.mxu0 0.0
        %1434 = vmatprep.subr.mxu0 0.0
        %1435 = vmatpush1.xpose.msra.mxu0 0.0
        %1436 = vmatprep.subr.mxu0 0.0
        %1437 = vmatpush1.xpose.msra.mxu0 0.0
        %1438 = vmatprep.subr.mxu0 0.0
        %1439 = vmatpush1.xpose.msra.mxu0 0.0
        %1440 = vmatprep.subr.mxu0 0.0
        %1441 = vmatpush1.xpose.msra.mxu0 0.0
        %1442 = vmatprep.subr.mxu0 0.0
        %1443 = vmatpush1.xpose.msra.mxu0 0.0
        %1444 = vmatprep.subr.mxu0 0.0
        %1445 = vmatpush1.xpose.msra.mxu0 0.0
        %1446 = vmatprep.subr.mxu0 0.0
        %1447 = vmatpush1.xpose.msra.mxu0 0.0
        %1448 = vmatprep.mubr.f32.mxu0 0.0
        %1449 = vmatmul.mubr.f32.gmra.mrb[0].mxu0 %v1376
        %v1450 = vpop.f32.mrb[0].mxu0
        %v1451 = vadd.f32 0.0, %v1450
        %v1452 = vpop.f32.mrb[0].mxu0
        %1453 = vmatprep.mubr.f32.mxu0 0.0
        %1454 = vmatmul.mubr.f32.gmra.mrb[0].mxu0 %v1378
        %v1455 = vpop.f32.mrb[0].mxu0
        %v1456 = vadd.f32 0.0, %v1455
        %v1457 = vpop.f32.mrb[0].mxu0
        %1458 = vdwg.mxu0
        %v1459 = vsel %vm858, %v1451, -inf
        %1460 = vmax.xlane.f32.xlu0 %v1459
        %v1461 = vpop.xlane.xlu0 %1460
        %v1462 = vsel %vm858, %v1456, -inf
        %1463 = vmax.xlane.f32.xlu0 %v1462
        %v1464 = vpop.xlane.xlu0 %1463
        %v1465 = vsub.f32 %v1451, %v1461
        %v1466 = vsub.f32 %v1456, %v1464
        %v1467 = vmul.f32 %v1465, 1.442695
        %v1468 = vpow.pop %v1467
        %v1469 = vmul.f32 %v1466, 1.442695
        %v1470 = vpow.pop %v1469
        %v1471 = vsel %vm858, %v1468, 0.0
        %1472 = vadd.xlane.f32.xlu0 %v1471
        %v1473 = vpop.xlane.xlu0 %1472
        %v1474 = vsel %vm858, %v1470, 0.0
        %1475 = vadd.xlane.f32.xlu0 %v1474
        %v1476 = vpop.xlane.xlu0 %1475
        %v1477 = vrcp.pop %v1473
        %v1478 = vrcp.pop %v1476
        %v1479 = vmul.f32 %v1468, %v1477
        %v1480 = vmul.f32 %v1470, %v1478
        %1481 = vrot.lane.b32.xlu0 %v756, 40
        %v1482 = vpop.permute.xlu0 %1481
        %1483 = vrot.lane.b32.xlu0 %v761, 40
        %v1484 = vpop.permute.xlu0 %1483
        %v1488 = vsel %vm858, %v1479, 0
        %v1491 = vsel %vm858, %v1480, 0
        %1493 = vmatprep.subr.mxu0 0.0
        %1494 = vmatpush1.msra.mxu0 %v1482
        %1495 = vmatprep.subr.mxu0 0.0
        %1496 = vmatpush1.msra.mxu0 %v1484
        %1497 = vmatprep.subr.mxu0 0.0
        %1498 = vmatpush1.msra.mxu0 0.0
        %1499 = vmatprep.subr.mxu0 0.0
        %1500 = vmatpush1.msra.mxu0 0.0
        %1501 = vmatprep.subr.mxu0 0.0
        %1502 = vmatpush1.msra.mxu0 0.0
        %1503 = vmatprep.subr.mxu0 0.0
        %1504 = vmatpush1.msra.mxu0 0.0
        %1505 = vmatprep.subr.mxu0 0.0
        %1506 = vmatpush1.msra.mxu0 0.0
        %1507 = vmatprep.subr.mxu0 0.0
        %1508 = vmatpush1.msra.mxu0 0.0
        %1509 = vmatprep.subr.mxu0 0.0
        %1510 = vmatpush1.msra.mxu0 0.0
        %1511 = vmatprep.subr.mxu0 0.0
        %1512 = vmatpush1.msra.mxu0 0.0
        %1513 = vmatprep.subr.mxu0 0.0
        %1514 = vmatpush1.msra.mxu0 0.0
        %1515 = vmatprep.subr.mxu0 0.0
        %1516 = vmatpush1.msra.mxu0 0.0
        %1517 = vmatprep.subr.mxu0 0.0
        %1518 = vmatpush1.msra.mxu0 0.0
        %1519 = vmatprep.subr.mxu0 0.0
        %1520 = vmatpush1.msra.mxu0 0.0
        %1521 = vmatprep.subr.mxu0 0.0
        %1522 = vmatpush1.msra.mxu0 0.0
        %1523 = vmatprep.subr.mxu0 0.0
        %1524 = vmatpush1.msra.mxu0 0.0
        %1525 = vmatprep.subr.mxu0 0.0
        %1526 = vmatpush1.msra.mxu0 0.0
        %1527 = vmatprep.subr.mxu0 0.0
        %1528 = vmatpush1.msra.mxu0 0.0
        %1529 = vmatprep.subr.mxu0 0.0
        %1530 = vmatpush1.msra.mxu0 0.0
        %1531 = vmatprep.subr.mxu0 0.0
        %1532 = vmatpush1.msra.mxu0 0.0
        %1533 = vmatprep.subr.mxu0 0.0
        %1534 = vmatpush1.msra.mxu0 0.0
        %1535 = vmatprep.subr.mxu0 0.0
        %1536 = vmatpush1.msra.mxu0 0.0
        %1537 = vmatprep.subr.mxu0 0.0
        %1538 = vmatpush1.msra.mxu0 0.0
        %1539 = vmatprep.subr.mxu0 0.0
        %1540 = vmatpush1.msra.mxu0 0.0
        %1541 = vmatprep.subr.mxu0 0.0
        %1542 = vmatpush1.msra.mxu0 0.0
        %1543 = vmatprep.subr.mxu0 0.0
        %1544 = vmatpush1.msra.mxu0 0.0
        %1545 = vmatprep.subr.mxu0 0.0
        %1546 = vmatpush1.msra.mxu0 0.0
        %1547 = vmatprep.subr.mxu0 0.0
        %1548 = vmatpush1.msra.mxu0 0.0
        %1549 = vmatprep.subr.mxu0 0.0
        %1550 = vmatpush1.msra.mxu0 0.0
        %1551 = vmatprep.subr.mxu0 0.0
        %1552 = vmatpush1.msra.mxu0 0.0
        %1553 = vmatprep.subr.mxu0 0.0
        %1554 = vmatpush1.msra.mxu0 0.0
        %1555 = vmatprep.subr.mxu0 0.0
        %1556 = vmatpush1.msra.mxu0 0.0
        %1557 = vmatprep.mubr.f32.mxu0 0.0
        %1558 = vmatmul.mubr.f32.gmra.mrb[0].mxu0 %v1488
        %v1559 = vpop.f32.mrb[0].mxu0
        %v1560 = vadd.f32 0.0, %v1559
        %v1561 = vpop.f32.mrb[0].mxu0
        %1562 = vmatprep.mubr.f32.mxu0 0.0
        %1563 = vmatmul.mubr.f32.gmra.mrb[0].mxu0 %v1491
        %v1564 = vpop.f32.mrb[0].mxu0
        %v1565 = vadd.f32 0.0, %v1564
        %v1566 = vpop.f32.mrb[0].mxu0
        %1567 = vdwg.mxu0
        %1570 = vrot.lane.b32.xlu0 %v1160, 8
        %v1571 = vpop.permute.xlu0 %1570
        %1572 = vrot.lane.b32.xlu0 %v1165, 8
        %v1573 = vpop.permute.xlu0 %1572
        %1578 = vrot.lane.b32.xlu0 %v1360, 16
        %v1579 = vpop.permute.xlu0 %1578
        %1580 = vrot.lane.b32.xlu0 %v1365, 16
        %v1581 = vpop.permute.xlu0 %1580
        %1586 = vrot.lane.b32.xlu0 %v1560, 24
        %v1587 = vpop.permute.xlu0 %1586
        %1588 = vrot.lane.b32.xlu0 %v1565, 24
        %v1589 = vpop.permute.xlu0 %1588
        %v1592 = vsel %vm772, %v960, %v1571
        %v1593 = vsel %vm772, %v965, %v1573
        %v1594 = vsel %vm858, %v1592, %v1579
        %v1595 = vsel %vm858, %v1593, %v1581
        %vm1596 = vcmask 195584
        %v1597 = vsel %vm1596, %v1594, %v1587
        %v1598 = vsel %vm1596, %v1595, %v1589
        %v1599 = vld [vmem:[%s5] sm:$0xff]
        %v1600 = vld [vmem:[%s5 + $0x8] sm:$0xff]
        %v1601 = vld [vmem:[%s5 + $0x10] sm:$0xff]
        %v1602 = vld [vmem:[%s5 + $0x18] sm:$0xff]
        %v1604 = vsel %vm446, %v1597, 0
        %v1607 = vsel %vm446, %v1598, 0
        %1609 = vmatprep.subr.mxu0 0.0
        %1610 = vmatpush1.msra.mxu0 %v1599
        %1611 = vmatprep.subr.mxu0 0.0
        %1612 = vmatpush1.msra.mxu0 %v1600
        %1613 = vmatprep.subr.mxu0 0.0
        %1614 = vmatpush1.msra.mxu0 %v1601
        %1615 = vmatprep.subr.mxu0 0.0
        %1616 = vmatpush1.msra.mxu0 %v1602
        %1617 = vmatprep.subr.mxu0 0.0
        %1618 = vmatpush1.msra.mxu0 0.0
        %1619 = vmatprep.subr.mxu0 0.0
        %1620 = vmatpush1.msra.mxu0 0.0
        %1621 = vmatprep.subr.mxu0 0.0
        %1622 = vmatpush1.msra.mxu0 0.0
        %1623 = vmatprep.subr.mxu0 0.0
        %1624 = vmatpush1.msra.mxu0 0.0
        %1625 = vmatprep.subr.mxu0 0.0
        %1626 = vmatpush1.msra.mxu0 0.0
        %1627 = vmatprep.subr.mxu0 0.0
        %1628 = vmatpush1.msra.mxu0 0.0
        %1629 = vmatprep.subr.mxu0 0.0
        %1630 = vmatpush1.msra.mxu0 0.0
        %1631 = vmatprep.subr.mxu0 0.0
        %1632 = vmatpush1.msra.mxu0 0.0
        %1633 = vmatprep.subr.mxu0 0.0
        %1634 = vmatpush1.msra.mxu0 0.0
        %1635 = vmatprep.subr.mxu0 0.0
        %1636 = vmatpush1.msra.mxu0 0.0
        %1637 = vmatprep.subr.mxu0 0.0
        %1638 = vmatpush1.msra.mxu0 0.0
        %1639 = vmatprep.subr.mxu0 0.0
        %1640 = vmatpush1.msra.mxu0 0.0
        %1641 = vmatprep.subr.mxu0 0.0
        %1642 = vmatpush1.msra.mxu0 0.0
        %1643 = vmatprep.subr.mxu0 0.0
        %1644 = vmatpush1.msra.mxu0 0.0
        %1645 = vmatprep.subr.mxu0 0.0
        %1646 = vmatpush1.msra.mxu0 0.0
        %1647 = vmatprep.subr.mxu0 0.0
        %1648 = vmatpush1.msra.mxu0 0.0
        %1649 = vmatprep.subr.mxu0 0.0
        %1650 = vmatpush1.msra.mxu0 0.0
        %1651 = vmatprep.subr.mxu0 0.0
        %1652 = vmatpush1.msra.mxu0 0.0
        %1653 = vmatprep.subr.mxu0 0.0
        %1654 = vmatpush1.msra.mxu0 0.0
        %1655 = vmatprep.subr.mxu0 0.0
        %1656 = vmatpush1.msra.mxu0 0.0
        %1657 = vmatprep.subr.mxu0 0.0
        %1658 = vmatpush1.msra.mxu0 0.0
        %1659 = vmatprep.subr.mxu0 0.0
        %1660 = vmatpush1.msra.mxu0 0.0
        %1661 = vmatprep.subr.mxu0 0.0
        %1662 = vmatpush1.msra.mxu0 0.0
        %1663 = vmatprep.subr.mxu0 0.0
        %1664 = vmatpush1.msra.mxu0 0.0
        %1665 = vmatprep.subr.mxu0 0.0
        %1666 = vmatpush1.msra.mxu0 0.0
        %1667 = vmatprep.subr.mxu0 0.0
        %1668 = vmatpush1.msra.mxu0 0.0
        %1669 = vmatprep.subr.mxu0 0.0
        %1670 = vmatpush1.msra.mxu0 0.0
        %1671 = vmatprep.subr.mxu0 0.0
        %1672 = vmatpush1.msra.mxu0 0.0
        %1673 = vmatprep.mubr.f32.mxu0 0.0
        %1674 = vmatmul.mubr.f32.gmra.mrb[0].mxu0 %v1604
        %v1675 = vpop.f32.mrb[0].mxu0
        %v1676 = vadd.f32 0.0, %v1675
        %v1677 = vpop.f32.mrb[0].mxu0
        %1678 = vmatprep.mubr.f32.mxu0 0.0
        %1679 = vmatmul.mubr.f32.gmra.mrb[0].mxu0 %v1607
        %v1680 = vpop.f32.mrb[0].mxu0
        %v1681 = vadd.f32 0.0, %v1680
        %v1682 = vpop.f32.mrb[0].mxu0
        %1683 = vdwg.mxu0
        %v1684 = vadd.f32 %v673, %v1676
        %v1685 = vadd.f32 %v674, %v1681
        %v1686 = vlaneseq
        %v1687 = vshrl.u32 %v1686, 7
        %v1688 = vsub.s32 5, %v1687
        %v1689 = vrot.slane %v429, %v1688
        %v1690 = vadd.f32 %v1684, %v1689
        %v1691 = vadd.f32 %v1685, %v1689
        %v1692 = vsel %vm446, %v1690, 0.0
        %1693 = vadd.xlane.f32.xlu0 %v1692
        %v1694 = vpop.xlane.xlu0 %1693
        %v1695 = vsel %vm446, %v1691, 0.0
        %1696 = vadd.xlane.f32.xlu0 %v1695
        %v1697 = vpop.xlane.xlu0 %1696
        %v1698 = vmul.f32 %v1694, %v453
        %v1699 = vmul.f32 %v1697, %v453
        %v1700 = vsub.f32 %v1690, %v1698
        %v1701 = vsub.f32 %v1691, %v1699
        %v1702 = vmul.f32 %v1700, %v1700
        %v1703 = vmul.f32 %v1701, %v1701
        %v1704 = vsel %vm446, %v1702, 0.0
        %1705 = vadd.xlane.f32.xlu0 %v1704
        %v1706 = vpop.xlane.xlu0 %1705
        %v1707 = vsel %vm446, %v1703, 0.0
        %1708 = vadd.xlane.f32.xlu0 %v1707
        %v1709 = vpop.xlane.xlu0 %1708
        %v1710 = vmul.f32 %v1706, %v453
        %v1711 = vmul.f32 %v1709, %v453
        %v1712 = vadd.f32 %v1710, 1e-05
        %v1713 = vadd.f32 %v1711, 1e-05
        %v1714 = vrsqrt.pop %v1712
        %v1715 = vrsqrt.pop %v1713
        %v1716 = vmul.f32 %v1700, %v1714
        %v1717 = vmul.f32 %v1701, %v1715
        %v1718 = vlaneseq
        %v1719 = vshrl.u32 %v1718, 7
        %v1720 = vsub.s32 6, %v1719
        %v1721 = vrot.slane %v429, %v1720
        %v1722 = vmul.f32 %v1716, %v1721
        %v1723 = vmul.f32 %v1717, %v1721
        %v1724 = vlaneseq
        %v1725 = vshrl.u32 %v1724, 7
        %v1726 = vsub.s32 7, %v1725
        %v1727 = vrot.slane %v429, %v1726
        %v1728 = vadd.f32 %v1722, %v1727
        %v1729 = vadd.f32 %v1723, %v1727
        %v1730 = vld [vmem:[%s6] sm:$0xff]
        %v1731 = vld [vmem:[%s6 + $0x8] sm:$0xff]
        %v1732 = vld [vmem:[%s6 + $0x10] sm:$0xff]
        %v1733 = vld [vmem:[%s6 + $0x18] sm:$0xff]
        %v1734 = vlaneseq
        %v1735 = vshrl.u32 %v1734, 7
        %v1736 = vsub.s32 0, %v1735
        %v1737 = vrot.slane %v430, %v1736
        %v1739 = vsel %vm446, %v1728, 0
        %v1742 = vsel %vm446, %v1729, 0
        %1744 = vmatprep.subr.mxu0 0.0
        %1745 = vmatpush1.msra.mxu0 %v1730
        %1746 = vmatprep.subr.mxu0 0.0
        %1747 = vmatpush1.msra.mxu0 %v1731
        %1748 = vmatprep.subr.mxu0 0.0
        %1749 = vmatpush1.msra.mxu0 %v1732
        %1750 = vmatprep.subr.mxu0 0.0
        %1751 = vmatpush1.msra.mxu0 %v1733
        %1752 = vmatprep.subr.mxu0 0.0
        %1753 = vmatpush1.msra.mxu0 0.0
        %1754 = vmatprep.subr.mxu0 0.0
        %1755 = vmatpush1.msra.mxu0 0.0
        %1756 = vmatprep.subr.mxu0 0.0
        %1757 = vmatpush1.msra.mxu0 0.0
        %1758 = vmatprep.subr.mxu0 0.0
        %1759 = vmatpush1.msra.mxu0 0.0
        %1760 = vmatprep.subr.mxu0 0.0
        %1761 = vmatpush1.msra.mxu0 0.0
        %1762 = vmatprep.subr.mxu0 0.0
        %1763 = vmatpush1.msra.mxu0 0.0
        %1764 = vmatprep.subr.mxu0 0.0
        %1765 = vmatpush1.msra.mxu0 0.0
        %1766 = vmatprep.subr.mxu0 0.0
        %1767 = vmatpush1.msra.mxu0 0.0
        %1768 = vmatprep.subr.mxu0 0.0
        %1769 = vmatpush1.msra.mxu0 0.0
        %1770 = vmatprep.subr.mxu0 0.0
        %1771 = vmatpush1.msra.mxu0 0.0
        %1772 = vmatprep.subr.mxu0 0.0
        %1773 = vmatpush1.msra.mxu0 0.0
        %1774 = vmatprep.subr.mxu0 0.0
        %1775 = vmatpush1.msra.mxu0 0.0
        %1776 = vmatprep.subr.mxu0 0.0
        %1777 = vmatpush1.msra.mxu0 0.0
        %1778 = vmatprep.subr.mxu0 0.0
        %1779 = vmatpush1.msra.mxu0 0.0
        %1780 = vmatprep.subr.mxu0 0.0
        %1781 = vmatpush1.msra.mxu0 0.0
        %1782 = vmatprep.subr.mxu0 0.0
        %1783 = vmatpush1.msra.mxu0 0.0
        %1784 = vmatprep.subr.mxu0 0.0
        %1785 = vmatpush1.msra.mxu0 0.0
        %1786 = vmatprep.subr.mxu0 0.0
        %1787 = vmatpush1.msra.mxu0 0.0
        %1788 = vmatprep.subr.mxu0 0.0
        %1789 = vmatpush1.msra.mxu0 0.0
        %1790 = vmatprep.subr.mxu0 0.0
        %1791 = vmatpush1.msra.mxu0 0.0
        %1792 = vmatprep.subr.mxu0 0.0
        %1793 = vmatpush1.msra.mxu0 0.0
        %1794 = vmatprep.subr.mxu0 0.0
        %1795 = vmatpush1.msra.mxu0 0.0
        %1796 = vmatprep.subr.mxu0 0.0
        %1797 = vmatpush1.msra.mxu0 0.0
        %1798 = vmatprep.subr.mxu0 0.0
        %1799 = vmatpush1.msra.mxu0 0.0
        %1800 = vmatprep.subr.mxu0 0.0
        %1801 = vmatpush1.msra.mxu0 0.0
        %1802 = vmatprep.subr.mxu0 0.0
        %1803 = vmatpush1.msra.mxu0 0.0
        %1804 = vmatprep.subr.mxu0 0.0
        %1805 = vmatpush1.msra.mxu0 0.0
        %1806 = vmatprep.subr.mxu0 0.0
        %1807 = vmatpush1.msra.mxu0 0.0
        %1808 = vmatprep.mubr.f32.mxu0 0.0
        %1809 = vmatmul.mubr.f32.gmra.mrb[0].mxu0 %v1739
        %v1810 = vpop.f32.mrb[0].mxu0
        %v1811 = vadd.f32 %v1737, %v1810
        %v1812 = vpop.f32.mrb[0].mxu0
        %1813 = vmatprep.mubr.f32.mxu0 0.0
        %1814 = vmatmul.mubr.f32.gmra.mrb[0].mxu0 %v1742
        %v1815 = vpop.f32.mrb[0].mxu0
        %v1816 = vadd.f32 %v1737, %v1815
        %v1817 = vpop.f32.mrb[0].mxu0
        %1818 = vdwg.mxu0
        %v1819 = vxor.u32 %v1811, 2147483648
        %v1820 = vxor.u32 %v1816, 2147483648
        %v1821 = vmul.f32 %v1819, 1.442695
        %v1822 = vpow.pop %v1821
        %v1823 = vmul.f32 %v1820, 1.442695
        %v1824 = vpow.pop %v1823
        %v1825 = vadd.f32 %v1822, 1.0
        %v1826 = vadd.f32 %v1824, 1.0
        %v1827 = vrcp.pop %v1825
        %v1828 = vmul.f32 1.0, %v1827
        %v1829 = vrcp.pop %v1826
        %v1830 = vmul.f32 1.0, %v1829
        %1833 = vrot.lane.b32.xlu0 %v1828, 96
        %v1834 = vpop.permute.xlu0 %1833
        %1835 = vrot.lane.b32.xlu0 %v1830, 96
        %v1836 = vpop.permute.xlu0 %1835
        %v1839 = vmul.f32 %v1811, %v1834
        %v1840 = vmul.f32 %v1816, %v1836
        %v1841 = vld [vmem:[#allocation5] sm:$0xff]
        %v1842 = vld [vmem:[#allocation5 + $0x8] sm:$0x7f]
        %v1843 = vlaneseq
        %v1844 = vshrl.u32 %v1843, 7
        %v1845 = vadd.s32 %v1844, 8
        %v1846 = vrot.slane %v1839, 1
        %v1847 = vrot.slane %v1840, 1
        %vm1848 = vcmp.lt.s32.totalorder %v1844, 7
        %v1849 = vsel %vm1848, %v1846, %v1847
        %v1850 = vsel %vm1848, %v1847, %v1846
        %vm1851 = vcmp.ge.s32.totalorder %v1844, 7
        %vm1852 = vcmp.ge.s32.totalorder %v1845, 7
        %v1853 = vsel %vm1851, %v1850, 0.0
        %v1854 = vsel %vm1852, %v1849, 0.0
        %v1855 = vlaneseq
        %v1856 = vshrl.u32 %v1855, 7
        %v1857 = vsub.s32 0, %v1856
        %v1858 = vrot.slane %v1841, %v1857
        %v1859 = vmul.f32 %v1853, %v1858
        %v1860 = vmul.f32 %v1854, %v1858
        %v1861 = vadd.f32 %v1859, 0.0
        %v1862 = vadd.f32 %v1860, 0.0
        %v1863 = vrot.slane %v1839, 2
        %v1864 = vrot.slane %v1840, 2
        %vm1865 = vcmp.lt.s32.totalorder %v1844, 6
        %v1866 = vsel %vm1865, %v1863, %v1864
        %v1867 = vsel %vm1865, %v1864, %v1863
        %vm1868 = vcmp.ge.s32.totalorder %v1844, 6
        %vm1869 = vcmp.ge.s32.totalorder %v1845, 6
        %v1870 = vsel %vm1868, %v1867, 0.0
        %v1871 = vsel %vm1869, %v1866, 0.0
        %v1872 = vlaneseq
        %v1873 = vshrl.u32 %v1872, 7
        %v1874 = vsub.s32 1, %v1873
        %v1875 = vrot.slane %v1841, %v1874
        %v1876 = vmul.f32 %v1870, %v1875
        %v1877 = vmul.f32 %v1871, %v1875
        %v1878 = vadd.f32 %v1861, %v1876
        %v1879 = vadd.f32 %v1862, %v1877
        %v1880 = vrot.slane %v1839, 3
        %v1881 = vrot.slane %v1840, 3
        %vm1882 = vcmp.lt.s32.totalorder %v1844, 5
        %v1883 = vsel %vm1882, %v1880, %v1881
        %v1884 = vsel %vm1882, %v1881, %v1880
        %vm1885 = vcmp.ge.s32.totalorder %v1844, 5
        %vm1886 = vcmp.ge.s32.totalorder %v1845, 5
        %v1887 = vsel %vm1885, %v1884, 0.0
        %v1888 = vsel %vm1886, %v1883, 0.0
        %v1889 = vlaneseq
        %v1890 = vshrl.u32 %v1889, 7
        %v1891 = vsub.s32 2, %v1890
        %v1892 = vrot.slane %v1841, %v1891
        %v1893 = vmul.f32 %v1887, %v1892
        %v1894 = vmul.f32 %v1888, %v1892
        %v1895 = vadd.f32 %v1878, %v1893
        %v1896 = vadd.f32 %v1879, %v1894
        %v1897 = vrot.slane %v1839, 4
        %v1898 = vrot.slane %v1840, 4
        %vm1899 = vcmp.lt.s32.totalorder %v1844, 4
        %v1900 = vsel %vm1899, %v1897, %v1898
        %v1901 = vsel %vm1899, %v1898, %v1897
        %vm1902 = vcmp.ge.s32.totalorder %v1844, 4
        %vm1903 = vcmp.ge.s32.totalorder %v1845, 4
        %v1904 = vsel %vm1902, %v1901, 0.0
        %v1905 = vsel %vm1903, %v1900, 0.0
        %v1906 = vlaneseq
        %v1907 = vshrl.u32 %v1906, 7
        %v1908 = vsub.s32 3, %v1907
        %v1909 = vrot.slane %v1841, %v1908
        %v1910 = vmul.f32 %v1904, %v1909
        %v1911 = vmul.f32 %v1905, %v1909
        %v1912 = vadd.f32 %v1895, %v1910
        %v1913 = vadd.f32 %v1896, %v1911
        %v1914 = vrot.slane %v1839, 5
        %v1915 = vrot.slane %v1840, 5
        %vm1916 = vcmp.lt.s32.totalorder %v1844, 3
        %v1917 = vsel %vm1916, %v1914, %v1915
        %v1918 = vsel %vm1916, %v1915, %v1914
        %vm1919 = vcmp.ge.s32.totalorder %v1844, 3
        %vm1920 = vcmp.ge.s32.totalorder %v1845, 3
        %v1921 = vsel %vm1919, %v1918, 0.0
        %v1922 = vsel %vm1920, %v1917, 0.0
        %v1923 = vlaneseq
        %v1924 = vshrl.u32 %v1923, 7
        %v1925 = vsub.s32 4, %v1924
        %v1926 = vrot.slane %v1841, %v1925
        %v1927 = vmul.f32 %v1921, %v1926
        %v1928 = vmul.f32 %v1922, %v1926
        %v1929 = vadd.f32 %v1912, %v1927
        %v1930 = vadd.f32 %v1913, %v1928
        %v1931 = vrot.slane %v1839, 6
        %v1932 = vrot.slane %v1840, 6
        %vm1933 = vcmp.lt.s32.totalorder %v1844, 2
        %v1934 = vsel %vm1933, %v1931, %v1932
        %v1935 = vsel %vm1933, %v1932, %v1931
        %vm1936 = vcmp.ge.s32.totalorder %v1844, 2
        %vm1937 = vcmp.ge.s32.totalorder %v1845, 2
        %v1938 = vsel %vm1936, %v1935, 0.0
        %v1939 = vsel %vm1937, %v1934, 0.0
        %v1940 = vlaneseq
        %v1941 = vshrl.u32 %v1940, 7
        %v1942 = vsub.s32 5, %v1941
        %v1943 = vrot.slane %v1841, %v1942
        %v1944 = vmul.f32 %v1938, %v1943
        %v1945 = vmul.f32 %v1939, %v1943
        %v1946 = vadd.f32 %v1929, %v1944
        %v1947 = vadd.f32 %v1930, %v1945
        %v1948 = vrot.slane %v1839, 7
        %v1949 = vrot.slane %v1840, 7
        %vm1950 = vcmp.lt.s32.totalorder %v1844, 1
        %v1951 = vsel %vm1950, %v1948, %v1949
        %v1952 = vsel %vm1950, %v1949, %v1948
        %vm1953 = vcmp.ge.s32.totalorder %v1844, 1
        %vm1954 = vcmp.ge.s32.totalorder %v1845, 1
        %v1955 = vsel %vm1953, %v1952, 0.0
        %v1956 = vsel %vm1954, %v1951, 0.0
        %v1957 = vlaneseq
        %v1958 = vshrl.u32 %v1957, 7
        %v1959 = vsub.s32 6, %v1958
        %v1960 = vrot.slane %v1841, %v1959
        %v1961 = vmul.f32 %v1955, %v1960
        %v1962 = vmul.f32 %v1956, %v1960
        %v1963 = vadd.f32 %v1946, %v1961
        %v1964 = vadd.f32 %v1947, %v1962
        %v1965 = vlaneseq
        %v1966 = vshrl.u32 %v1965, 7
        %v1967 = vsub.s32 7, %v1966
        %v1968 = vrot.slane %v1841, %v1967
        %v1969 = vmul.f32 %v1839, %v1968
        %v1970 = vmul.f32 %v1840, %v1968
        %v1971 = vadd.f32 %v1963, %v1969
        %v1972 = vadd.f32 %v1964, %v1970
        %vm1973 = vcmp.lt.s32.totalorder %v1844, 15
        %vm1974 = vcmp.lt.s32.totalorder %v1845, 15
        %v1975 = vsel %vm1973, %v1849, 0.0
        %v1976 = vsel %vm1974, %v1850, 0.0
        %v1977 = vlaneseq
        %v1978 = vshrl.u32 %v1977, 7
        %v1979 = vsub.s32 0, %v1978
        %v1980 = vrot.slane %v1842, %v1979
        %v1981 = vmul.f32 %v1975, %v1980
        %v1982 = vmul.f32 %v1976, %v1980
        %v1983 = vadd.f32 %v1971, %v1981
        %v1984 = vadd.f32 %v1972, %v1982
        %vm1985 = vcmp.lt.s32.totalorder %v1844, 14
        %vm1986 = vcmp.lt.s32.totalorder %v1845, 14
        %v1987 = vsel %vm1985, %v1866, 0.0
        %v1988 = vsel %vm1986, %v1867, 0.0
        %v1989 = vlaneseq
        %v1990 = vshrl.u32 %v1989, 7
        %v1991 = vsub.s32 1, %v1990
        %v1992 = vrot.slane %v1842, %v1991
        %v1993 = vmul.f32 %v1987, %v1992
        %v1994 = vmul.f32 %v1988, %v1992
        %v1995 = vadd.f32 %v1983, %v1993
        %v1996 = vadd.f32 %v1984, %v1994
        %vm1997 = vcmp.lt.s32.totalorder %v1844, 13
        %vm1998 = vcmp.lt.s32.totalorder %v1845, 13
        %v1999 = vsel %vm1997, %v1883, 0.0
        %v2000 = vsel %vm1998, %v1884, 0.0
        %v2001 = vlaneseq
        %v2002 = vshrl.u32 %v2001, 7
        %v2003 = vsub.s32 2, %v2002
        %v2004 = vrot.slane %v1842, %v2003
        %v2005 = vmul.f32 %v1999, %v2004
        %v2006 = vmul.f32 %v2000, %v2004
        %v2007 = vadd.f32 %v1995, %v2005
        %v2008 = vadd.f32 %v1996, %v2006
        %vm2009 = vcmp.lt.s32.totalorder %v1844, 12
        %vm2010 = vcmp.lt.s32.totalorder %v1845, 12
        %v2011 = vsel %vm2009, %v1900, 0.0
        %v2012 = vsel %vm2010, %v1901, 0.0
        %v2013 = vlaneseq
        %v2014 = vshrl.u32 %v2013, 7
        %v2015 = vsub.s32 3, %v2014
        %v2016 = vrot.slane %v1842, %v2015
        %v2017 = vmul.f32 %v2011, %v2016
        %v2018 = vmul.f32 %v2012, %v2016
        %v2019 = vadd.f32 %v2007, %v2017
        %v2020 = vadd.f32 %v2008, %v2018
        %vm2021 = vcmp.lt.s32.totalorder %v1844, 11
        %vm2022 = vcmp.lt.s32.totalorder %v1845, 11
        %v2023 = vsel %vm2021, %v1917, 0.0
        %v2024 = vsel %vm2022, %v1918, 0.0
        %v2025 = vlaneseq
        %v2026 = vshrl.u32 %v2025, 7
        %v2027 = vsub.s32 4, %v2026
        %v2028 = vrot.slane %v1842, %v2027
        %v2029 = vmul.f32 %v2023, %v2028
        %v2030 = vmul.f32 %v2024, %v2028
        %v2031 = vadd.f32 %v2019, %v2029
        %v2032 = vadd.f32 %v2020, %v2030
        %vm2033 = vcmp.lt.s32.totalorder %v1844, 10
        %vm2034 = vcmp.lt.s32.totalorder %v1845, 10
        %v2035 = vsel %vm2033, %v1934, 0.0
        %v2036 = vsel %vm2034, %v1935, 0.0
        %v2037 = vlaneseq
        %v2038 = vshrl.u32 %v2037, 7
        %v2039 = vsub.s32 5, %v2038
        %v2040 = vrot.slane %v1842, %v2039
        %v2041 = vmul.f32 %v2035, %v2040
        %v2042 = vmul.f32 %v2036, %v2040
        %v2043 = vadd.f32 %v2031, %v2041
        %v2044 = vadd.f32 %v2032, %v2042
        %vm2045 = vcmp.lt.s32.totalorder %v1844, 9
        %vm2046 = vcmp.lt.s32.totalorder %v1845, 9
        %v2047 = vsel %vm2045, %v1951, 0.0
        %v2048 = vsel %vm2046, %v1952, 0.0
        %v2049 = vlaneseq
        %v2050 = vshrl.u32 %v2049, 7
        %v2051 = vsub.s32 6, %v2050
        %v2052 = vrot.slane %v1842, %v2051
        %v2053 = vmul.f32 %v2047, %v2052
        %v2054 = vmul.f32 %v2048, %v2052
        %v2055 = vadd.f32 %v2043, %v2053
        %v2056 = vadd.f32 %v2044, %v2054
        %v2057 = vlaneseq
        %v2058 = vshrl.u32 %v2057, 7
        %v2059 = vsub.s32 1, %v2058
        %v2060 = vrot.slane %v430, %v2059
        %v2061 = vadd.f32 %v2055, %v2060
        %v2062 = vadd.f32 %v2056, %v2060
        %v2063 = vlaneseq
        %v2064 = vshrl.u32 %v2063, 7
        %v2065 = vsub.s32 2, %v2064
        %v2066 = vrot.slane %v430, %v2065
        %v2067 = vmul.f32 %v2061, %v2066
        %v2068 = vmul.f32 %v2062, %v2066
        %v2069 = vlaneseq
        %v2070 = vshrl.u32 %v2069, 7
        %v2071 = vsub.s32 3, %v2070
        %v2072 = vrot.slane %v430, %v2071
        %v2073 = vadd.f32 %v2067, %v2072
        %v2074 = vadd.f32 %v2068, %v2072
        %v2075 = vmax.f32 %v2073, 0.0
        %v2076 = vmax.f32 %v2074, 0.0
        %v2077 = vld [vmem:[#allocation7] sm:$0xff]
        %v2078 = vld [vmem:[#allocation7 + $0x8] sm:$0xff]
        %v2079 = vld [vmem:[#allocation7 + $0x10] sm:$0xff]
        %v2080 = vld [vmem:[#allocation7 + $0x18] sm:$0xff]
        %v2082 = vsel %vm446, %v2075, 0
        %v2085 = vsel %vm446, %v2076, 0
        %2087 = vmatprep.subr.mxu0 0.0
        %2088 = vmatpush1.msra.mxu0 %v2077
        %2089 = vmatprep.subr.mxu0 0.0
        %2090 = vmatpush1.msra.mxu0 %v2078
        %2091 = vmatprep.subr.mxu0 0.0
        %2092 = vmatpush1.msra.mxu0 %v2079
        %2093 = vmatprep.subr.mxu0 0.0
        %2094 = vmatpush1.msra.mxu0 %v2080
        %2095 = vmatprep.subr.mxu0 0.0
        %2096 = vmatpush1.msra.mxu0 0.0
        %2097 = vmatprep.subr.mxu0 0.0
        %2098 = vmatpush1.msra.mxu0 0.0
        %2099 = vmatprep.subr.mxu0 0.0
        %2100 = vmatpush1.msra.mxu0 0.0
        %2101 = vmatprep.subr.mxu0 0.0
        %2102 = vmatpush1.msra.mxu0 0.0
        %2103 = vmatprep.subr.mxu0 0.0
        %2104 = vmatpush1.msra.mxu0 0.0
        %2105 = vmatprep.subr.mxu0 0.0
        %2106 = vmatpush1.msra.mxu0 0.0
        %2107 = vmatprep.subr.mxu0 0.0
        %2108 = vmatpush1.msra.mxu0 0.0
        %2109 = vmatprep.subr.mxu0 0.0
        %2110 = vmatpush1.msra.mxu0 0.0
        %2111 = vmatprep.subr.mxu0 0.0
        %2112 = vmatpush1.msra.mxu0 0.0
        %2113 = vmatprep.subr.mxu0 0.0
        %2114 = vmatpush1.msra.mxu0 0.0
        %2115 = vmatprep.subr.mxu0 0.0
        %2116 = vmatpush1.msra.mxu0 0.0
        %2117 = vmatprep.subr.mxu0 0.0
        %2118 = vmatpush1.msra.mxu0 0.0
        %2119 = vmatprep.subr.mxu0 0.0
        %2120 = vmatpush1.msra.mxu0 0.0
        %2121 = vmatprep.subr.mxu0 0.0
        %2122 = vmatpush1.msra.mxu0 0.0
        %2123 = vmatprep.subr.mxu0 0.0
        %2124 = vmatpush1.msra.mxu0 0.0
        %2125 = vmatprep.subr.mxu0 0.0
        %2126 = vmatpush1.msra.mxu0 0.0
        %2127 = vmatprep.subr.mxu0 0.0
        %2128 = vmatpush1.msra.mxu0 0.0
        %2129 = vmatprep.subr.mxu0 0.0
        %2130 = vmatpush1.msra.mxu0 0.0
        %2131 = vmatprep.subr.mxu0 0.0
        %2132 = vmatpush1.msra.mxu0 0.0
        %2133 = vmatprep.subr.mxu0 0.0
        %2134 = vmatpush1.msra.mxu0 0.0
        %2135 = vmatprep.subr.mxu0 0.0
        %2136 = vmatpush1.msra.mxu0 0.0
        %2137 = vmatprep.subr.mxu0 0.0
        %2138 = vmatpush1.msra.mxu0 0.0
        %2139 = vmatprep.subr.mxu0 0.0
        %2140 = vmatpush1.msra.mxu0 0.0
        %2141 = vmatprep.subr.mxu0 0.0
        %2142 = vmatpush1.msra.mxu0 0.0
        %2143 = vmatprep.subr.mxu0 0.0
        %2144 = vmatpush1.msra.mxu0 0.0
        %2145 = vmatprep.subr.mxu0 0.0
        %2146 = vmatpush1.msra.mxu0 0.0
        %2147 = vmatprep.subr.mxu0 0.0
        %2148 = vmatpush1.msra.mxu0 0.0
        %2149 = vmatprep.subr.mxu0 0.0
        %2150 = vmatpush1.msra.mxu0 0.0
        %2151 = vmatprep.mubr.f32.mxu0 0.0
        %2152 = vmatmul.mubr.f32.gmra.mrb[0].mxu0 %v2082
        %v2153 = vpop.f32.mrb[0].mxu0
        %v2154 = vadd.f32 0.0, %v2153
        %v2155 = vpop.f32.mrb[0].mxu0
        %2156 = vmatprep.mubr.f32.mxu0 0.0
        %2157 = vmatmul.mubr.f32.gmra.mrb[0].mxu0 %v2085
        %v2158 = vpop.f32.mrb[0].mxu0
        %v2159 = vadd.f32 0.0, %v2158
        %v2160 = vpop.f32.mrb[0].mxu0
        %2161 = vdwg.mxu0
        %v2162 = vadd.f32 %v1690, %v2154
        %v2163 = vadd.f32 %v1691, %v2159
        %v2164 = vlaneseq
        %v2165 = vshrl.u32 %v2164, 7
        %v2166 = vsub.s32 4, %v2165
        %v2167 = vrot.slane %v430, %v2166
        %v2168 = vadd.f32 %v2162, %v2167
        %v2169 = vadd.f32 %v2163, %v2167
        %v2170 = vld [vmem:[%s9] sm:$0xff]
        %v2171 = vld [vmem:[%s9 + $0x8] sm:$0xff]
        %v2172 = vld [vmem:[%s9 + $0x10] sm:$0xff]
        %v2173 = vld [vmem:[%s9 + $0x18] sm:$0xff]
        %v2174 = vld [vmem:[%s10] sm:$0xff]
        %v2175 = vld [vmem:[%s10 + $0x8] sm:$0xff]
        %v2176 = vld [vmem:[%s10 + $0x10] sm:$0xff]
        %v2177 = vld [vmem:[%s10 + $0x18] sm:$0xff]
        %v2178 = vld [vmem:[%s10 + $0x20] sm:$0xff]
        %v2179 = vld [vmem:[%s10 + $0x28] sm:$0xff]
        %v2180 = vld [vmem:[%s10 + $0x30] sm:$0xff]
        %v2181 = vld [vmem:[%s10 + $0x38] sm:$0xff]
        %v2182 = vsel %vm446, %v2168, 0.0
        %2183 = vadd.xlane.f32.xlu0 %v2182
        %v2184 = vpop.xlane.xlu0 %2183
        %v2185 = vsel %vm446, %v2169, 0.0
        %2186 = vadd.xlane.f32.xlu0 %v2185
        %v2187 = vpop.xlane.xlu0 %2186
        %v2188 = vmul.f32 %v2184, %v453
        %v2189 = vmul.f32 %v2187, %v453
        %v2190 = vsub.f32 %v2168, %v2188
        %v2191 = vsub.f32 %v2169, %v2189
        %v2192 = vmul.f32 %v2190, %v2190
        %v2193 = vmul.f32 %v2191, %v2191
        %v2194 = vsel %vm446, %v2192, 0.0
        %2195 = vadd.xlane.f32.xlu0 %v2194
        %v2196 = vpop.xlane.xlu0 %2195
        %v2197 = vsel %vm446, %v2193, 0.0
        %2198 = vadd.xlane.f32.xlu0 %v2197
        %v2199 = vpop.xlane.xlu0 %2198
        %v2200 = vmul.f32 %v2196, %v453
        %v2201 = vmul.f32 %v2199, %v453
        %v2202 = vadd.f32 %v2200, 1e-05
        %v2203 = vadd.f32 %v2201, 1e-05
        %v2204 = vrsqrt.pop %v2202
        %v2205 = vrsqrt.pop %v2203
        %v2206 = vmul.f32 %v2190, %v2204
        %v2207 = vmul.f32 %v2191, %v2205
        %v2208 = vlaneseq
        %v2209 = vshrl.u32 %v2208, 7
        %v2210 = vsub.s32 5, %v2209
        %v2211 = vrot.slane %v430, %v2210
        %v2212 = vmul.f32 %v2206, %v2211
        %v2213 = vmul.f32 %v2207, %v2211
        %v2214 = vlaneseq
        %v2215 = vshrl.u32 %v2214, 7
        %v2216 = vsub.s32 6, %v2215
        %v2217 = vrot.slane %v430, %v2216
        %v2218 = vadd.f32 %v2212, %v2217
        %v2219 = vadd.f32 %v2213, %v2217
        %v2220 = vlaneseq
        %v2221 = vshrl.u32 %v2220, 7
        %v2222 = vsub.s32 7, %v2221
        %v2223 = vrot.slane %v430, %v2222
        %v2225 = vsel %vm446, %v2218, 0
        %v2228 = vsel %vm446, %v2219, 0
        %2230 = vmatprep.subr.mxu0 0.0
        %2231 = vmatpush1.msra.mxu0 %v2170
        %2232 = vmatprep.subr.mxu0 0.0
        %2233 = vmatpush1.msra.mxu0 %v2171
        %2234 = vmatprep.subr.mxu0 0.0
        %2235 = vmatpush1.msra.mxu0 %v2172
        %2236 = vmatprep.subr.mxu0 0.0
        %2237 = vmatpush1.msra.mxu0 %v2173
        %2238 = vmatprep.subr.mxu0 0.0
        %2239 = vmatpush1.msra.mxu0 0.0
        %2240 = vmatprep.subr.mxu0 0.0
        %2241 = vmatpush1.msra.mxu0 0.0
        %2242 = vmatprep.subr.mxu0 0.0
        %2243 = vmatpush1.msra.mxu0 0.0
        %2244 = vmatprep.subr.mxu0 0.0
        %2245 = vmatpush1.msra.mxu0 0.0
        %2246 = vmatprep.subr.mxu0 0.0
        %2247 = vmatpush1.msra.mxu0 0.0
        %2248 = vmatprep.subr.mxu0 0.0
        %2249 = vmatpush1.msra.mxu0 0.0
        %2250 = vmatprep.subr.mxu0 0.0
        %2251 = vmatpush1.msra.mxu0 0.0
        %2252 = vmatprep.subr.mxu0 0.0
        %2253 = vmatpush1.msra.mxu0 0.0
        %2254 = vmatprep.subr.mxu0 0.0
        %2255 = vmatpush1.msra.mxu0 0.0
        %2256 = vmatprep.subr.mxu0 0.0
        %2257 = vmatpush1.msra.mxu0 0.0
        %2258 = vmatprep.subr.mxu0 0.0
        %2259 = vmatpush1.msra.mxu0 0.0
        %2260 = vmatprep.subr.mxu0 0.0
        %2261 = vmatpush1.msra.mxu0 0.0
        %2262 = vmatprep.subr.mxu0 0.0
        %2263 = vmatpush1.msra.mxu0 0.0
        %2264 = vmatprep.subr.mxu0 0.0
        %2265 = vmatpush1.msra.mxu0 0.0
        %2266 = vmatprep.subr.mxu0 0.0
        %2267 = vmatpush1.msra.mxu0 0.0
        %2268 = vmatprep.subr.mxu0 0.0
        %2269 = vmatpush1.msra.mxu0 0.0
        %2270 = vmatprep.subr.mxu0 0.0
        %2271 = vmatpush1.msra.mxu0 0.0
        %2272 = vmatprep.subr.mxu0 0.0
        %2273 = vmatpush1.msra.mxu0 0.0
        %2274 = vmatprep.subr.mxu0 0.0
        %2275 = vmatpush1.msra.mxu0 0.0
        %2276 = vmatprep.subr.mxu0 0.0
        %2277 = vmatpush1.msra.mxu0 0.0
        %2278 = vmatprep.subr.mxu0 0.0
        %2279 = vmatpush1.msra.mxu0 0.0
        %2280 = vmatprep.subr.mxu0 0.0
        %2281 = vmatpush1.msra.mxu0 0.0
        %2282 = vmatprep.subr.mxu0 0.0
        %2283 = vmatpush1.msra.mxu0 0.0
        %2284 = vmatprep.subr.mxu0 0.0
        %2285 = vmatpush1.msra.mxu0 0.0
        %2286 = vmatprep.subr.mxu0 0.0
        %2287 = vmatpush1.msra.mxu0 0.0
        %2288 = vmatprep.subr.mxu0 0.0
        %2289 = vmatpush1.msra.mxu0 0.0
        %2290 = vmatprep.subr.mxu0 0.0
        %2291 = vmatpush1.msra.mxu0 0.0
        %2292 = vmatprep.subr.mxu0 0.0
        %2293 = vmatpush1.msra.mxu0 0.0
        %2294 = vmatprep.mubr.f32.mxu0 0.0
        %2295 = vmatmul.mubr.f32.gmra.mrb[0].mxu0 %v2225
        %v2296 = vpop.f32.mrb[0].mxu0
        %v2297 = vadd.f32 %v2223, %v2296
        %v2298 = vpop.f32.mrb[0].mxu0
        %2299 = vmatprep.mubr.f32.mxu0 0.0
        %2300 = vmatmul.mubr.f32.gmra.mrb[0].mxu0 %v2228
        %v2301 = vpop.f32.mrb[0].mxu0
        %v2302 = vadd.f32 %v2223, %v2301
        %v2303 = vpop.f32.mrb[0].mxu0
        %2304 = vdwg.mxu0
        %v2305 = vxor.u32 %v2297, 2147483648
        %v2306 = vxor.u32 %v2302, 2147483648
        %v2307 = vmul.f32 %v2305, 1.442695
        %v2308 = vpow.pop %v2307
        %v2309 = vmul.f32 %v2306, 1.442695
        %v2310 = vpow.pop %v2309
        %v2311 = vadd.f32 %v2308, 1.0
        %v2312 = vadd.f32 %v2310, 1.0
        %v2313 = vrcp.pop %v2311
        %v2314 = vmul.f32 1.0, %v2313
        %v2315 = vrcp.pop %v2312
        %v2316 = vmul.f32 1.0, %v2315
        %v2317 = vmul.f32 %v2297, %v2314
        %v2318 = vmul.f32 %v2302, %v2316
        %v2319 = vlaneseq
        %v2320 = vshrl.u32 %v2319, 7
        %v2321 = vsub.s32 0, %v2320
        %v2322 = vrot.slane %v431, %v2321
        %v2324 = vsel %vm589, %v2317, 0
        %v2327 = vsel %vm589, %v2318, 0
        %2329 = vmatprep.subr.mxu0 0.0
        %2330 = vmatpush1.msra.mxu0 %v2174
        %2331 = vmatprep.subr.mxu0 0.0
        %2332 = vmatpush1.msra.mxu0 %v2175
        %2333 = vmatprep.subr.mxu0 0.0
        %2334 = vmatpush1.msra.mxu0 %v2176
        %2335 = vmatprep.subr.mxu0 0.0
        %2336 = vmatpush1.msra.mxu0 %v2177
        %2337 = vmatprep.subr.mxu0 0.0
        %2338 = vmatpush1.msra.mxu0 %v2178
        %2339 = vmatprep.subr.mxu0 0.0
        %2340 = vmatpush1.msra.mxu0 %v2179
        %2341 = vmatprep.subr.mxu0 0.0
        %2342 = vmatpush1.msra.mxu0 %v2180
        %2343 = vmatprep.subr.mxu0 0.0
        %2344 = vmatpush1.msra.mxu0 %v2181
        %2345 = vmatprep.subr.mxu0 0.0
        %2346 = vmatpush1.msra.mxu0 0.0
        %2347 = vmatprep.subr.mxu0 0.0
        %2348 = vmatpush1.msra.mxu0 0.0
        %2349 = vmatprep.subr.mxu0 0.0
        %2350 = vmatpush1.msra.mxu0 0.0
        %2351 = vmatprep.subr.mxu0 0.0
        %2352 = vmatpush1.msra.mxu0 0.0
        %2353 = vmatprep.subr.mxu0 0.0
        %2354 = vmatpush1.msra.mxu0 0.0
        %2355 = vmatprep.subr.mxu0 0.0
        %2356 = vmatpush1.msra.mxu0 0.0
        %2357 = vmatprep.subr.mxu0 0.0
        %2358 = vmatpush1.msra.mxu0 0.0
        %2359 = vmatprep.subr.mxu0 0.0
        %2360 = vmatpush1.msra.mxu0 0.0
        %2361 = vmatprep.subr.mxu0 0.0
        %2362 = vmatpush1.msra.mxu0 0.0
        %2363 = vmatprep.subr.mxu0 0.0
        %2364 = vmatpush1.msra.mxu0 0.0
        %2365 = vmatprep.subr.mxu0 0.0
        %2366 = vmatpush1.msra.mxu0 0.0
        %2367 = vmatprep.subr.mxu0 0.0
        %2368 = vmatpush1.msra.mxu0 0.0
        %2369 = vmatprep.subr.mxu0 0.0
        %2370 = vmatpush1.msra.mxu0 0.0
        %2371 = vmatprep.subr.mxu0 0.0
        %2372 = vmatpush1.msra.mxu0 0.0
        %2373 = vmatprep.subr.mxu0 0.0
        %2374 = vmatpush1.msra.mxu0 0.0
        %2375 = vmatprep.subr.mxu0 0.0
        %2376 = vmatpush1.msra.mxu0 0.0
        %2377 = vmatprep.subr.mxu0 0.0
        %2378 = vmatpush1.msra.mxu0 0.0
        %2379 = vmatprep.subr.mxu0 0.0
        %2380 = vmatpush1.msra.mxu0 0.0
        %2381 = vmatprep.subr.mxu0 0.0
        %2382 = vmatpush1.msra.mxu0 0.0
        %2383 = vmatprep.subr.mxu0 0.0
        %2384 = vmatpush1.msra.mxu0 0.0
        %2385 = vmatprep.subr.mxu0 0.0
        %2386 = vmatpush1.msra.mxu0 0.0
        %2387 = vmatprep.subr.mxu0 0.0
        %2388 = vmatpush1.msra.mxu0 0.0
        %2389 = vmatprep.subr.mxu0 0.0
        %2390 = vmatpush1.msra.mxu0 0.0
        %2391 = vmatprep.subr.mxu0 0.0
        %2392 = vmatpush1.msra.mxu0 0.0
        %2393 = vmatprep.mubr.f32.mxu0 0.0
        %2394 = vmatmul.mubr.f32.gmra.mrb[0].mxu0 %v2324
        %v2395 = vpop.f32.mrb[0].mxu0
        %v2396 = vadd.f32 %v2322, %v2395
        %v2397 = vpop.f32.mrb[0].mxu0
        %2398 = vmatprep.mubr.f32.mxu0 0.0
        %2399 = vmatmul.mubr.f32.gmra.mrb[0].mxu0 %v2327
        %v2400 = vpop.f32.mrb[0].mxu0
        %v2401 = vadd.f32 %v2322, %v2400
        %v2402 = vpop.f32.mrb[0].mxu0
        %2403 = vdwg.mxu0
        %v2404 = vmul.f32 %v2396, 0.5
        %v2405 = vmul.f32 %v2401, 0.5
        %v2406 = vadd.f32 %v2168, %v2404
        %v2407 = vadd.f32 %v2169, %v2405
        %v2408 = vsel %vm446, %v2406, 0.0
        %2409 = vadd.xlane.f32.xlu0 %v2408
        %v2410 = vpop.xlane.xlu0 %2409
        %v2411 = vsel %vm446, %v2407, 0.0
        %2412 = vadd.xlane.f32.xlu0 %v2411
        %v2413 = vpop.xlane.xlu0 %2412
        %v2414 = vmul.f32 %v2410, %v453
        %v2415 = vmul.f32 %v2413, %v453
        %v2416 = vsub.f32 %v2406, %v2414
        %v2417 = vsub.f32 %v2407, %v2415
        %v2418 = vmul.f32 %v2416, %v2416
        %v2419 = vmul.f32 %v2417, %v2417
        %v2420 = vsel %vm446, %v2418, 0.0
        %2421 = vadd.xlane.f32.xlu0 %v2420
        %v2422 = vpop.xlane.xlu0 %2421
        %v2423 = vsel %vm446, %v2419, 0.0
        %2424 = vadd.xlane.f32.xlu0 %v2423
        %v2425 = vpop.xlane.xlu0 %2424
        %v2426 = vmul.f32 %v2422, %v453
        %v2427 = vmul.f32 %v2425, %v453
        %v2428 = vadd.f32 %v2426, 1e-05
        %v2429 = vadd.f32 %v2427, 1e-05
        %v2430 = vrsqrt.pop %v2428
        %v2431 = vrsqrt.pop %v2429
        %v2432 = vmul.f32 %v2416, %v2430
        %v2433 = vmul.f32 %v2417, %v2431
        %v2434 = vlaneseq
        %v2435 = vshrl.u32 %v2434, 7
        %v2436 = vsub.s32 1, %v2435
        %v2437 = vrot.slane %v431, %v2436
        %v2438 = vmul.f32 %v2432, %v2437
        %v2439 = vmul.f32 %v2433, %v2437
        %v2440 = vlaneseq
        %v2441 = vshrl.u32 %v2440, 7
        %v2442 = vsub.s32 2, %v2441
        %v2443 = vrot.slane %v431, %v2442
        %v2444 = vadd.f32 %v2438, %v2443
        %v2445 = vadd.f32 %v2439, %v2443
        %2446 = vst.msk [vmem:[%s423] sm:$0xff] %vm446, %v2444
        %2447 = vst.msk [vmem:[%s423 + $0x8] sm:$0xff] %vm446, %v2445
        %s2448 = sand.u32 %s271, 1
        %s2449 = scalar_lea.sflag [#allocation4], %s2448
        %s2450 = sand.u32 %s271, 1
        %s2451 = smul.addr %s2450, 16
        %s2452 = scalar_lea.vmem [#allocation8], %s2451
        // Predicated region
        $region77: #{tpu_custom_call.1} parent=63 // pred_check
          %p2453 = pneg %p281
        $region78: #{tpu_custom_call.1} parent=63 // pred_check_branch
          %2455 = sbr.rel (%p2453) target = $region80
        $region79: #{tpu_custom_call.1} parent=63 // pred_region
          %s2457 = ssub.s32 256, 256
          %2458 = vsyncadd %s2449, %s2457
          %s2459 = smul.addr %s27, 2
          %s2460 = smul.addr %s2459, 128
          %s2461 = scalar_lea.hbm %s11, %s2460
          %s2462 = sshll.u32 %s2452, 4
          %s2463 = int_to_ptr.vmem [resolvable:$true] %s2462
          %2468 = dma.vmem_to_hbm [thread:$0]  %s2463, 256, %s2461, %s2449, 128, 128, 8
        $region80: #{tpu_custom_call.1} parent=63 // pred_fallthru
          _
      $region64: #{tpu_custom_call.1} parent=5 // pred_fallthru
        _
      %p2469 = scmp.le.s32.totalorder 2, %s22
      // Predicated region
      $region81: #{tpu_custom_call.1} parent=5 // pred_check
        %p2470 = pneg %p2469
      $region82: #{tpu_custom_call.1} parent=5 // pred_check_branch
        %2472 = sbr.rel (%p2470) target = $region84
      $region83: #{tpu_custom_call.1} parent=5 // pred_region
        %s2473 = ssub.s32 %s22, 2
        // Predicated region
        $region85: #{tpu_custom_call.1} parent=83 // pred_check
          %p2474 = pneg %p287
        $region86: #{tpu_custom_call.1} parent=83 // pred_check_branch
          %2476 = sbr.rel (%p2474) target = $region88
        $region87: #{tpu_custom_call.1} parent=83 // pred_region
          %s2477 = sand.u32 %s272, 1
          %s2478 = scalar_lea.sflag [#allocation4], %s2477
          %s2479 = sand.u32 %s272, 1
          %s2480 = smul.addr %s2479, 16
          %s2481 = scalar_lea.vmem [#allocation8], %s2480
          %2482 = dma.done %s2478, 256
        $region88: #{tpu_custom_call.1} parent=83 // pred_fallthru
          _
      $region84: #{tpu_custom_call.1} parent=5 // pred_fallthru
        _
    $region6: #{tpu_custom_call.1} parent=1 // loop_footer
      %s26 = sadd.s32 1, %s22
    $region7: #{tpu_custom_call.1} parent=1 // loop_footer_branch
      %21 = sbr.rel target = $region3
    $region8: #{tpu_custom_call.1} parent=1 // loop_exit
      _
    %2483 = vsyncpa [#allocation3], 1
    %s2484 = scalar_lea.sflag [#allocation3], 1
    %2485 = vsyncpa %s2484, 1
    %2486 = vsyncpa [#allocation6], 1
    %2487 = vsyncpa [#allocation4], 1
    %s2488 = scalar_lea.sflag [#allocation4], 1
    %2489 = vsyncpa %s2488, 1

</llo_original>
